<compile_context>
chip_gen: v6e
topology: v6e:2x2x1
jax: 0.10.0
libtpu: 0.0.40
codegen_flags: <defaults>
</compile_context>

<pallas_src>
import jax
import jax.numpy as jnp
from jax.experimental import pallas as pl
from jax.experimental.pallas import tpu as pltpu


def _sigmoid(x):
    # 1/(1+exp(-x)) written with exp so it lowers cleanly on every TPU gen.
    return 1.0 / (1.0 + jnp.exp(-x))


def _lstm_cell(x, h, c, w_ih_ref, w_hh_ref, b_ref, dh):
    # PyTorch gate order: i, f, g, o.
    gates = (jnp.dot(x, w_ih_ref[...], preferred_element_type=jnp.float32)
             + jnp.dot(h, w_hh_ref[...], preferred_element_type=jnp.float32)
             + b_ref[...])
    i = _sigmoid(gates[:, 0 * dh:1 * dh])
    f = _sigmoid(gates[:, 1 * dh:2 * dh])
    g = jnp.tanh(gates[:, 2 * dh:3 * dh])
    o = _sigmoid(gates[:, 3 * dh:4 * dh])
    c_new = f * c + i * g
    h_new = o * jnp.tanh(c_new)
    return h_new, c_new


def easyreg_kernel(emb_ref, wlens_ref, nsyls_ref,
                   w_ih1_ref, w_hh1_ref, b1_ref,
                   w_ih2_ref, w_hh2_ref, b2_ref,
                   w_wlen_ref, w_nsyl_ref, w_r1h_ref, b_r1_ref,
                   w_r2_ref, b_out_ref,
                   out_ref,
                   h1_ref, c1_ref, h2_ref, c2_ref):
    t = pl.program_id(1)
    dh = h1_ref.shape[-1]
    ts_block = emb_ref.shape[0]

    # Reset the recurrent state at the start of each batch tile's seq sweep.
    @pl.when(t == 0)
    def _():
        h1_ref[...] = jnp.zeros_like(h1_ref)
        c1_ref[...] = jnp.zeros_like(c1_ref)
        h2_ref[...] = jnp.zeros_like(h2_ref)
        c2_ref[...] = jnp.zeros_like(c2_ref)

    # 2-layer LSTM over the timesteps contained in this emb tile.
    for ts in range(ts_block):
        x_t = emb_ref[ts].astype(jnp.float32)          # (TB, H), bf16 -> f32
        h1, c1 = _lstm_cell(x_t, h1_ref[...], c1_ref[...],
                            w_ih1_ref, w_hh1_ref, b1_ref, dh)
        h1_ref[...] = h1
        c1_ref[...] = c1
        h2, c2 = _lstm_cell(h1, h2_ref[...], c2_ref[...],
                            w_ih2_ref, w_hh2_ref, b2_ref, dh)
        h2_ref[...] = h2
        c2_ref[...] = c2

    # Regression head once, on the final seq tile (last timestep state).
    @pl.when(t == pl.num_programs(1) - 1)
    def _():
        h_last = h2_ref[...]                            # (TB, Dh)
        # Folded cat([wlens, nsyls, h_last]) @ W_r1.T + b_r1.
        z = (wlens_ref[...] * w_wlen_ref[...]
             + nsyls_ref[...] * w_nsyl_ref[...]
             + jnp.dot(h_last, w_r1h_ref[...], preferred_element_type=jnp.float32)
             + b_r1_ref[...])
        z = jax.nn.gelu(z, approximate=True)            # tanh GELU (EUP path)
        # (TB, D) @ (D, 1) as VPU mul + lane reduce instead of an N=1 matmul.
        reg = jnp.sum(z * w_r2_ref[...], axis=-1, keepdims=True) + b_out_ref[0, 0]
        out_ref[...] = reg.astype(out_ref.dtype)


def easyreg_forward(emb_sbh, wlens, nsyls,
                    w_ih1, w_hh1, b1,
                    w_ih2, w_hh2, b2,
                    w_wlen, w_nsyl, w_r1h, b_r1,
                    w_r2, b_out,
                    *, seq_tile=4, batch_tile=None):
    S, B, H = emb_sbh.shape
    Dh = w_hh1.shape[0]
    G = w_ih1.shape[1]
    D = w_r1h.shape[1]
    TB = B if batch_tile is None else batch_tile
    TS = min(seq_tile, S)
    assert B % TB == 0 and S % TS == 0

    def full(shape):
        return pl.BlockSpec(shape, lambda b, t: (0,) * len(shape))

    return pl.pallas_call(
        easyreg_kernel,
        out_shape=jax.ShapeDtypeStruct((B, 1), jnp.float32),
        grid=(B // TB, S // TS),
        in_specs=[
            pl.BlockSpec((TS, TB, H), lambda b, t: (t, b, 0)),   # emb (seq-major, bf16)
            pl.BlockSpec((TB, 1), lambda b, t: (b, 0)),          # wlens
            pl.BlockSpec((TB, 1), lambda b, t: (b, 0)),          # nsyls
            full((H, G)), full((Dh, G)), full((1, G)),           # LSTM layer 1
            full((Dh, G)), full((Dh, G)), full((1, G)),          # LSTM layer 2
            full((1, D)), full((1, D)), full((Dh, D)), full((1, D)),  # reg Linear1 (folded)
            full((1, D)),                                        # reg Linear2 weight row
            pl.BlockSpec(memory_space=pltpu.MemorySpace.SMEM),   # reg Linear2 bias scalar
        ],
        out_specs=pl.BlockSpec((TB, 1), lambda b, t: (b, 0)),
        scratch_shapes=[pltpu.VMEM((TB, Dh), jnp.float32)] * 4,  # h1, c1, h2, c2
        compiler_params=pltpu.CompilerParams(
            dimension_semantics=("parallel", "arbitrary")),
    )(emb_sbh, wlens, nsyls,
      w_ih1, w_hh1, b1, w_ih2, w_hh2, b2,
      w_wlen, w_nsyl, w_r1h, b_r1, w_r2, b_out)


if __name__ == "__main__":
    B, S = 8, 8          # batch, sequence length
    H = 128              # "BERT" hidden size (stand-in for 768)
    Dh = 128             # lstm_hidden_dim (stand-in for 256)
    D = 128              # interim_linear_dim (stand-in for 1024)
    V = 64               # synthetic vocab size

    key = jax.random.PRNGKey(0)
    (k_tab, k_ids, k_wl, k_ns,
     k_wih1, k_whh1, k_bih1, k_bhh1,
     k_wih2, k_whh2, k_bih2, k_bhh2,
     k_wr1, k_br1, k_wr2, k_br2) = jax.random.split(key, 16)

    # Deterministic "BERT" stand-in: token-embedding table lookup (plain JAX).
    emb_table = jax.random.normal(k_tab, (V, H), jnp.float32) * 0.1
    ids = jax.random.randint(k_ids, (B, S), 0, V)
    wlens = jax.random.uniform(k_wl, (B, 1), jnp.float32, 1.0, 10.0)
    nsyls = jax.random.uniform(k_ns, (B, 1), jnp.float32, 1.0, 5.0)

    def init(k, shape, fan_in):
        return jax.random.normal(k, shape, jnp.float32) / jnp.sqrt(fan_in)

    # LSTM parameters in PyTorch layout (W_ih: (4*Dh, in), W_hh: (4*Dh, Dh)).
    W_ih1 = init(k_wih1, (4 * Dh, H), H)
    W_hh1 = init(k_whh1, (4 * Dh, Dh), Dh)
    b_ih1 = init(k_bih1, (4 * Dh,), Dh)
    b_hh1 = init(k_bhh1, (4 * Dh,), Dh)
    W_ih2 = init(k_wih2, (4 * Dh, Dh), Dh)
    W_hh2 = init(k_whh2, (4 * Dh, Dh), Dh)
    b_ih2 = init(k_bih2, (4 * Dh,), Dh)
    b_hh2 = init(k_bhh2, (4 * Dh,), Dh)

    # reg_head: Linear(2+Dh, D) -> GELU -> Linear(D, 1), PyTorch layout.
    W_r1 = init(k_wr1, (D, 2 + Dh), 2 + Dh)
    b_r1 = init(k_br1, (D,), 2 + Dh)
    W_r2 = init(k_wr2, (1, D), D)
    b_r2 = init(k_br2, (1,), D)

    # --- layout prep for the kernel --------------------------------------
    emb = emb_table[ids]                                            # (B, S, H) f32
    emb_sbh = jnp.transpose(emb, (1, 0, 2)).astype(jnp.bfloat16)    # seq-major bf16 stream

    w_ih1_k = W_ih1.T
    w_hh1_k = W_hh1.T
    b1_k = (b_ih1 + b_hh1)[None, :]
    w_ih2_k = W_ih2.T
    w_hh2_k = W_hh2.T
    b2_k = (b_ih2 + b_hh2)[None, :]
    w_wlen_k = W_r1[:, 0][None, :]
    w_nsyl_k = W_r1[:, 1][None, :]
    w_r1h_k = W_r1[:, 2:].T
    b_r1_k = b_r1[None, :]
    w_r2_k = W_r2
    b_out_k = b_r2.reshape(1, 1)

    out = easyreg_forward(emb_sbh, wlens, nsyls,
                          w_ih1_k, w_hh1_k, b1_k,
                          w_ih2_k, w_hh2_k, b2_k,
                          w_wlen_k, w_nsyl_k, w_r1h_k, b_r1_k,
                          w_r2_k, b_out_k,
                          seq_tile=4)
    out = jax.block_until_ready(out)

    # --- pure-JAX reference (same math, PyTorch parameter layout) --------
    def sigm(x):
        return 1.0 / (1.0 + jnp.exp(-x))

    def cell(x, h, c, W_ih, W_hh, b_ih, b_hh):
        g = x @ W_ih.T + b_ih + h @ W_hh.T + b_hh
        i, f, gg, o = jnp.split(g, 4, axis=-1)
        c_new = sigm(f) * c + sigm(i) * jnp.tanh(gg)
        return sigm(o) * jnp.tanh(c_new), c_new

    x_f32 = emb_sbh.astype(jnp.float32)                 # same bf16-rounded input
    h1 = jnp.zeros((B, Dh), jnp.float32)
    c1 = jnp.zeros((B, Dh), jnp.float32)
    h2 = jnp.zeros((B, Dh), jnp.float32)
    c2 = jnp.zeros((B, Dh), jnp.float32)
    for t in range(S):
        h1, c1 = cell(x_f32[t], h1, c1, W_ih1, W_hh1, b_ih1, b_hh1)
        h2, c2 = cell(h1, h2, c2, W_ih2, W_hh2, b_ih2, b_hh2)
    cat = jnp.concatenate([wlens, nsyls, h2], axis=-1)
    ref = jax.nn.gelu(cat @ W_r1.T + b_r1, approximate=True) @ W_r2.T + b_r2

    assert out.shape == (B, 1)
    assert jnp.allclose(out, ref, atol=1e-2, rtol=1e-2), (out, ref)

    print("KERNEL_OK")
</pallas_src>

<mosaic_0001>
module attributes {stable_mosaic.version = 11 : i64} {
  func.func @easyreg_kernel(%arg0: i32, %arg1: i32, %arg2: memref<4x8x128xbf16, #tpu.memory_space<vmem>>, %arg3: memref<8x1xf32, #tpu.memory_space<vmem>>, %arg4: memref<8x1xf32, #tpu.memory_space<vmem>>, %arg5: memref<128x512xf32, #tpu.memory_space<vmem>>, %arg6: memref<128x512xf32, #tpu.memory_space<vmem>>, %arg7: memref<1x512xf32, #tpu.memory_space<vmem>>, %arg8: memref<128x512xf32, #tpu.memory_space<vmem>>, %arg9: memref<128x512xf32, #tpu.memory_space<vmem>>, %arg10: memref<1x512xf32, #tpu.memory_space<vmem>>, %arg11: memref<1x128xf32, #tpu.memory_space<vmem>>, %arg12: memref<1x128xf32, #tpu.memory_space<vmem>>, %arg13: memref<128x128xf32, #tpu.memory_space<vmem>>, %arg14: memref<1x128xf32, #tpu.memory_space<vmem>>, %arg15: memref<1x128xf32, #tpu.memory_space<vmem>>, %arg16: memref<1x1xf32, #tpu.memory_space<smem>>, %arg17: memref<8x1xf32, #tpu.memory_space<vmem>>, %arg18: memref<8x128xf32, #tpu.memory_space<vmem>>, %arg19: memref<8x128xf32, #tpu.memory_space<vmem>>, %arg20: memref<8x128xf32, #tpu.memory_space<vmem>>, %arg21: memref<8x128xf32, #tpu.memory_space<vmem>>) attributes {dimension_semantics = [#tpu.dimension_semantics<parallel>, #tpu.dimension_semantics<arbitrary>], iteration_bounds = array<i64: 1, 2>, scalar_prefetch = 0 : i64, scratch_operands = 4 : i64, tpu.core_type = #tpu.core_type<tc>, window_params = [{transform_indices = @transform_0, window_bounds = array<i64: 4, 8, 128>}, {transform_indices = @transform_1, window_bounds = array<i64: 8, 1>}, {transform_indices = @transform_2, window_bounds = array<i64: 8, 1>}, {pipeline_mode = #tpu.pipeline_mode<synchronous>, transform_indices = @transform_3, window_bounds = array<i64: 128, 512>}, {pipeline_mode = #tpu.pipeline_mode<synchronous>, transform_indices = @transform_4, window_bounds = array<i64: 128, 512>}, {pipeline_mode = #tpu.pipeline_mode<synchronous>, transform_indices = @transform_5, window_bounds = array<i64: 1, 512>}, {pipeline_mode = #tpu.pipeline_mode<synchronous>, transform_indices = @transform_6, window_bounds = array<i64: 128, 512>}, {pipeline_mode = #tpu.pipeline_mode<synchronous>, transform_indices = @transform_7, window_bounds = array<i64: 128, 512>}, {pipeline_mode = #tpu.pipeline_mode<synchronous>, transform_indices = @transform_8, window_bounds = array<i64: 1, 512>}, {pipeline_mode = #tpu.pipeline_mode<synchronous>, transform_indices = @transform_9, window_bounds = array<i64: 1, 128>}, {pipeline_mode = #tpu.pipeline_mode<synchronous>, transform_indices = @transform_10, window_bounds = array<i64: 1, 128>}, {pipeline_mode = #tpu.pipeline_mode<synchronous>, transform_indices = @transform_11, window_bounds = array<i64: 128, 128>}, {pipeline_mode = #tpu.pipeline_mode<synchronous>, transform_indices = @transform_12, window_bounds = array<i64: 1, 128>}, {pipeline_mode = #tpu.pipeline_mode<synchronous>, transform_indices = @transform_13, window_bounds = array<i64: 1, 128>}, {transform_indices = @transform_14, window_bounds = array<i64: 1, 1>}, {transform_indices = @transform_15, window_bounds = array<i64: 8, 1>}]} {
    %c0_i32 = arith.constant 0 : i32
    %0 = arith.cmpi eq, %arg1, %c0_i32 : i32
    %1 = arith.extui %0 : i1 to i32
    %c0_i32_0 = arith.constant 0 : i32
    %2 = arith.cmpi ne, %1, %c0_i32_0 : i32
    scf.if %2 {
      %cst_209 = arith.constant 0.000000e+00 : f32
      %362 = vector.broadcast %cst_209 : f32 to vector<8x128xf32>
      %c0_210 = arith.constant 0 : index
      %c0_211 = arith.constant 0 : index
      %363 = vector.load %arg18[%c0_210, %c0_211] : memref<8x128xf32, #tpu.memory_space<vmem>>, vector<8x128xf32>
      tpu.vector_store %arg18[%c0_210, %c0_211], %362 {strides = array<i32>} : memref<8x128xf32, #tpu.memory_space<vmem>>, vector<8x128xf32>,
      %cst_212 = arith.constant 0.000000e+00 : f32
      %364 = vector.broadcast %cst_212 : f32 to vector<8x128xf32>
      %c0_213 = arith.constant 0 : index
      %c0_214 = arith.constant 0 : index
      %365 = vector.load %arg19[%c0_213, %c0_214] : memref<8x128xf32, #tpu.memory_space<vmem>>, vector<8x128xf32>
      tpu.vector_store %arg19[%c0_213, %c0_214], %364 {strides = array<i32>} : memref<8x128xf32, #tpu.memory_space<vmem>>, vector<8x128xf32>,
      %cst_215 = arith.constant 0.000000e+00 : f32
      %366 = vector.broadcast %cst_215 : f32 to vector<8x128xf32>
      %c0_216 = arith.constant 0 : index
      %c0_217 = arith.constant 0 : index
      %367 = vector.load %arg20[%c0_216, %c0_217] : memref<8x128xf32, #tpu.memory_space<vmem>>, vector<8x128xf32>
      tpu.vector_store %arg20[%c0_216, %c0_217], %366 {strides = array<i32>} : memref<8x128xf32, #tpu.memory_space<vmem>>, vector<8x128xf32>,
      %cst_218 = arith.constant 0.000000e+00 : f32
      %368 = vector.broadcast %cst_218 : f32 to vector<8x128xf32>
      %c0_219 = arith.constant 0 : index
      %c0_220 = arith.constant 0 : index
      %369 = vector.load %arg21[%c0_219, %c0_220] : memref<8x128xf32, #tpu.memory_space<vmem>>, vector<8x128xf32>
      tpu.vector_store %arg21[%c0_219, %c0_220], %368 {strides = array<i32>} : memref<8x128xf32, #tpu.memory_space<vmem>>, vector<8x128xf32>,
    } else {
    }
    %c0 = arith.constant 0 : index
    %c0_1 = arith.constant 0 : index
    %c0_2 = arith.constant 0 : index
    %3 = vector.load %arg2[%c0, %c0_1, %c0_2] : memref<4x8x128xbf16, #tpu.memory_space<vmem>>, vector<1x8x128xbf16>
    %4 = vector.shape_cast %3 : vector<1x8x128xbf16> to vector<8x128xbf16>
    %5 = arith.extf %4 : vector<8x128xbf16> to vector<8x128xf32>
    %c0_3 = arith.constant 0 : index
    %c0_4 = arith.constant 0 : index
    %6 = vector.load %arg18[%c0_3, %c0_4] : memref<8x128xf32, #tpu.memory_space<vmem>>, vector<8x128xf32>
    %c0_5 = arith.constant 0 : index
    %c0_6 = arith.constant 0 : index
    %7 = vector.load %arg19[%c0_5, %c0_6] : memref<8x128xf32, #tpu.memory_space<vmem>>, vector<8x128xf32>
    %c0_7 = arith.constant 0 : index
    %c0_8 = arith.constant 0 : index
    %8 = vector.load %arg5[%c0_7, %c0_8] : memref<128x512xf32, #tpu.memory_space<vmem>>, vector<128x512xf32>
    %cst = arith.constant dense<0.000000e+00> : vector<8x512xf32>
    %9 = tpu.matmul %5, %8, %cst {dimension_numbers = #tpu.dot_dimension_numbers<[1], [0], [0], [1], [0, 0, 1, 1], [], []>} : vector<8x128xf32>, vector<128x512xf32>, vector<8x512xf32> -> vector<8x512xf32>
    %c0_9 = arith.constant 0 : index
    %c0_10 = arith.constant 0 : index
    %10 = vector.load %arg6[%c0_9, %c0_10] : memref<128x512xf32, #tpu.memory_space<vmem>>, vector<128x512xf32>
    %cst_11 = arith.constant dense<0.000000e+00> : vector<8x512xf32>
    %11 = tpu.matmul %6, %10, %cst_11 {dimension_numbers = #tpu.dot_dimension_numbers<[1], [0], [0], [1], [0, 0, 1, 1], [], []>} : vector<8x128xf32>, vector<128x512xf32>, vector<8x512xf32> -> vector<8x512xf32>
    %12 = arith.addf %9, %11 : vector<8x512xf32>
    %c0_12 = arith.constant 0 : index
    %c0_13 = arith.constant 0 : index
    %13 = vector.load %arg7[%c0_12, %c0_13] : memref<1x512xf32, #tpu.memory_space<vmem>>, vector<1x512xf32>
    %14 = vector.broadcast %13 : vector<1x512xf32> to vector<8x512xf32>
    %15 = arith.addf %12, %14 : vector<8x512xf32>
    %16 = vector.extract_strided_slice %15 {offsets = [0, 0], sizes = [8, 128], strides = [1, 1]} : vector<8x512xf32> to vector<8x128xf32>
    %cst_14 = arith.constant 0.000000e+00 : f32
    %17 = vector.broadcast %cst_14 : f32 to vector<8x128xf32>
    %18 = arith.subf %17, %16 : vector<8x128xf32>
    %19 = math.exp %18 : vector<8x128xf32>
    %cst_15 = arith.constant 1.000000e+00 : f32
    %20 = vector.broadcast %cst_15 : f32 to vector<8x128xf32>
    %21 = arith.addf %20, %19 : vector<8x128xf32>
    %cst_16 = arith.constant 1.000000e+00 : f32
    %22 = vector.broadcast %cst_16 : f32 to vector<8x128xf32>
    %23 = arith.divf %22, %21 : vector<8x128xf32>
    %24 = vector.extract_strided_slice %15 {offsets = [0, 128], sizes = [8, 128], strides = [1, 1]} : vector<8x512xf32> to vector<8x128xf32>
    %cst_17 = arith.constant 0.000000e+00 : f32
    %25 = vector.broadcast %cst_17 : f32 to vector<8x128xf32>
    %26 = arith.subf %25, %24 : vector<8x128xf32>
    %27 = math.exp %26 : vector<8x128xf32>
    %cst_18 = arith.constant 1.000000e+00 : f32
    %28 = vector.broadcast %cst_18 : f32 to vector<8x128xf32>
    %29 = arith.addf %28, %27 : vector<8x128xf32>
    %cst_19 = arith.constant 1.000000e+00 : f32
    %30 = vector.broadcast %cst_19 : f32 to vector<8x128xf32>
    %31 = arith.divf %30, %29 : vector<8x128xf32>
    %32 = vector.extract_strided_slice %15 {offsets = [0, 256], sizes = [8, 128], strides = [1, 1]} : vector<8x512xf32> to vector<8x128xf32>
    %33 = math.tanh %32 : vector<8x128xf32>
    %34 = vector.extract_strided_slice %15 {offsets = [0, 384], sizes = [8, 128], strides = [1, 1]} : vector<8x512xf32> to vector<8x128xf32>
    %cst_20 = arith.constant 0.000000e+00 : f32
    %35 = vector.broadcast %cst_20 : f32 to vector<8x128xf32>
    %36 = arith.subf %35, %34 : vector<8x128xf32>
    %37 = math.exp %36 : vector<8x128xf32>
    %cst_21 = arith.constant 1.000000e+00 : f32
    %38 = vector.broadcast %cst_21 : f32 to vector<8x128xf32>
    %39 = arith.addf %38, %37 : vector<8x128xf32>
    %cst_22 = arith.constant 1.000000e+00 : f32
    %40 = vector.broadcast %cst_22 : f32 to vector<8x128xf32>
    %41 = arith.divf %40, %39 : vector<8x128xf32>
    %42 = arith.mulf %31, %7 : vector<8x128xf32>
    %43 = arith.mulf %23, %33 : vector<8x128xf32>
    %44 = arith.addf %42, %43 : vector<8x128xf32>
    %45 = math.tanh %44 : vector<8x128xf32>
    %46 = arith.mulf %41, %45 : vector<8x128xf32>
    %c0_23 = arith.constant 0 : index
    %c0_24 = arith.constant 0 : index
    %47 = vector.load %arg18[%c0_23, %c0_24] : memref<8x128xf32, #tpu.memory_space<vmem>>, vector<8x128xf32>
    tpu.vector_store %arg18[%c0_23, %c0_24], %46 {strides = array<i32>} : memref<8x128xf32, #tpu.memory_space<vmem>>, vector<8x128xf32>,
    %c0_25 = arith.constant 0 : index
    %c0_26 = arith.constant 0 : index
    %48 = vector.load %arg19[%c0_25, %c0_26] : memref<8x128xf32, #tpu.memory_space<vmem>>, vector<8x128xf32>
    tpu.vector_store %arg19[%c0_25, %c0_26], %44 {strides = array<i32>} : memref<8x128xf32, #tpu.memory_space<vmem>>, vector<8x128xf32>,
    %c0_27 = arith.constant 0 : index
    %c0_28 = arith.constant 0 : index
    %49 = vector.load %arg20[%c0_27, %c0_28] : memref<8x128xf32, #tpu.memory_space<vmem>>, vector<8x128xf32>
    %c0_29 = arith.constant 0 : index
    %c0_30 = arith.constant 0 : index
    %50 = vector.load %arg21[%c0_29, %c0_30] : memref<8x128xf32, #tpu.memory_space<vmem>>, vector<8x128xf32>
    %c0_31 = arith.constant 0 : index
    %c0_32 = arith.constant 0 : index
    %51 = vector.load %arg8[%c0_31, %c0_32] : memref<128x512xf32, #tpu.memory_space<vmem>>, vector<128x512xf32>
    %cst_33 = arith.constant dense<0.000000e+00> : vector<8x512xf32>
    %52 = tpu.matmul %46, %51, %cst_33 {dimension_numbers = #tpu.dot_dimension_numbers<[1], [0], [0], [1], [0, 0, 1, 1], [], []>} : vector<8x128xf32>, vector<128x512xf32>, vector<8x512xf32> -> vector<8x512xf32>
    %c0_34 = arith.constant 0 : index
    %c0_35 = arith.constant 0 : index
    %53 = vector.load %arg9[%c0_34, %c0_35] : memref<128x512xf32, #tpu.memory_space<vmem>>, vector<128x512xf32>
    %cst_36 = arith.constant dense<0.000000e+00> : vector<8x512xf32>
    %54 = tpu.matmul %49, %53, %cst_36 {dimension_numbers = #tpu.dot_dimension_numbers<[1], [0], [0], [1], [0, 0, 1, 1], [], []>} : vector<8x128xf32>, vector<128x512xf32>, vector<8x512xf32> -> vector<8x512xf32>
    %55 = arith.addf %52, %54 : vector<8x512xf32>
    %c0_37 = arith.constant 0 : index
    %c0_38 = arith.constant 0 : index
    %56 = vector.load %arg10[%c0_37, %c0_38] : memref<1x512xf32, #tpu.memory_space<vmem>>, vector<1x512xf32>
    %57 = vector.broadcast %56 : vector<1x512xf32> to vector<8x512xf32>
    %58 = arith.addf %55, %57 : vector<8x512xf32>
    %59 = vector.extract_strided_slice %58 {offsets = [0, 0], sizes = [8, 128], strides = [1, 1]} : vector<8x512xf32> to vector<8x128xf32>
    %cst_39 = arith.constant 0.000000e+00 : f32
    %60 = vector.broadcast %cst_39 : f32 to vector<8x128xf32>
    %61 = arith.subf %60, %59 : vector<8x128xf32>
    %62 = math.exp %61 : vector<8x128xf32>
    %cst_40 = arith.constant 1.000000e+00 : f32
    %63 = vector.broadcast %cst_40 : f32 to vector<8x128xf32>
    %64 = arith.addf %63, %62 : vector<8x128xf32>
    %cst_41 = arith.constant 1.000000e+00 : f32
    %65 = vector.broadcast %cst_41 : f32 to vector<8x128xf32>
    %66 = arith.divf %65, %64 : vector<8x128xf32>
    %67 = vector.extract_strided_slice %58 {offsets = [0, 128], sizes = [8, 128], strides = [1, 1]} : vector<8x512xf32> to vector<8x128xf32>
    %cst_42 = arith.constant 0.000000e+00 : f32
    %68 = vector.broadcast %cst_42 : f32 to vector<8x128xf32>
    %69 = arith.subf %68, %67 : vector<8x128xf32>
    %70 = math.exp %69 : vector<8x128xf32>
    %cst_43 = arith.constant 1.000000e+00 : f32
    %71 = vector.broadcast %cst_43 : f32 to vector<8x128xf32>
    %72 = arith.addf %71, %70 : vector<8x128xf32>
    %cst_44 = arith.constant 1.000000e+00 : f32
    %73 = vector.broadcast %cst_44 : f32 to vector<8x128xf32>
    %74 = arith.divf %73, %72 : vector<8x128xf32>
    %75 = vector.extract_strided_slice %58 {offsets = [0, 256], sizes = [8, 128], strides = [1, 1]} : vector<8x512xf32> to vector<8x128xf32>
    %76 = math.tanh %75 : vector<8x128xf32>
    %77 = vector.extract_strided_slice %58 {offsets = [0, 384], sizes = [8, 128], strides = [1, 1]} : vector<8x512xf32> to vector<8x128xf32>
    %cst_45 = arith.constant 0.000000e+00 : f32
    %78 = vector.broadcast %cst_45 : f32 to vector<8x128xf32>
    %79 = arith.subf %78, %77 : vector<8x128xf32>
    %80 = math.exp %79 : vector<8x128xf32>
    %cst_46 = arith.constant 1.000000e+00 : f32
    %81 = vector.broadcast %cst_46 : f32 to vector<8x128xf32>
    %82 = arith.addf %81, %80 : vector<8x128xf32>
    %cst_47 = arith.constant 1.000000e+00 : f32
    %83 = vector.broadcast %cst_47 : f32 to vector<8x128xf32>
    %84 = arith.divf %83, %82 : vector<8x128xf32>
    %85 = arith.mulf %74, %50 : vector<8x128xf32>
    %86 = arith.mulf %66, %76 : vector<8x128xf32>
    %87 = arith.addf %85, %86 : vector<8x128xf32>
    %88 = math.tanh %87 : vector<8x128xf32>
    %89 = arith.mulf %84, %88 : vector<8x128xf32>
    %c0_48 = arith.constant 0 : index
    %c0_49 = arith.constant 0 : index
    %90 = vector.load %arg20[%c0_48, %c0_49] : memref<8x128xf32, #tpu.memory_space<vmem>>, vector<8x128xf32>
    tpu.vector_store %arg20[%c0_48, %c0_49], %89 {strides = array<i32>} : memref<8x128xf32, #tpu.memory_space<vmem>>, vector<8x128xf32>,
    %c0_50 = arith.constant 0 : index
    %c0_51 = arith.constant 0 : index
    %91 = vector.load %arg21[%c0_50, %c0_51] : memref<8x128xf32, #tpu.memory_space<vmem>>, vector<8x128xf32>
    tpu.vector_store %arg21[%c0_50, %c0_51], %87 {strides = array<i32>} : memref<8x128xf32, #tpu.memory_space<vmem>>, vector<8x128xf32>,
    %c1 = arith.constant 1 : index
    %c0_52 = arith.constant 0 : index
    %c0_53 = arith.constant 0 : index
    %92 = vector.load %arg2[%c1, %c0_52, %c0_53] : memref<4x8x128xbf16, #tpu.memory_space<vmem>>, vector<1x8x128xbf16>
    %93 = vector.shape_cast %92 : vector<1x8x128xbf16> to vector<8x128xbf16>
    %94 = arith.extf %93 : vector<8x128xbf16> to vector<8x128xf32>
    %c0_54 = arith.constant 0 : index
    %c0_55 = arith.constant 0 : index
    %95 = vector.load %arg18[%c0_54, %c0_55] : memref<8x128xf32, #tpu.memory_space<vmem>>, vector<8x128xf32>
    %c0_56 = arith.constant 0 : index
    %c0_57 = arith.constant 0 : index
    %96 = vector.load %arg19[%c0_56, %c0_57] : memref<8x128xf32, #tpu.memory_space<vmem>>, vector<8x128xf32>
    %c0_58 = arith.constant 0 : index
    %c0_59 = arith.constant 0 : index
    %97 = vector.load %arg5[%c0_58, %c0_59] : memref<128x512xf32, #tpu.memory_space<vmem>>, vector<128x512xf32>
    %cst_60 = arith.constant dense<0.000000e+00> : vector<8x512xf32>
    %98 = tpu.matmul %94, %97, %cst_60 {dimension_numbers = #tpu.dot_dimension_numbers<[1], [0], [0], [1], [0, 0, 1, 1], [], []>} : vector<8x128xf32>, vector<128x512xf32>, vector<8x512xf32> -> vector<8x512xf32>
    %c0_61 = arith.constant 0 : index
    %c0_62 = arith.constant 0 : index
    %99 = vector.load %arg6[%c0_61, %c0_62] : memref<128x512xf32, #tpu.memory_space<vmem>>, vector<128x512xf32>
    %cst_63 = arith.constant dense<0.000000e+00> : vector<8x512xf32>
    %100 = tpu.matmul %95, %99, %cst_63 {dimension_numbers = #tpu.dot_dimension_numbers<[1], [0], [0], [1], [0, 0, 1, 1], [], []>} : vector<8x128xf32>, vector<128x512xf32>, vector<8x512xf32> -> vector<8x512xf32>
    %101 = arith.addf %98, %100 : vector<8x512xf32>
    %c0_64 = arith.constant 0 : index
    %c0_65 = arith.constant 0 : index
    %102 = vector.load %arg7[%c0_64, %c0_65] : memref<1x512xf32, #tpu.memory_space<vmem>>, vector<1x512xf32>
    %103 = vector.broadcast %102 : vector<1x512xf32> to vector<8x512xf32>
    %104 = arith.addf %101, %103 : vector<8x512xf32>
    %105 = vector.extract_strided_slice %104 {offsets = [0, 0], sizes = [8, 128], strides = [1, 1]} : vector<8x512xf32> to vector<8x128xf32>
    %cst_66 = arith.constant 0.000000e+00 : f32
    %106 = vector.broadcast %cst_66 : f32 to vector<8x128xf32>
    %107 = arith.subf %106, %105 : vector<8x128xf32>
    %108 = math.exp %107 : vector<8x128xf32>
    %cst_67 = arith.constant 1.000000e+00 : f32
    %109 = vector.broadcast %cst_67 : f32 to vector<8x128xf32>
    %110 = arith.addf %109, %108 : vector<8x128xf32>
    %cst_68 = arith.constant 1.000000e+00 : f32
    %111 = vector.broadcast %cst_68 : f32 to vector<8x128xf32>
    %112 = arith.divf %111, %110 : vector<8x128xf32>
    %113 = vector.extract_strided_slice %104 {offsets = [0, 128], sizes = [8, 128], strides = [1, 1]} : vector<8x512xf32> to vector<8x128xf32>
    %cst_69 = arith.constant 0.000000e+00 : f32
    %114 = vector.broadcast %cst_69 : f32 to vector<8x128xf32>
    %115 = arith.subf %114, %113 : vector<8x128xf32>
    %116 = math.exp %115 : vector<8x128xf32>
    %cst_70 = arith.constant 1.000000e+00 : f32
    %117 = vector.broadcast %cst_70 : f32 to vector<8x128xf32>
    %118 = arith.addf %117, %116 : vector<8x128xf32>
    %cst_71 = arith.constant 1.000000e+00 : f32
    %119 = vector.broadcast %cst_71 : f32 to vector<8x128xf32>
    %120 = arith.divf %119, %118 : vector<8x128xf32>
    %121 = vector.extract_strided_slice %104 {offsets = [0, 256], sizes = [8, 128], strides = [1, 1]} : vector<8x512xf32> to vector<8x128xf32>
    %122 = math.tanh %121 : vector<8x128xf32>
    %123 = vector.extract_strided_slice %104 {offsets = [0, 384], sizes = [8, 128], strides = [1, 1]} : vector<8x512xf32> to vector<8x128xf32>
    %cst_72 = arith.constant 0.000000e+00 : f32
    %124 = vector.broadcast %cst_72 : f32 to vector<8x128xf32>
    %125 = arith.subf %124, %123 : vector<8x128xf32>
    %126 = math.exp %125 : vector<8x128xf32>
    %cst_73 = arith.constant 1.000000e+00 : f32
    %127 = vector.broadcast %cst_73 : f32 to vector<8x128xf32>
    %128 = arith.addf %127, %126 : vector<8x128xf32>
    %cst_74 = arith.constant 1.000000e+00 : f32
    %129 = vector.broadcast %cst_74 : f32 to vector<8x128xf32>
    %130 = arith.divf %129, %128 : vector<8x128xf32>
    %131 = arith.mulf %120, %96 : vector<8x128xf32>
    %132 = arith.mulf %112, %122 : vector<8x128xf32>
    %133 = arith.addf %131, %132 : vector<8x128xf32>
    %134 = math.tanh %133 : vector<8x128xf32>
    %135 = arith.mulf %130, %134 : vector<8x128xf32>
    %c0_75 = arith.constant 0 : index
    %c0_76 = arith.constant 0 : index
    %136 = vector.load %arg18[%c0_75, %c0_76] : memref<8x128xf32, #tpu.memory_space<vmem>>, vector<8x128xf32>
    tpu.vector_store %arg18[%c0_75, %c0_76], %135 {strides = array<i32>} : memref<8x128xf32, #tpu.memory_space<vmem>>, vector<8x128xf32>,
    %c0_77 = arith.constant 0 : index
    %c0_78 = arith.constant 0 : index
    %137 = vector.load %arg19[%c0_77, %c0_78] : memref<8x128xf32, #tpu.memory_space<vmem>>, vector<8x128xf32>
    tpu.vector_store %arg19[%c0_77, %c0_78], %133 {strides = array<i32>} : memref<8x128xf32, #tpu.memory_space<vmem>>, vector<8x128xf32>,
    %c0_79 = arith.constant 0 : index
    %c0_80 = arith.constant 0 : index
    %138 = vector.load %arg20[%c0_79, %c0_80] : memref<8x128xf32, #tpu.memory_space<vmem>>, vector<8x128xf32>
    %c0_81 = arith.constant 0 : index
    %c0_82 = arith.constant 0 : index
    %139 = vector.load %arg21[%c0_81, %c0_82] : memref<8x128xf32, #tpu.memory_space<vmem>>, vector<8x128xf32>
    %c0_83 = arith.constant 0 : index
    %c0_84 = arith.constant 0 : index
    %140 = vector.load %arg8[%c0_83, %c0_84] : memref<128x512xf32, #tpu.memory_space<vmem>>, vector<128x512xf32>
    %cst_85 = arith.constant dense<0.000000e+00> : vector<8x512xf32>
    %141 = tpu.matmul %135, %140, %cst_85 {dimension_numbers = #tpu.dot_dimension_numbers<[1], [0], [0], [1], [0, 0, 1, 1], [], []>} : vector<8x128xf32>, vector<128x512xf32>, vector<8x512xf32> -> vector<8x512xf32>
    %c0_86 = arith.constant 0 : index
    %c0_87 = arith.constant 0 : index
    %142 = vector.load %arg9[%c0_86, %c0_87] : memref<128x512xf32, #tpu.memory_space<vmem>>, vector<128x512xf32>
    %cst_88 = arith.constant dense<0.000000e+00> : vector<8x512xf32>
    %143 = tpu.matmul %138, %142, %cst_88 {dimension_numbers = #tpu.dot_dimension_numbers<[1], [0], [0], [1], [0, 0, 1, 1], [], []>} : vector<8x128xf32>, vector<128x512xf32>, vector<8x512xf32> -> vector<8x512xf32>
    %144 = arith.addf %141, %143 : vector<8x512xf32>
    %c0_89 = arith.constant 0 : index
    %c0_90 = arith.constant 0 : index
    %145 = vector.load %arg10[%c0_89, %c0_90] : memref<1x512xf32, #tpu.memory_space<vmem>>, vector<1x512xf32>
    %146 = vector.broadcast %145 : vector<1x512xf32> to vector<8x512xf32>
    %147 = arith.addf %144, %146 : vector<8x512xf32>
    %148 = vector.extract_strided_slice %147 {offsets = [0, 0], sizes = [8, 128], strides = [1, 1]} : vector<8x512xf32> to vector<8x128xf32>
    %cst_91 = arith.constant 0.000000e+00 : f32
    %149 = vector.broadcast %cst_91 : f32 to vector<8x128xf32>
    %150 = arith.subf %149, %148 : vector<8x128xf32>
    %151 = math.exp %150 : vector<8x128xf32>
    %cst_92 = arith.constant 1.000000e+00 : f32
    %152 = vector.broadcast %cst_92 : f32 to vector<8x128xf32>
    %153 = arith.addf %152, %151 : vector<8x128xf32>
    %cst_93 = arith.constant 1.000000e+00 : f32
    %154 = vector.broadcast %cst_93 : f32 to vector<8x128xf32>
    %155 = arith.divf %154, %153 : vector<8x128xf32>
    %156 = vector.extract_strided_slice %147 {offsets = [0, 128], sizes = [8, 128], strides = [1, 1]} : vector<8x512xf32> to vector<8x128xf32>
    %cst_94 = arith.constant 0.000000e+00 : f32
    %157 = vector.broadcast %cst_94 : f32 to vector<8x128xf32>
    %158 = arith.subf %157, %156 : vector<8x128xf32>
    %159 = math.exp %158 : vector<8x128xf32>
    %cst_95 = arith.constant 1.000000e+00 : f32
    %160 = vector.broadcast %cst_95 : f32 to vector<8x128xf32>
    %161 = arith.addf %160, %159 : vector<8x128xf32>
    %cst_96 = arith.constant 1.000000e+00 : f32
    %162 = vector.broadcast %cst_96 : f32 to vector<8x128xf32>
    %163 = arith.divf %162, %161 : vector<8x128xf32>
    %164 = vector.extract_strided_slice %147 {offsets = [0, 256], sizes = [8, 128], strides = [1, 1]} : vector<8x512xf32> to vector<8x128xf32>
    %165 = math.tanh %164 : vector<8x128xf32>
    %166 = vector.extract_strided_slice %147 {offsets = [0, 384], sizes = [8, 128], strides = [1, 1]} : vector<8x512xf32> to vector<8x128xf32>
    %cst_97 = arith.constant 0.000000e+00 : f32
    %167 = vector.broadcast %cst_97 : f32 to vector<8x128xf32>
    %168 = arith.subf %167, %166 : vector<8x128xf32>
    %169 = math.exp %168 : vector<8x128xf32>
    %cst_98 = arith.constant 1.000000e+00 : f32
    %170 = vector.broadcast %cst_98 : f32 to vector<8x128xf32>
    %171 = arith.addf %170, %169 : vector<8x128xf32>
    %cst_99 = arith.constant 1.000000e+00 : f32
    %172 = vector.broadcast %cst_99 : f32 to vector<8x128xf32>
    %173 = arith.divf %172, %171 : vector<8x128xf32>
    %174 = arith.mulf %163, %139 : vector<8x128xf32>
    %175 = arith.mulf %155, %165 : vector<8x128xf32>
    %176 = arith.addf %174, %175 : vector<8x128xf32>
    %177 = math.tanh %176 : vector<8x128xf32>
    %178 = arith.mulf %173, %177 : vector<8x128xf32>
    %c0_100 = arith.constant 0 : index
    %c0_101 = arith.constant 0 : index
    %179 = vector.load %arg20[%c0_100, %c0_101] : memref<8x128xf32, #tpu.memory_space<vmem>>, vector<8x128xf32>
    tpu.vector_store %arg20[%c0_100, %c0_101], %178 {strides = array<i32>} : memref<8x128xf32, #tpu.memory_space<vmem>>, vector<8x128xf32>,
    %c0_102 = arith.constant 0 : index
    %c0_103 = arith.constant 0 : index
    %180 = vector.load %arg21[%c0_102, %c0_103] : memref<8x128xf32, #tpu.memory_space<vmem>>, vector<8x128xf32>
    tpu.vector_store %arg21[%c0_102, %c0_103], %176 {strides = array<i32>} : memref<8x128xf32, #tpu.memory_space<vmem>>, vector<8x128xf32>,
    %c2 = arith.constant 2 : index
    %c0_104 = arith.constant 0 : index
    %c0_105 = arith.constant 0 : index
    %181 = vector.load %arg2[%c2, %c0_104, %c0_105] : memref<4x8x128xbf16, #tpu.memory_space<vmem>>, vector<1x8x128xbf16>
    %182 = vector.shape_cast %181 : vector<1x8x128xbf16> to vector<8x128xbf16>
    %183 = arith.extf %182 : vector<8x128xbf16> to vector<8x128xf32>
    %c0_106 = arith.constant 0 : index
    %c0_107 = arith.constant 0 : index
    %184 = vector.load %arg18[%c0_106, %c0_107] : memref<8x128xf32, #tpu.memory_space<vmem>>, vector<8x128xf32>
    %c0_108 = arith.constant 0 : index
    %c0_109 = arith.constant 0 : index
    %185 = vector.load %arg19[%c0_108, %c0_109] : memref<8x128xf32, #tpu.memory_space<vmem>>, vector<8x128xf32>
    %c0_110 = arith.constant 0 : index
    %c0_111 = arith.constant 0 : index
    %186 = vector.load %arg5[%c0_110, %c0_111] : memref<128x512xf32, #tpu.memory_space<vmem>>, vector<128x512xf32>
    %cst_112 = arith.constant dense<0.000000e+00> : vector<8x512xf32>
    %187 = tpu.matmul %183, %186, %cst_112 {dimension_numbers = #tpu.dot_dimension_numbers<[1], [0], [0], [1], [0, 0, 1, 1], [], []>} : vector<8x128xf32>, vector<128x512xf32>, vector<8x512xf32> -> vector<8x512xf32>
    %c0_113 = arith.constant 0 : index
    %c0_114 = arith.constant 0 : index
    %188 = vector.load %arg6[%c0_113, %c0_114] : memref<128x512xf32, #tpu.memory_space<vmem>>, vector<128x512xf32>
    %cst_115 = arith.constant dense<0.000000e+00> : vector<8x512xf32>
    %189 = tpu.matmul %184, %188, %cst_115 {dimension_numbers = #tpu.dot_dimension_numbers<[1], [0], [0], [1], [0, 0, 1, 1], [], []>} : vector<8x128xf32>, vector<128x512xf32>, vector<8x512xf32> -> vector<8x512xf32>
    %190 = arith.addf %187, %189 : vector<8x512xf32>
    %c0_116 = arith.constant 0 : index
    %c0_117 = arith.constant 0 : index
    %191 = vector.load %arg7[%c0_116, %c0_117] : memref<1x512xf32, #tpu.memory_space<vmem>>, vector<1x512xf32>
    %192 = vector.broadcast %191 : vector<1x512xf32> to vector<8x512xf32>
    %193 = arith.addf %190, %192 : vector<8x512xf32>
    %194 = vector.extract_strided_slice %193 {offsets = [0, 0], sizes = [8, 128], strides = [1, 1]} : vector<8x512xf32> to vector<8x128xf32>
    %cst_118 = arith.constant 0.000000e+00 : f32
    %195 = vector.broadcast %cst_118 : f32 to vector<8x128xf32>
    %196 = arith.subf %195, %194 : vector<8x128xf32>
    %197 = math.exp %196 : vector<8x128xf32>
    %cst_119 = arith.constant 1.000000e+00 : f32
    %198 = vector.broadcast %cst_119 : f32 to vector<8x128xf32>
    %199 = arith.addf %198, %197 : vector<8x128xf32>
    %cst_120 = arith.constant 1.000000e+00 : f32
    %200 = vector.broadcast %cst_120 : f32 to vector<8x128xf32>
    %201 = arith.divf %200, %199 : vector<8x128xf32>
    %202 = vector.extract_strided_slice %193 {offsets = [0, 128], sizes = [8, 128], strides = [1, 1]} : vector<8x512xf32> to vector<8x128xf32>
    %cst_121 = arith.constant 0.000000e+00 : f32
    %203 = vector.broadcast %cst_121 : f32 to vector<8x128xf32>
    %204 = arith.subf %203, %202 : vector<8x128xf32>
    %205 = math.exp %204 : vector<8x128xf32>
    %cst_122 = arith.constant 1.000000e+00 : f32
    %206 = vector.broadcast %cst_122 : f32 to vector<8x128xf32>
    %207 = arith.addf %206, %205 : vector<8x128xf32>
    %cst_123 = arith.constant 1.000000e+00 : f32
    %208 = vector.broadcast %cst_123 : f32 to vector<8x128xf32>
    %209 = arith.divf %208, %207 : vector<8x128xf32>
    %210 = vector.extract_strided_slice %193 {offsets = [0, 256], sizes = [8, 128], strides = [1, 1]} : vector<8x512xf32> to vector<8x128xf32>
    %211 = math.tanh %210 : vector<8x128xf32>
    %212 = vector.extract_strided_slice %193 {offsets = [0, 384], sizes = [8, 128], strides = [1, 1]} : vector<8x512xf32> to vector<8x128xf32>
    %cst_124 = arith.constant 0.000000e+00 : f32
    %213 = vector.broadcast %cst_124 : f32 to vector<8x128xf32>
    %214 = arith.subf %213, %212 : vector<8x128xf32>
    %215 = math.exp %214 : vector<8x128xf32>
    %cst_125 = arith.constant 1.000000e+00 : f32
    %216 = vector.broadcast %cst_125 : f32 to vector<8x128xf32>
    %217 = arith.addf %216, %215 : vector<8x128xf32>
    %cst_126 = arith.constant 1.000000e+00 : f32
    %218 = vector.broadcast %cst_126 : f32 to vector<8x128xf32>
    %219 = arith.divf %218, %217 : vector<8x128xf32>
    %220 = arith.mulf %209, %185 : vector<8x128xf32>
    %221 = arith.mulf %201, %211 : vector<8x128xf32>
    %222 = arith.addf %220, %221 : vector<8x128xf32>
    %223 = math.tanh %222 : vector<8x128xf32>
    %224 = arith.mulf %219, %223 : vector<8x128xf32>
    %c0_127 = arith.constant 0 : index
    %c0_128 = arith.constant 0 : index
    %225 = vector.load %arg18[%c0_127, %c0_128] : memref<8x128xf32, #tpu.memory_space<vmem>>, vector<8x128xf32>
    tpu.vector_store %arg18[%c0_127, %c0_128], %224 {strides = array<i32>} : memref<8x128xf32, #tpu.memory_space<vmem>>, vector<8x128xf32>,
    %c0_129 = arith.constant 0 : index
    %c0_130 = arith.constant 0 : index
    %226 = vector.load %arg19[%c0_129, %c0_130] : memref<8x128xf32, #tpu.memory_space<vmem>>, vector<8x128xf32>
    tpu.vector_store %arg19[%c0_129, %c0_130], %222 {strides = array<i32>} : memref<8x128xf32, #tpu.memory_space<vmem>>, vector<8x128xf32>,
    %c0_131 = arith.constant 0 : index
    %c0_132 = arith.constant 0 : index
    %227 = vector.load %arg20[%c0_131, %c0_132] : memref<8x128xf32, #tpu.memory_space<vmem>>, vector<8x128xf32>
    %c0_133 = arith.constant 0 : index
    %c0_134 = arith.constant 0 : index
    %228 = vector.load %arg21[%c0_133, %c0_134] : memref<8x128xf32, #tpu.memory_space<vmem>>, vector<8x128xf32>
    %c0_135 = arith.constant 0 : index
    %c0_136 = arith.constant 0 : index
    %229 = vector.load %arg8[%c0_135, %c0_136] : memref<128x512xf32, #tpu.memory_space<vmem>>, vector<128x512xf32>
    %cst_137 = arith.constant dense<0.000000e+00> : vector<8x512xf32>
    %230 = tpu.matmul %224, %229, %cst_137 {dimension_numbers = #tpu.dot_dimension_numbers<[1], [0], [0], [1], [0, 0, 1, 1], [], []>} : vector<8x128xf32>, vector<128x512xf32>, vector<8x512xf32> -> vector<8x512xf32>
    %c0_138 = arith.constant 0 : index
    %c0_139 = arith.constant 0 : index
    %231 = vector.load %arg9[%c0_138, %c0_139] : memref<128x512xf32, #tpu.memory_space<vmem>>, vector<128x512xf32>
    %cst_140 = arith.constant dense<0.000000e+00> : vector<8x512xf32>
    %232 = tpu.matmul %227, %231, %cst_140 {dimension_numbers = #tpu.dot_dimension_numbers<[1], [0], [0], [1], [0, 0, 1, 1], [], []>} : vector<8x128xf32>, vector<128x512xf32>, vector<8x512xf32> -> vector<8x512xf32>
    %233 = arith.addf %230, %232 : vector<8x512xf32>
    %c0_141 = arith.constant 0 : index
    %c0_142 = arith.constant 0 : index
    %234 = vector.load %arg10[%c0_141, %c0_142] : memref<1x512xf32, #tpu.memory_space<vmem>>, vector<1x512xf32>
    %235 = vector.broadcast %234 : vector<1x512xf32> to vector<8x512xf32>
    %236 = arith.addf %233, %235 : vector<8x512xf32>
    %237 = vector.extract_strided_slice %236 {offsets = [0, 0], sizes = [8, 128], strides = [1, 1]} : vector<8x512xf32> to vector<8x128xf32>
    %cst_143 = arith.constant 0.000000e+00 : f32
    %238 = vector.broadcast %cst_143 : f32 to vector<8x128xf32>
    %239 = arith.subf %238, %237 : vector<8x128xf32>
    %240 = math.exp %239 : vector<8x128xf32>
    %cst_144 = arith.constant 1.000000e+00 : f32
    %241 = vector.broadcast %cst_144 : f32 to vector<8x128xf32>
    %242 = arith.addf %241, %240 : vector<8x128xf32>
    %cst_145 = arith.constant 1.000000e+00 : f32
    %243 = vector.broadcast %cst_145 : f32 to vector<8x128xf32>
    %244 = arith.divf %243, %242 : vector<8x128xf32>
    %245 = vector.extract_strided_slice %236 {offsets = [0, 128], sizes = [8, 128], strides = [1, 1]} : vector<8x512xf32> to vector<8x128xf32>
    %cst_146 = arith.constant 0.000000e+00 : f32
    %246 = vector.broadcast %cst_146 : f32 to vector<8x128xf32>
    %247 = arith.subf %246, %245 : vector<8x128xf32>
    %248 = math.exp %247 : vector<8x128xf32>
    %cst_147 = arith.constant 1.000000e+00 : f32
    %249 = vector.broadcast %cst_147 : f32 to vector<8x128xf32>
    %250 = arith.addf %249, %248 : vector<8x128xf32>
    %cst_148 = arith.constant 1.000000e+00 : f32
    %251 = vector.broadcast %cst_148 : f32 to vector<8x128xf32>
    %252 = arith.divf %251, %250 : vector<8x128xf32>
    %253 = vector.extract_strided_slice %236 {offsets = [0, 256], sizes = [8, 128], strides = [1, 1]} : vector<8x512xf32> to vector<8x128xf32>
    %254 = math.tanh %253 : vector<8x128xf32>
    %255 = vector.extract_strided_slice %236 {offsets = [0, 384], sizes = [8, 128], strides = [1, 1]} : vector<8x512xf32> to vector<8x128xf32>
    %cst_149 = arith.constant 0.000000e+00 : f32
    %256 = vector.broadcast %cst_149 : f32 to vector<8x128xf32>
    %257 = arith.subf %256, %255 : vector<8x128xf32>
    %258 = math.exp %257 : vector<8x128xf32>
    %cst_150 = arith.constant 1.000000e+00 : f32
    %259 = vector.broadcast %cst_150 : f32 to vector<8x128xf32>
    %260 = arith.addf %259, %258 : vector<8x128xf32>
    %cst_151 = arith.constant 1.000000e+00 : f32
    %261 = vector.broadcast %cst_151 : f32 to vector<8x128xf32>
    %262 = arith.divf %261, %260 : vector<8x128xf32>
    %263 = arith.mulf %252, %228 : vector<8x128xf32>
    %264 = arith.mulf %244, %254 : vector<8x128xf32>
    %265 = arith.addf %263, %264 : vector<8x128xf32>
    %266 = math.tanh %265 : vector<8x128xf32>
    %267 = arith.mulf %262, %266 : vector<8x128xf32>
    %c0_152 = arith.constant 0 : index
    %c0_153 = arith.constant 0 : index
    %268 = vector.load %arg20[%c0_152, %c0_153] : memref<8x128xf32, #tpu.memory_space<vmem>>, vector<8x128xf32>
    tpu.vector_store %arg20[%c0_152, %c0_153], %267 {strides = array<i32>} : memref<8x128xf32, #tpu.memory_space<vmem>>, vector<8x128xf32>,
    %c0_154 = arith.constant 0 : index
    %c0_155 = arith.constant 0 : index
    %269 = vector.load %arg21[%c0_154, %c0_155] : memref<8x128xf32, #tpu.memory_space<vmem>>, vector<8x128xf32>
    tpu.vector_store %arg21[%c0_154, %c0_155], %265 {strides = array<i32>} : memref<8x128xf32, #tpu.memory_space<vmem>>, vector<8x128xf32>,
    %c3 = arith.constant 3 : index
    %c0_156 = arith.constant 0 : index
    %c0_157 = arith.constant 0 : index
    %270 = vector.load %arg2[%c3, %c0_156, %c0_157] : memref<4x8x128xbf16, #tpu.memory_space<vmem>>, vector<1x8x128xbf16>
    %271 = vector.shape_cast %270 : vector<1x8x128xbf16> to vector<8x128xbf16>
    %272 = arith.extf %271 : vector<8x128xbf16> to vector<8x128xf32>
    %c0_158 = arith.constant 0 : index
    %c0_159 = arith.constant 0 : index
    %273 = vector.load %arg18[%c0_158, %c0_159] : memref<8x128xf32, #tpu.memory_space<vmem>>, vector<8x128xf32>
    %c0_160 = arith.constant 0 : index
    %c0_161 = arith.constant 0 : index
    %274 = vector.load %arg19[%c0_160, %c0_161] : memref<8x128xf32, #tpu.memory_space<vmem>>, vector<8x128xf32>
    %c0_162 = arith.constant 0 : index
    %c0_163 = arith.constant 0 : index
    %275 = vector.load %arg5[%c0_162, %c0_163] : memref<128x512xf32, #tpu.memory_space<vmem>>, vector<128x512xf32>
    %cst_164 = arith.constant dense<0.000000e+00> : vector<8x512xf32>
    %276 = tpu.matmul %272, %275, %cst_164 {dimension_numbers = #tpu.dot_dimension_numbers<[1], [0], [0], [1], [0, 0, 1, 1], [], []>} : vector<8x128xf32>, vector<128x512xf32>, vector<8x512xf32> -> vector<8x512xf32>
    %c0_165 = arith.constant 0 : index
    %c0_166 = arith.constant 0 : index
    %277 = vector.load %arg6[%c0_165, %c0_166] : memref<128x512xf32, #tpu.memory_space<vmem>>, vector<128x512xf32>
    %cst_167 = arith.constant dense<0.000000e+00> : vector<8x512xf32>
    %278 = tpu.matmul %273, %277, %cst_167 {dimension_numbers = #tpu.dot_dimension_numbers<[1], [0], [0], [1], [0, 0, 1, 1], [], []>} : vector<8x128xf32>, vector<128x512xf32>, vector<8x512xf32> -> vector<8x512xf32>
    %279 = arith.addf %276, %278 : vector<8x512xf32>
    %c0_168 = arith.constant 0 : index
    %c0_169 = arith.constant 0 : index
    %280 = vector.load %arg7[%c0_168, %c0_169] : memref<1x512xf32, #tpu.memory_space<vmem>>, vector<1x512xf32>
    %281 = vector.broadcast %280 : vector<1x512xf32> to vector<8x512xf32>
    %282 = arith.addf %279, %281 : vector<8x512xf32>
    %283 = vector.extract_strided_slice %282 {offsets = [0, 0], sizes = [8, 128], strides = [1, 1]} : vector<8x512xf32> to vector<8x128xf32>
    %cst_170 = arith.constant 0.000000e+00 : f32
    %284 = vector.broadcast %cst_170 : f32 to vector<8x128xf32>
    %285 = arith.subf %284, %283 : vector<8x128xf32>
    %286 = math.exp %285 : vector<8x128xf32>
    %cst_171 = arith.constant 1.000000e+00 : f32
    %287 = vector.broadcast %cst_171 : f32 to vector<8x128xf32>
    %288 = arith.addf %287, %286 : vector<8x128xf32>
    %cst_172 = arith.constant 1.000000e+00 : f32
    %289 = vector.broadcast %cst_172 : f32 to vector<8x128xf32>
    %290 = arith.divf %289, %288 : vector<8x128xf32>
    %291 = vector.extract_strided_slice %282 {offsets = [0, 128], sizes = [8, 128], strides = [1, 1]} : vector<8x512xf32> to vector<8x128xf32>
    %cst_173 = arith.constant 0.000000e+00 : f32
    %292 = vector.broadcast %cst_173 : f32 to vector<8x128xf32>
    %293 = arith.subf %292, %291 : vector<8x128xf32>
    %294 = math.exp %293 : vector<8x128xf32>
    %cst_174 = arith.constant 1.000000e+00 : f32
    %295 = vector.broadcast %cst_174 : f32 to vector<8x128xf32>
    %296 = arith.addf %295, %294 : vector<8x128xf32>
    %cst_175 = arith.constant 1.000000e+00 : f32
    %297 = vector.broadcast %cst_175 : f32 to vector<8x128xf32>
    %298 = arith.divf %297, %296 : vector<8x128xf32>
    %299 = vector.extract_strided_slice %282 {offsets = [0, 256], sizes = [8, 128], strides = [1, 1]} : vector<8x512xf32> to vector<8x128xf32>
    %300 = math.tanh %299 : vector<8x128xf32>
    %301 = vector.extract_strided_slice %282 {offsets = [0, 384], sizes = [8, 128], strides = [1, 1]} : vector<8x512xf32> to vector<8x128xf32>
    %cst_176 = arith.constant 0.000000e+00 : f32
    %302 = vector.broadcast %cst_176 : f32 to vector<8x128xf32>
    %303 = arith.subf %302, %301 : vector<8x128xf32>
    %304 = math.exp %303 : vector<8x128xf32>
    %cst_177 = arith.constant 1.000000e+00 : f32
    %305 = vector.broadcast %cst_177 : f32 to vector<8x128xf32>
    %306 = arith.addf %305, %304 : vector<8x128xf32>
    %cst_178 = arith.constant 1.000000e+00 : f32
    %307 = vector.broadcast %cst_178 : f32 to vector<8x128xf32>
    %308 = arith.divf %307, %306 : vector<8x128xf32>
    %309 = arith.mulf %298, %274 : vector<8x128xf32>
    %310 = arith.mulf %290, %300 : vector<8x128xf32>
    %311 = arith.addf %309, %310 : vector<8x128xf32>
    %312 = math.tanh %311 : vector<8x128xf32>
    %313 = arith.mulf %308, %312 : vector<8x128xf32>
    %c0_179 = arith.constant 0 : index
    %c0_180 = arith.constant 0 : index
    %314 = vector.load %arg18[%c0_179, %c0_180] : memref<8x128xf32, #tpu.memory_space<vmem>>, vector<8x128xf32>
    tpu.vector_store %arg18[%c0_179, %c0_180], %313 {strides = array<i32>} : memref<8x128xf32, #tpu.memory_space<vmem>>, vector<8x128xf32>,
    %c0_181 = arith.constant 0 : index
    %c0_182 = arith.constant 0 : index
    %315 = vector.load %arg19[%c0_181, %c0_182] : memref<8x128xf32, #tpu.memory_space<vmem>>, vector<8x128xf32>
    tpu.vector_store %arg19[%c0_181, %c0_182], %311 {strides = array<i32>} : memref<8x128xf32, #tpu.memory_space<vmem>>, vector<8x128xf32>,
    %c0_183 = arith.constant 0 : index
    %c0_184 = arith.constant 0 : index
    %316 = vector.load %arg20[%c0_183, %c0_184] : memref<8x128xf32, #tpu.memory_space<vmem>>, vector<8x128xf32>
    %c0_185 = arith.constant 0 : index
    %c0_186 = arith.constant 0 : index
    %317 = vector.load %arg21[%c0_185, %c0_186] : memref<8x128xf32, #tpu.memory_space<vmem>>, vector<8x128xf32>
    %c0_187 = arith.constant 0 : index
    %c0_188 = arith.constant 0 : index
    %318 = vector.load %arg8[%c0_187, %c0_188] : memref<128x512xf32, #tpu.memory_space<vmem>>, vector<128x512xf32>
    %cst_189 = arith.constant dense<0.000000e+00> : vector<8x512xf32>
    %319 = tpu.matmul %313, %318, %cst_189 {dimension_numbers = #tpu.dot_dimension_numbers<[1], [0], [0], [1], [0, 0, 1, 1], [], []>} : vector<8x128xf32>, vector<128x512xf32>, vector<8x512xf32> -> vector<8x512xf32>
    %c0_190 = arith.constant 0 : index
    %c0_191 = arith.constant 0 : index
    %320 = vector.load %arg9[%c0_190, %c0_191] : memref<128x512xf32, #tpu.memory_space<vmem>>, vector<128x512xf32>
    %cst_192 = arith.constant dense<0.000000e+00> : vector<8x512xf32>
    %321 = tpu.matmul %316, %320, %cst_192 {dimension_numbers = #tpu.dot_dimension_numbers<[1], [0], [0], [1], [0, 0, 1, 1], [], []>} : vector<8x128xf32>, vector<128x512xf32>, vector<8x512xf32> -> vector<8x512xf32>
    %322 = arith.addf %319, %321 : vector<8x512xf32>
    %c0_193 = arith.constant 0 : index
    %c0_194 = arith.constant 0 : index
    %323 = vector.load %arg10[%c0_193, %c0_194] : memref<1x512xf32, #tpu.memory_space<vmem>>, vector<1x512xf32>
    %324 = vector.broadcast %323 : vector<1x512xf32> to vector<8x512xf32>
    %325 = arith.addf %322, %324 : vector<8x512xf32>
    %326 = vector.extract_strided_slice %325 {offsets = [0, 0], sizes = [8, 128], strides = [1, 1]} : vector<8x512xf32> to vector<8x128xf32>
    %cst_195 = arith.constant 0.000000e+00 : f32
    %327 = vector.broadcast %cst_195 : f32 to vector<8x128xf32>
    %328 = arith.subf %327, %326 : vector<8x128xf32>
    %329 = math.exp %328 : vector<8x128xf32>
    %cst_196 = arith.constant 1.000000e+00 : f32
    %330 = vector.broadcast %cst_196 : f32 to vector<8x128xf32>
    %331 = arith.addf %330, %329 : vector<8x128xf32>
    %cst_197 = arith.constant 1.000000e+00 : f32
    %332 = vector.broadcast %cst_197 : f32 to vector<8x128xf32>
    %333 = arith.divf %332, %331 : vector<8x128xf32>
    %334 = vector.extract_strided_slice %325 {offsets = [0, 128], sizes = [8, 128], strides = [1, 1]} : vector<8x512xf32> to vector<8x128xf32>
    %cst_198 = arith.constant 0.000000e+00 : f32
    %335 = vector.broadcast %cst_198 : f32 to vector<8x128xf32>
    %336 = arith.subf %335, %334 : vector<8x128xf32>
    %337 = math.exp %336 : vector<8x128xf32>
    %cst_199 = arith.constant 1.000000e+00 : f32
    %338 = vector.broadcast %cst_199 : f32 to vector<8x128xf32>
    %339 = arith.addf %338, %337 : vector<8x128xf32>
    %cst_200 = arith.constant 1.000000e+00 : f32
    %340 = vector.broadcast %cst_200 : f32 to vector<8x128xf32>
    %341 = arith.divf %340, %339 : vector<8x128xf32>
    %342 = vector.extract_strided_slice %325 {offsets = [0, 256], sizes = [8, 128], strides = [1, 1]} : vector<8x512xf32> to vector<8x128xf32>
    %343 = math.tanh %342 : vector<8x128xf32>
    %344 = vector.extract_strided_slice %325 {offsets = [0, 384], sizes = [8, 128], strides = [1, 1]} : vector<8x512xf32> to vector<8x128xf32>
    %cst_201 = arith.constant 0.000000e+00 : f32
    %345 = vector.broadcast %cst_201 : f32 to vector<8x128xf32>
    %346 = arith.subf %345, %344 : vector<8x128xf32>
    %347 = math.exp %346 : vector<8x128xf32>
    %cst_202 = arith.constant 1.000000e+00 : f32
    %348 = vector.broadcast %cst_202 : f32 to vector<8x128xf32>
    %349 = arith.addf %348, %347 : vector<8x128xf32>
    %cst_203 = arith.constant 1.000000e+00 : f32
    %350 = vector.broadcast %cst_203 : f32 to vector<8x128xf32>
    %351 = arith.divf %350, %349 : vector<8x128xf32>
    %352 = arith.mulf %341, %317 : vector<8x128xf32>
    %353 = arith.mulf %333, %343 : vector<8x128xf32>
    %354 = arith.addf %352, %353 : vector<8x128xf32>
    %355 = math.tanh %354 : vector<8x128xf32>
    %356 = arith.mulf %351, %355 : vector<8x128xf32>
    %c0_204 = arith.constant 0 : index
    %c0_205 = arith.constant 0 : index
    %357 = vector.load %arg20[%c0_204, %c0_205] : memref<8x128xf32, #tpu.memory_space<vmem>>, vector<8x128xf32>
    tpu.vector_store %arg20[%c0_204, %c0_205], %356 {strides = array<i32>} : memref<8x128xf32, #tpu.memory_space<vmem>>, vector<8x128xf32>,
    %c0_206 = arith.constant 0 : index
    %c0_207 = arith.constant 0 : index
    %358 = vector.load %arg21[%c0_206, %c0_207] : memref<8x128xf32, #tpu.memory_space<vmem>>, vector<8x128xf32>
    tpu.vector_store %arg21[%c0_206, %c0_207], %354 {strides = array<i32>} : memref<8x128xf32, #tpu.memory_space<vmem>>, vector<8x128xf32>,
    %c1_i32 = arith.constant 1 : i32
    %359 = arith.cmpi eq, %arg1, %c1_i32 : i32
    %360 = arith.extui %359 : i1 to i32
    %c0_i32_208 = arith.constant 0 : i32
    %361 = arith.cmpi ne, %360, %c0_i32_208 : i32
    scf.if %361 {
      %c0_209 = arith.constant 0 : index
      %c0_210 = arith.constant 0 : index
      %362 = vector.load %arg20[%c0_209, %c0_210] : memref<8x128xf32, #tpu.memory_space<vmem>>, vector<8x128xf32>
      %c0_211 = arith.constant 0 : index
      %c0_212 = arith.constant 0 : index
      %363 = vector.load %arg3[%c0_211, %c0_212] : memref<8x1xf32, #tpu.memory_space<vmem>>, vector<8x1xf32>
      %c0_213 = arith.constant 0 : index
      %c0_214 = arith.constant 0 : index
      %364 = vector.load %arg11[%c0_213, %c0_214] : memref<1x128xf32, #tpu.memory_space<vmem>>, vector<1x128xf32>
      %365 = vector.broadcast %363 : vector<8x1xf32> to vector<8x128xf32>
      %366 = vector.broadcast %364 : vector<1x128xf32> to vector<8x128xf32>
      %367 = arith.mulf %365, %366 : vector<8x128xf32>
      %c0_215 = arith.constant 0 : index
      %c0_216 = arith.constant 0 : index
      %368 = vector.load %arg4[%c0_215, %c0_216] : memref<8x1xf32, #tpu.memory_space<vmem>>, vector<8x1xf32>
      %c0_217 = arith.constant 0 : index
      %c0_218 = arith.constant 0 : index
      %369 = vector.load %arg12[%c0_217, %c0_218] : memref<1x128xf32, #tpu.memory_space<vmem>>, vector<1x128xf32>
      %370 = vector.broadcast %368 : vector<8x1xf32> to vector<8x128xf32>
      %371 = vector.broadcast %369 : vector<1x128xf32> to vector<8x128xf32>
      %372 = arith.mulf %370, %371 : vector<8x128xf32>
      %373 = arith.addf %367, %372 : vector<8x128xf32>
      %c0_219 = arith.constant 0 : index
      %c0_220 = arith.constant 0 : index
      %374 = vector.load %arg13[%c0_219, %c0_220] : memref<128x128xf32, #tpu.memory_space<vmem>>, vector<128x128xf32>
      %cst_221 = arith.constant dense<0.000000e+00> : vector<8x128xf32>
      %375 = tpu.matmul %362, %374, %cst_221 {dimension_numbers = #tpu.dot_dimension_numbers<[1], [0], [0], [1], [0, 0, 1, 1], [], []>} : vector<8x128xf32>, vector<128x128xf32>, vector<8x128xf32> -> vector<8x128xf32>
      %376 = arith.addf %373, %375 : vector<8x128xf32>
      %c0_222 = arith.constant 0 : index
      %c0_223 = arith.constant 0 : index
      %377 = vector.load %arg14[%c0_222, %c0_223] : memref<1x128xf32, #tpu.memory_space<vmem>>, vector<1x128xf32>
      %378 = vector.broadcast %377 : vector<1x128xf32> to vector<8x128xf32>
      %379 = arith.addf %376, %378 : vector<8x128xf32>
      %380 = arith.mulf %379, %379 : vector<8x128xf32>
      %381 = arith.mulf %379, %380 : vector<8x128xf32>
      %cst_224 = arith.constant 4.471500e-02 : f32
      %382 = vector.broadcast %cst_224 : f32 to vector<8x128xf32>
      %383 = arith.mulf %382, %381 : vector<8x128xf32>
      %384 = arith.addf %379, %383 : vector<8x128xf32>
      %cst_225 = arith.constant 0.797884583 : f32
      %385 = vector.broadcast %cst_225 : f32 to vector<8x128xf32>
      %386 = arith.mulf %385, %384 : vector<8x128xf32>
      %387 = math.tanh %386 : vector<8x128xf32>
      %cst_226 = arith.constant 1.000000e+00 : f32
      %388 = vector.broadcast %cst_226 : f32 to vector<8x128xf32>
      %389 = arith.addf %388, %387 : vector<8x128xf32>
      %cst_227 = arith.constant 5.000000e-01 : f32
      %390 = vector.broadcast %cst_227 : f32 to vector<8x128xf32>
      %391 = arith.mulf %390, %389 : vector<8x128xf32>
      %392 = arith.mulf %379, %391 : vector<8x128xf32>
      %c0_228 = arith.constant 0 : index
      %c0_229 = arith.constant 0 : index
      %393 = vector.load %arg15[%c0_228, %c0_229] : memref<1x128xf32, #tpu.memory_space<vmem>>, vector<1x128xf32>
      %394 = vector.broadcast %393 : vector<1x128xf32> to vector<8x128xf32>
      %395 = arith.mulf %392, %394 : vector<8x128xf32>
      %cst_230 = arith.constant dense<0.000000e+00> : vector<8xf32>
      %396 = vector.multi_reduction <add>, %395, %cst_230 [1] : vector<8x128xf32> to vector<8xf32>
      %397 = vector.shape_cast %396 : vector<8xf32> to vector<8x1xf32>
      %c0_231 = arith.constant 0 : index
      %c0_232 = arith.constant 0 : index
      %398 = memref.load %arg16[%c0_231, %c0_232] : memref<1x1xf32, #tpu.memory_space<smem>>
      %399 = vector.broadcast %398 : f32 to vector<8x1xf32>
      %400 = arith.addf %397, %399 : vector<8x1xf32>
      %c0_233 = arith.constant 0 : index
      %c0_234 = arith.constant 0 : index
      %401 = vector.load %arg17[%c0_233, %c0_234] : memref<8x1xf32, #tpu.memory_space<vmem>>, vector<8x1xf32>
      tpu.vector_store %arg17[%c0_233, %c0_234], %400 {strides = array<i32>} : memref<8x1xf32, #tpu.memory_space<vmem>>, vector<8x1xf32>,
    } else {
    }
    return
  }
  func.func @transform_0(%arg0: i32, %arg1: i32) -> (i32, i32, i32) {
    %c0_i32 = arith.constant 0 : i32
    %c0_i32_0 = arith.constant 0 : i32
    return %arg1, %arg0, %c0_i32 : i32, i32, i32
  }
  func.func @transform_1(%arg0: i32, %arg1: i32) -> (i32, i32) {
    %c0_i32 = arith.constant 0 : i32
    %c0_i32_0 = arith.constant 0 : i32
    return %arg0, %c0_i32 : i32, i32
  }
  func.func @transform_2(%arg0: i32, %arg1: i32) -> (i32, i32) {
    %c0_i32 = arith.constant 0 : i32
    %c0_i32_0 = arith.constant 0 : i32
    return %arg0, %c0_i32 : i32, i32
  }
  func.func @transform_3(%arg0: i32, %arg1: i32) -> (i32, i32) {
    %c0_i32 = arith.constant 0 : i32
    %c0_i32_0 = arith.constant 0 : i32
    %c0_i32_1 = arith.constant 0 : i32
    return %c0_i32, %c0_i32_0 : i32, i32
  }
  func.func @transform_4(%arg0: i32, %arg1: i32) -> (i32, i32) {
    %c0_i32 = arith.constant 0 : i32
    %c0_i32_0 = arith.constant 0 : i32
    %c0_i32_1 = arith.constant 0 : i32
    return %c0_i32, %c0_i32_0 : i32, i32
  }
  func.func @transform_5(%arg0: i32, %arg1: i32) -> (i32, i32) {
    %c0_i32 = arith.constant 0 : i32
    %c0_i32_0 = arith.constant 0 : i32
    %c0_i32_1 = arith.constant 0 : i32
    return %c0_i32, %c0_i32_0 : i32, i32
  }
  func.func @transform_6(%arg0: i32, %arg1: i32) -> (i32, i32) {
    %c0_i32 = arith.constant 0 : i32
    %c0_i32_0 = arith.constant 0 : i32
    %c0_i32_1 = arith.constant 0 : i32
    return %c0_i32, %c0_i32_0 : i32, i32
  }
  func.func @transform_7(%arg0: i32, %arg1: i32) -> (i32, i32) {
    %c0_i32 = arith.constant 0 : i32
    %c0_i32_0 = arith.constant 0 : i32
    %c0_i32_1 = arith.constant 0 : i32
    return %c0_i32, %c0_i32_0 : i32, i32
  }
  func.func @transform_8(%arg0: i32, %arg1: i32) -> (i32, i32) {
    %c0_i32 = arith.constant 0 : i32
    %c0_i32_0 = arith.constant 0 : i32
    %c0_i32_1 = arith.constant 0 : i32
    return %c0_i32, %c0_i32_0 : i32, i32
  }
  func.func @transform_9(%arg0: i32, %arg1: i32) -> (i32, i32) {
    %c0_i32 = arith.constant 0 : i32
    %c0_i32_0 = arith.constant 0 : i32
    %c0_i32_1 = arith.constant 0 : i32
    return %c0_i32, %c0_i32_0 : i32, i32
  }
  func.func @transform_10(%arg0: i32, %arg1: i32) -> (i32, i32) {
    %c0_i32 = arith.constant 0 : i32
    %c0_i32_0 = arith.constant 0 : i32
    %c0_i32_1 = arith.constant 0 : i32
    return %c0_i32, %c0_i32_0 : i32, i32
  }
  func.func @transform_11(%arg0: i32, %arg1: i32) -> (i32, i32) {
    %c0_i32 = arith.constant 0 : i32
    %c0_i32_0 = arith.constant 0 : i32
    %c0_i32_1 = arith.constant 0 : i32
    return %c0_i32, %c0_i32_0 : i32, i32
  }
  func.func @transform_12(%arg0: i32, %arg1: i32) -> (i32, i32) {
    %c0_i32 = arith.constant 0 : i32
    %c0_i32_0 = arith.constant 0 : i32
    %c0_i32_1 = arith.constant 0 : i32
    return %c0_i32, %c0_i32_0 : i32, i32
  }
  func.func @transform_13(%arg0: i32, %arg1: i32) -> (i32, i32) {
    %c0_i32 = arith.constant 0 : i32
    %c0_i32_0 = arith.constant 0 : i32
    %c0_i32_1 = arith.constant 0 : i32
    return %c0_i32, %c0_i32_0 : i32, i32
  }
  func.func @transform_14(%arg0: i32, %arg1: i32) -> (i32, i32) {
    %c0_i32 = arith.constant 0 : i32
    %c0_i32_0 = arith.constant 0 : i32
    %c0_i32_1 = arith.constant 0 : i32
    return %c0_i32, %c0_i32_0 : i32, i32
  }
  func.func @transform_15(%arg0: i32, %arg1: i32) -> (i32, i32) {
    %c0_i32 = arith.constant 0 : i32
    %c0_i32_0 = arith.constant 0 : i32
    return %arg0, %c0_i32 : i32, i32
  }
}

</mosaic_0001>

<llo_original>
// kernel: tpu_custom_call.1
$region0: #{tpu_custom_call.1}
  #allocation0 [shape = 'u32[]', space=smem, size = 0x4, offset = 0x4, fixed_abs, tag = 'smem constant byte address 0x4 - core index']
  #allocation1 [shape = 'u32[144,128]{1,0:T(1,128)}', space=vmem, size = 0x12000, scoped, tag = 'internal scratch']
  #allocation2 [shape = 'f32[8,128]{1,0:T(8,128)}', space=vmem, size = 0x1000, scoped, tag = 'scratch operand']
  #allocation3 [shape = 'f32[8,128]{1,0:T(8,128)}', space=vmem, size = 0x1000, scoped, tag = 'scratch operand']
  #allocation4 [shape = 'f32[8,128]{1,0:T(8,128)}', space=vmem, size = 0x1000, scoped, tag = 'scratch operand']
  #allocation5 [shape = 'f32[8,128]{1,0:T(8,128)}', space=vmem, size = 0x1000, scoped, tag = 'scratch operand']
  #allocation6 [shape = 'f32[1,1]{1,0:T(1,128)S(6)}', space=smem, size = 0x200, scoped, tag = 'scoped memory for tpu_custom_call.1']
  %s0 = inlined_call_operand.hbm [shape: bf16[8,8,128], index: 0, kind: input, shape index: {}]
  %s1 = inlined_call_operand.vmem [shape: f32[8,1], index: 1, kind: input, shape index: {}]
  %s2 = inlined_call_operand.vmem [shape: f32[8,1], index: 2, kind: input, shape index: {}]
  %s3 = inlined_call_operand.hbm [shape: f32[128,512], index: 3, kind: input, shape index: {}]
  %s4 = inlined_call_operand.hbm [shape: f32[128,512], index: 4, kind: input, shape index: {}]
  %s5 = inlined_call_operand.vmem [shape: f32[1,512], index: 5, kind: input, shape index: {}]
  %s6 = inlined_call_operand.hbm [shape: f32[128,512], index: 6, kind: input, shape index: {}]
  %s7 = inlined_call_operand.hbm [shape: f32[128,512], index: 7, kind: input, shape index: {}]
  %s8 = inlined_call_operand.vmem [shape: f32[1,512], index: 8, kind: input, shape index: {}]
  %s9 = inlined_call_operand.vmem [shape: f32[1,128], index: 9, kind: input, shape index: {}]
  %s10 = inlined_call_operand.vmem [shape: f32[1,128], index: 10, kind: input, shape index: {}]
  %s11 = inlined_call_operand.hbm [shape: f32[128,128], index: 11, kind: input, shape index: {}]
  %s12 = inlined_call_operand.vmem [shape: f32[1,128], index: 12, kind: input, shape index: {}]
  %s13 = inlined_call_operand.vmem [shape: f32[1,128], index: 13, kind: input, shape index: {}]
  %s14 = inlined_call_operand.<no memory space> [shape: f32[1,1], index: 14, kind: input, shape index: {}]
  %s15 = inlined_call_operand.vmem [shape: f32[8,1], index: 15, kind: output, shape index: {}]
  %s16 = sld [smem:[#allocation0]]
  $region125: #{tpu_custom_call.1} parent=0
    _
  %s18 = ssub.s32 1, %s16
  %s19 = scalar_select 0, %s18, %s16
  %20 = sst [smem:[#allocation6]] %s14
  $region1: #{tpu_custom_call.1} parent=0
    #allocation7 [shape = 'u8[16384]{0}', space=vmem, size = 0x4000, scoped, tag = 'input window, operand 0']
    #allocation8 [shape = 's32[2]{0}', space=sflag, size = 0x8, scoped, tag = 'scoped memory for tpu_custom_call.1']
    #allocation9 [shape = 'u8[262144]{0}', space=vmem, size = 0x40000, scoped, tag = 'input window, operand 3, single buffered']
    #allocation10 [shape = 's32[1]{0}', space=sflag, size = 0x4, scoped, tag = 'scoped memory for tpu_custom_call.1']
    #allocation11 [shape = 'u8[262144]{0}', space=vmem, size = 0x40000, scoped, tag = 'input window, operand 4, single buffered']
    #allocation12 [shape = 'u8[262144]{0}', space=vmem, size = 0x40000, scoped, tag = 'input window, operand 6, single buffered']
    #allocation13 [shape = 's32[1]{0}', space=sflag, size = 0x4, scoped, tag = 'scoped memory for tpu_custom_call.1']
    #allocation14 [shape = 'u8[262144]{0}', space=vmem, size = 0x40000, scoped, tag = 'input window, operand 7, single buffered']
    #allocation15 [shape = 'u8[65536]{0}', space=vmem, size = 0x10000, scoped, tag = 'input window, operand 11, single buffered']
    #allocation16 [shape = 's32[1]{0}', space=sflag, size = 0x4, scoped, tag = 'scoped memory for tpu_custom_call.1']
    %21 = vsyncpa [#allocation8], 0
    %s22 = scalar_lea.sflag [#allocation8], 1
    %23 = vsyncpa %s22, 0
    %24 = vsyncpa [#allocation10], 0
    %25 = vsyncpa [#allocation13], 0
    %26 = vsyncpa [#allocation16], 0
    loop: start=0, step=1, limit=4
    $region2: #{tpu_custom_call.1} parent=1 // loop_pre_header
      _
    $region3: #{tpu_custom_call.1} parent=1 // loop_header
      %s28 = sphi 0, %s32
      %p29 = scmp.ge.s32.totalorder %s28, 4
      %s35 = sphi 0, %s47
      %s36 = sphi 0, %s43
      %s37 = sphi 0, %s35
      %s38 = sphi 0, %s36
      %s39 = sphi 0, %s37
      %s40 = sphi 0, %s38
      %s52 = sphi 0, %s54
      %s55 = sphi 0, %s52
      %s56 = sphi 0, %s55
      %s72 = sphi 0, %s56
      %s78 = sphi 0, %s80
      %s81 = sphi 0, %s78
      %s82 = sphi 0, %s81
      %s98 = sphi 0, %s82
      %s104 = sphi 0, %s106
      %s107 = sphi 0, %s104
      %s108 = sphi 0, %s107
      %s124 = sphi 0, %s108
      %s128 = sphi 0, %s128
      %s130 = sphi 0, %s128
      %s131 = sphi 0, %s130
      %s145 = sphi 0, %s131
      %s149 = sphi 0, %s149
      %s151 = sphi 0, %s149
      %s152 = sphi 0, %s151
      %s166 = sphi 0, %s152
      %s170 = sphi 0, %s170
      %s172 = sphi 0, %s170
      %s173 = sphi 0, %s172
      %s187 = sphi 0, %s173
      %s191 = sphi 0, %s191
      %s193 = sphi 0, %s191
      %s194 = sphi 0, %s193
      %s208 = sphi 0, %s194
      %s212 = sphi 0, %s212
      %s214 = sphi 0, %s212
      %s215 = sphi 0, %s214
      %s229 = sphi 0, %s215
      %s233 = sphi 0, %s233
      %s235 = sphi 0, %s233
      %s236 = sphi 0, %s235
      %s250 = sphi 0, %s236
      %s254 = sphi 0, %s254
      %s256 = sphi 0, %s254
      %s257 = sphi 0, %s256
      %s271 = sphi 0, %s257
      %s275 = sphi 0, %s275
      %s277 = sphi 0, %s275
      %s278 = sphi 0, %s277
      %s292 = sphi 0, %s278
      %s296 = sphi 0, %s296
      %s298 = sphi 0, %s296
      %s299 = sphi 0, %s298
      %s313 = sphi 0, %s299
      %s317 = sphi 0, %s317
      %s319 = sphi 0, %s317
      %s320 = sphi 0, %s319
      %s334 = sphi 0, %s320
      %s338 = sphi 0, %s338
      %s340 = sphi 0, %s338
      %s341 = sphi 0, %s340
      %s355 = sphi 0, %s341
      %s359 = sphi 0, %s359
      %s361 = sphi 0, %s359
      %s362 = sphi 0, %s361
      %s376 = sphi 0, %s362
      %s382 = sphi 0, %s384
      %s385 = sphi 0, %s382
      %s386 = sphi 0, %s385
      %s402 = sphi 0, %s386
    $region4: #{tpu_custom_call.1} parent=1 // loop_header_branch
      %31 = sbr.rel (%p29) target = $region8
    $region5: #{tpu_custom_call.1} parent=1 // loop_body
      %s33 = ssub.s32 %s28, 1
      %s34 = ssub.s32 %s28, 2
      %s41 = sadd.s32 1, %s36
      %p42 = scmp.ge.s32.totalorder %s41, 2
      %s43 = scalar_select %p42, 0, %s41
      %s44 = sadd.s32 1, %s35
      %s45 = scalar_select %p42, %s44, %s35
      %p46 = scmp.ge.s32.totalorder %s45, 1
      %s47 = scalar_select %p46, 0, %s45
      %s48 = ssub.s32 %s36, %s43
      %s49 = ssub.s32 %s35, %s47
      %s50 = sor.u32 %s48, %s49
      %p51 = scmp.eq.s32.totalorder %s50, 0
      %s53 = sadd.s32 %s52, 1
      %s54 = scalar_select %p51, %s52, %s53
      %p57 = pneg %p51
      %p58 = scmp.eq.s32.totalorder %s28, 1
      %p59 = por %p57, %p58
      %p60 = scmp.ne.s32.totalorder %s52, %s55
      %p61 = scmp.eq.s32.totalorder %s28, 0
      %p62 = por %p60, %p61
      %p63 = scmp.ne.s32.totalorder %s52, %s55
      %p64 = scmp.eq.s32.totalorder %s33, 1
      %p65 = por %p63, %p64
      %p66 = scmp.ne.s32.totalorder %s55, %s56
      %p67 = scmp.eq.s32.totalorder %s33, 0
      %p68 = por %p66, %p67
      %p69 = scmp.ne.s32.totalorder %s55, %s56
      %p70 = scmp.eq.s32.totalorder %s34, 1
      %p71 = por %p69, %p70
      %p73 = scmp.ne.s32.totalorder %s56, %s72
      %p74 = scmp.eq.s32.totalorder %s34, 0
      %p75 = por %p73, %p74
      %s76 = ssub.s32 %s35, %s47
      %p77 = scmp.eq.s32.totalorder %s76, 0
      %s79 = sadd.s32 %s78, 1
      %s80 = scalar_select %p77, %s78, %s79
      %p83 = pneg %p77
      %p84 = scmp.eq.s32.totalorder %s28, 1
      %p85 = por %p83, %p84
      %p86 = scmp.ne.s32.totalorder %s78, %s81
      %p87 = scmp.eq.s32.totalorder %s28, 0
      %p88 = por %p86, %p87
      %p89 = scmp.ne.s32.totalorder %s78, %s81
      %p90 = scmp.eq.s32.totalorder %s33, 1
      %p91 = por %p89, %p90
      %p92 = scmp.ne.s32.totalorder %s81, %s82
      %p93 = scmp.eq.s32.totalorder %s33, 0
      %p94 = por %p92, %p93
      %p95 = scmp.ne.s32.totalorder %s81, %s82
      %p96 = scmp.eq.s32.totalorder %s34, 1
      %p97 = por %p95, %p96
      %p99 = scmp.ne.s32.totalorder %s82, %s98
      %p100 = scmp.eq.s32.totalorder %s34, 0
      %p101 = por %p99, %p100
      %s102 = ssub.s32 %s35, %s47
      %p103 = scmp.eq.s32.totalorder %s102, 0
      %s105 = sadd.s32 %s104, 1
      %s106 = scalar_select %p103, %s104, %s105
      %p109 = pneg %p103
      %p110 = scmp.eq.s32.totalorder %s28, 1
      %p111 = por %p109, %p110
      %p112 = scmp.ne.s32.totalorder %s104, %s107
      %p113 = scmp.eq.s32.totalorder %s28, 0
      %p114 = por %p112, %p113
      %p115 = scmp.ne.s32.totalorder %s104, %s107
      %p116 = scmp.eq.s32.totalorder %s33, 1
      %p117 = por %p115, %p116
      %p118 = scmp.ne.s32.totalorder %s107, %s108
      %p119 = scmp.eq.s32.totalorder %s33, 0
      %p120 = por %p118, %p119
      %p121 = scmp.ne.s32.totalorder %s107, %s108
      %p122 = scmp.eq.s32.totalorder %s34, 1
      %p123 = por %p121, %p122
      %p125 = scmp.ne.s32.totalorder %s108, %s124
      %p126 = scmp.eq.s32.totalorder %s34, 0
      %p127 = por %p125, %p126
      %s129 = sadd.s32 %s128, 1
      %p132 = scmp.eq.s32.totalorder %s28, 1
      %p133 = scmp.ne.s32.totalorder %s128, %s130
      %p134 = scmp.eq.s32.totalorder %s28, 0
      %p135 = por %p133, %p134
      %p136 = scmp.ne.s32.totalorder %s128, %s130
      %p137 = scmp.eq.s32.totalorder %s33, 1
      %p138 = por %p136, %p137
      %p139 = scmp.ne.s32.totalorder %s130, %s131
      %p140 = scmp.eq.s32.totalorder %s33, 0
      %p141 = por %p139, %p140
      %p142 = scmp.ne.s32.totalorder %s130, %s131
      %p143 = scmp.eq.s32.totalorder %s34, 1
      %p144 = por %p142, %p143
      %p146 = scmp.ne.s32.totalorder %s131, %s145
      %p147 = scmp.eq.s32.totalorder %s34, 0
      %p148 = por %p146, %p147
      %s150 = sadd.s32 %s149, 1
      %p153 = scmp.eq.s32.totalorder %s28, 1
      %p154 = scmp.ne.s32.totalorder %s149, %s151
      %p155 = scmp.eq.s32.totalorder %s28, 0
      %p156 = por %p154, %p155
      %p157 = scmp.ne.s32.totalorder %s149, %s151
      %p158 = scmp.eq.s32.totalorder %s33, 1
      %p159 = por %p157, %p158
      %p160 = scmp.ne.s32.totalorder %s151, %s152
      %p161 = scmp.eq.s32.totalorder %s33, 0
      %p162 = por %p160, %p161
      %p163 = scmp.ne.s32.totalorder %s151, %s152
      %p164 = scmp.eq.s32.totalorder %s34, 1
      %p165 = por %p163, %p164
      %p167 = scmp.ne.s32.totalorder %s152, %s166
      %p168 = scmp.eq.s32.totalorder %s34, 0
      %p169 = por %p167, %p168
      %s171 = sadd.s32 %s170, 1
      %p174 = scmp.eq.s32.totalorder %s28, 1
      %p175 = scmp.ne.s32.totalorder %s170, %s172
      %p176 = scmp.eq.s32.totalorder %s28, 0
      %p177 = por %p175, %p176
      %p178 = scmp.ne.s32.totalorder %s170, %s172
      %p179 = scmp.eq.s32.totalorder %s33, 1
      %p180 = por %p178, %p179
      %p181 = scmp.ne.s32.totalorder %s172, %s173
      %p182 = scmp.eq.s32.totalorder %s33, 0
      %p183 = por %p181, %p182
      %p184 = scmp.ne.s32.totalorder %s172, %s173
      %p185 = scmp.eq.s32.totalorder %s34, 1
      %p186 = por %p184, %p185
      %p188 = scmp.ne.s32.totalorder %s173, %s187
      %p189 = scmp.eq.s32.totalorder %s34, 0
      %p190 = por %p188, %p189
      %s192 = sadd.s32 %s191, 1
      %p195 = scmp.eq.s32.totalorder %s28, 1
      %p196 = scmp.ne.s32.totalorder %s191, %s193
      %p197 = scmp.eq.s32.totalorder %s28, 0
      %p198 = por %p196, %p197
      %p199 = scmp.ne.s32.totalorder %s191, %s193
      %p200 = scmp.eq.s32.totalorder %s33, 1
      %p201 = por %p199, %p200
      %p202 = scmp.ne.s32.totalorder %s193, %s194
      %p203 = scmp.eq.s32.totalorder %s33, 0
      %p204 = por %p202, %p203
      %p205 = scmp.ne.s32.totalorder %s193, %s194
      %p206 = scmp.eq.s32.totalorder %s34, 1
      %p207 = por %p205, %p206
      %p209 = scmp.ne.s32.totalorder %s194, %s208
      %p210 = scmp.eq.s32.totalorder %s34, 0
      %p211 = por %p209, %p210
      %s213 = sadd.s32 %s212, 1
      %p216 = scmp.eq.s32.totalorder %s28, 1
      %p217 = scmp.ne.s32.totalorder %s212, %s214
      %p218 = scmp.eq.s32.totalorder %s28, 0
      %p219 = por %p217, %p218
      %p220 = scmp.ne.s32.totalorder %s212, %s214
      %p221 = scmp.eq.s32.totalorder %s33, 1
      %p222 = por %p220, %p221
      %p223 = scmp.ne.s32.totalorder %s214, %s215
      %p224 = scmp.eq.s32.totalorder %s33, 0
      %p225 = por %p223, %p224
      %p226 = scmp.ne.s32.totalorder %s214, %s215
      %p227 = scmp.eq.s32.totalorder %s34, 1
      %p228 = por %p226, %p227
      %p230 = scmp.ne.s32.totalorder %s215, %s229
      %p231 = scmp.eq.s32.totalorder %s34, 0
      %p232 = por %p230, %p231
      %s234 = sadd.s32 %s233, 1
      %p237 = scmp.eq.s32.totalorder %s28, 1
      %p238 = scmp.ne.s32.totalorder %s233, %s235
      %p239 = scmp.eq.s32.totalorder %s28, 0
      %p240 = por %p238, %p239
      %p241 = scmp.ne.s32.totalorder %s233, %s235
      %p242 = scmp.eq.s32.totalorder %s33, 1
      %p243 = por %p241, %p242
      %p244 = scmp.ne.s32.totalorder %s235, %s236
      %p245 = scmp.eq.s32.totalorder %s33, 0
      %p246 = por %p244, %p245
      %p247 = scmp.ne.s32.totalorder %s235, %s236
      %p248 = scmp.eq.s32.totalorder %s34, 1
      %p249 = por %p247, %p248
      %p251 = scmp.ne.s32.totalorder %s236, %s250
      %p252 = scmp.eq.s32.totalorder %s34, 0
      %p253 = por %p251, %p252
      %s255 = sadd.s32 %s254, 1
      %p258 = scmp.eq.s32.totalorder %s28, 1
      %p259 = scmp.ne.s32.totalorder %s254, %s256
      %p260 = scmp.eq.s32.totalorder %s28, 0
      %p261 = por %p259, %p260
      %p262 = scmp.ne.s32.totalorder %s254, %s256
      %p263 = scmp.eq.s32.totalorder %s33, 1
      %p264 = por %p262, %p263
      %p265 = scmp.ne.s32.totalorder %s256, %s257
      %p266 = scmp.eq.s32.totalorder %s33, 0
      %p267 = por %p265, %p266
      %p268 = scmp.ne.s32.totalorder %s256, %s257
      %p269 = scmp.eq.s32.totalorder %s34, 1
      %p270 = por %p268, %p269
      %p272 = scmp.ne.s32.totalorder %s257, %s271
      %p273 = scmp.eq.s32.totalorder %s34, 0
      %p274 = por %p272, %p273
      %s276 = sadd.s32 %s275, 1
      %p279 = scmp.eq.s32.totalorder %s28, 1
      %p280 = scmp.ne.s32.totalorder %s275, %s277
      %p281 = scmp.eq.s32.totalorder %s28, 0
      %p282 = por %p280, %p281
      %p283 = scmp.ne.s32.totalorder %s275, %s277
      %p284 = scmp.eq.s32.totalorder %s33, 1
      %p285 = por %p283, %p284
      %p286 = scmp.ne.s32.totalorder %s277, %s278
      %p287 = scmp.eq.s32.totalorder %s33, 0
      %p288 = por %p286, %p287
      %p289 = scmp.ne.s32.totalorder %s277, %s278
      %p290 = scmp.eq.s32.totalorder %s34, 1
      %p291 = por %p289, %p290
      %p293 = scmp.ne.s32.totalorder %s278, %s292
      %p294 = scmp.eq.s32.totalorder %s34, 0
      %p295 = por %p293, %p294
      %s297 = sadd.s32 %s296, 1
      %p300 = scmp.eq.s32.totalorder %s28, 1
      %p301 = scmp.ne.s32.totalorder %s296, %s298
      %p302 = scmp.eq.s32.totalorder %s28, 0
      %p303 = por %p301, %p302
      %p304 = scmp.ne.s32.totalorder %s296, %s298
      %p305 = scmp.eq.s32.totalorder %s33, 1
      %p306 = por %p304, %p305
      %p307 = scmp.ne.s32.totalorder %s298, %s299
      %p308 = scmp.eq.s32.totalorder %s33, 0
      %p309 = por %p307, %p308
      %p310 = scmp.ne.s32.totalorder %s298, %s299
      %p311 = scmp.eq.s32.totalorder %s34, 1
      %p312 = por %p310, %p311
      %p314 = scmp.ne.s32.totalorder %s299, %s313
      %p315 = scmp.eq.s32.totalorder %s34, 0
      %p316 = por %p314, %p315
      %s318 = sadd.s32 %s317, 1
      %p321 = scmp.eq.s32.totalorder %s28, 1
      %p322 = scmp.ne.s32.totalorder %s317, %s319
      %p323 = scmp.eq.s32.totalorder %s28, 0
      %p324 = por %p322, %p323
      %p325 = scmp.ne.s32.totalorder %s317, %s319
      %p326 = scmp.eq.s32.totalorder %s33, 1
      %p327 = por %p325, %p326
      %p328 = scmp.ne.s32.totalorder %s319, %s320
      %p329 = scmp.eq.s32.totalorder %s33, 0
      %p330 = por %p328, %p329
      %p331 = scmp.ne.s32.totalorder %s319, %s320
      %p332 = scmp.eq.s32.totalorder %s34, 1
      %p333 = por %p331, %p332
      %p335 = scmp.ne.s32.totalorder %s320, %s334
      %p336 = scmp.eq.s32.totalorder %s34, 0
      %p337 = por %p335, %p336
      %s339 = sadd.s32 %s338, 1
      %p342 = scmp.eq.s32.totalorder %s28, 1
      %p343 = scmp.ne.s32.totalorder %s338, %s340
      %p344 = scmp.eq.s32.totalorder %s28, 0
      %p345 = por %p343, %p344
      %p346 = scmp.ne.s32.totalorder %s338, %s340
      %p347 = scmp.eq.s32.totalorder %s33, 1
      %p348 = por %p346, %p347
      %p349 = scmp.ne.s32.totalorder %s340, %s341
      %p350 = scmp.eq.s32.totalorder %s33, 0
      %p351 = por %p349, %p350
      %p352 = scmp.ne.s32.totalorder %s340, %s341
      %p353 = scmp.eq.s32.totalorder %s34, 1
      %p354 = por %p352, %p353
      %p356 = scmp.ne.s32.totalorder %s341, %s355
      %p357 = scmp.eq.s32.totalorder %s34, 0
      %p358 = por %p356, %p357
      %s360 = sadd.s32 %s359, 1
      %p363 = scmp.eq.s32.totalorder %s28, 1
      %p364 = scmp.ne.s32.totalorder %s359, %s361
      %p365 = scmp.eq.s32.totalorder %s28, 0
      %p366 = por %p364, %p365
      %p367 = scmp.ne.s32.totalorder %s359, %s361
      %p368 = scmp.eq.s32.totalorder %s33, 1
      %p369 = por %p367, %p368
      %p370 = scmp.ne.s32.totalorder %s361, %s362
      %p371 = scmp.eq.s32.totalorder %s33, 0
      %p372 = por %p370, %p371
      %p373 = scmp.ne.s32.totalorder %s361, %s362
      %p374 = scmp.eq.s32.totalorder %s34, 1
      %p375 = por %p373, %p374
      %p377 = scmp.ne.s32.totalorder %s362, %s376
      %p378 = scmp.eq.s32.totalorder %s34, 0
      %p379 = por %p377, %p378
      %s380 = ssub.s32 %s35, %s47
      %p381 = scmp.eq.s32.totalorder %s380, 0
      %s383 = sadd.s32 %s382, 1
      %s384 = scalar_select %p381, %s382, %s383
      %p387 = pneg %p381
      %p388 = scmp.eq.s32.totalorder %s28, 1
      %p389 = por %p387, %p388
      %p390 = scmp.ne.s32.totalorder %s382, %s385
      %p391 = scmp.eq.s32.totalorder %s28, 0
      %p392 = por %p390, %p391
      %p393 = scmp.ne.s32.totalorder %s382, %s385
      %p394 = scmp.eq.s32.totalorder %s33, 1
      %p395 = por %p393, %p394
      %p396 = scmp.ne.s32.totalorder %s385, %s386
      %p397 = scmp.eq.s32.totalorder %s33, 0
      %p398 = por %p396, %p397
      %p399 = scmp.ne.s32.totalorder %s385, %s386
      %p400 = scmp.eq.s32.totalorder %s34, 1
      %p401 = por %p399, %p400
      %p403 = scmp.ne.s32.totalorder %s386, %s402
      %p404 = scmp.eq.s32.totalorder %s34, 0
      %p405 = por %p403, %p404
      %p406 = scmp.le.s32.totalorder 1, %s28
      %p407 = scmp.lt.s32.totalorder %s28, 3
      %p408 = pnand %p406, %p407
      %p409 = pneg %p408
      // Predicated region
      $region9: #{tpu_custom_call.1} parent=5 // pred_check
        _
      $region10: #{tpu_custom_call.1} parent=5 // pred_check_branch
        %411 = sbr.rel (%p408) target = $region12
      $region11: #{tpu_custom_call.1} parent=5 // pred_region
        %s412 = ssub.s32 %s28, 1
        // Predicated region
        $region13: #{tpu_custom_call.1} parent=11 // pred_check
          %p413 = pneg %p94
        $region14: #{tpu_custom_call.1} parent=11 // pred_check_branch
          %415 = sbr.rel (%p413) target = $region16
        $region15: #{tpu_custom_call.1} parent=11 // pred_region
          %p416 = scmp.lt.s32.totalorder %s37, 0
          %s417 = scalar_select %p416, %s37, 0
          %s418 = smul.addr %s417, 8
          %s419 = scalar_lea.vmem %s1, %s418
        $region16: #{tpu_custom_call.1} parent=11 // pred_fallthru
          _
        // Predicated region
        $region17: #{tpu_custom_call.1} parent=11 // pred_check
          %p420 = pneg %p120
        $region18: #{tpu_custom_call.1} parent=11 // pred_check_branch
          %422 = sbr.rel (%p420) target = $region20
        $region19: #{tpu_custom_call.1} parent=11 // pred_region
          %p423 = scmp.lt.s32.totalorder %s37, 0
          %s424 = scalar_select %p423, %s37, 0
          %s425 = smul.addr %s424, 8
          %s426 = scalar_lea.vmem %s2, %s425
        $region20: #{tpu_custom_call.1} parent=11 // pred_fallthru
          _
        // Predicated region
        $region21: #{tpu_custom_call.1} parent=11 // pred_check
          %p427 = pneg %p141
        $region22: #{tpu_custom_call.1} parent=11 // pred_check_branch
          %429 = sbr.rel (%p427) target = $region24
        $region23: #{tpu_custom_call.1} parent=11 // pred_region
          %s431 = ssub.s32 8192, 8192
          %432 = vsyncadd [#allocation10], %s431
          %s433 = sshll.u32 [#allocation9], 4
          %s434 = int_to_ptr.vmem [resolvable:$true] %s433
          %439 = dma.hbm_to_vmem [thread:$0]  %s3, 8192, %s434, [#allocation10], 512, 512, 32
        $region24: #{tpu_custom_call.1} parent=11 // pred_fallthru
          _
        // Predicated region
        $region25: #{tpu_custom_call.1} parent=11 // pred_check
          %p440 = pneg %p162
        $region26: #{tpu_custom_call.1} parent=11 // pred_check_branch
          %442 = sbr.rel (%p440) target = $region28
        $region27: #{tpu_custom_call.1} parent=11 // pred_region
          %s444 = ssub.s32 8192, 8192
          %445 = vsyncadd [#allocation10], %s444
          %s446 = sshll.u32 [#allocation11], 4
          %s447 = int_to_ptr.vmem [resolvable:$true] %s446
          %452 = dma.hbm_to_vmem [thread:$0]  %s4, 8192, %s447, [#allocation10], 512, 512, 32
        $region28: #{tpu_custom_call.1} parent=11 // pred_fallthru
          _
        // Predicated region
        $region29: #{tpu_custom_call.1} parent=11 // pred_check
          %p453 = pneg %p183
        $region30: #{tpu_custom_call.1} parent=11 // pred_check_branch
          %455 = sbr.rel (%p453) target = $region32
        $region31: #{tpu_custom_call.1} parent=11 // pred_region
          _
        $region32: #{tpu_custom_call.1} parent=11 // pred_fallthru
          _
        // Predicated region
        $region33: #{tpu_custom_call.1} parent=11 // pred_check
          %p456 = pneg %p204
        $region34: #{tpu_custom_call.1} parent=11 // pred_check_branch
          %458 = sbr.rel (%p456) target = $region36
        $region35: #{tpu_custom_call.1} parent=11 // pred_region
          %s460 = ssub.s32 8192, 8192
          %461 = vsyncadd [#allocation13], %s460
          %s462 = sshll.u32 [#allocation12], 4
          %s463 = int_to_ptr.vmem [resolvable:$true] %s462
          %468 = dma.hbm_to_vmem [thread:$0]  %s6, 8192, %s463, [#allocation13], 512, 512, 32
        $region36: #{tpu_custom_call.1} parent=11 // pred_fallthru
          _
        // Predicated region
        $region37: #{tpu_custom_call.1} parent=11 // pred_check
          %p469 = pneg %p225
        $region38: #{tpu_custom_call.1} parent=11 // pred_check_branch
          %471 = sbr.rel (%p469) target = $region40
        $region39: #{tpu_custom_call.1} parent=11 // pred_region
          %s473 = ssub.s32 8192, 8192
          %474 = vsyncadd [#allocation13], %s473
          %s475 = sshll.u32 [#allocation14], 4
          %s476 = int_to_ptr.vmem [resolvable:$true] %s475
          %481 = dma.hbm_to_vmem [thread:$0]  %s7, 8192, %s476, [#allocation13], 512, 512, 32
        $region40: #{tpu_custom_call.1} parent=11 // pred_fallthru
          _
        // Predicated region
        $region41: #{tpu_custom_call.1} parent=11 // pred_check
          %p482 = pneg %p246
        $region42: #{tpu_custom_call.1} parent=11 // pred_check_branch
          %484 = sbr.rel (%p482) target = $region44
        $region43: #{tpu_custom_call.1} parent=11 // pred_region
          _
        $region44: #{tpu_custom_call.1} parent=11 // pred_fallthru
          _
        // Predicated region
        $region45: #{tpu_custom_call.1} parent=11 // pred_check
          %p485 = pneg %p267
        $region46: #{tpu_custom_call.1} parent=11 // pred_check_branch
          %487 = sbr.rel (%p485) target = $region48
        $region47: #{tpu_custom_call.1} parent=11 // pred_region
          _
        $region48: #{tpu_custom_call.1} parent=11 // pred_fallthru
          _
        // Predicated region
        $region49: #{tpu_custom_call.1} parent=11 // pred_check
          %p488 = pneg %p288
        $region50: #{tpu_custom_call.1} parent=11 // pred_check_branch
          %490 = sbr.rel (%p488) target = $region52
        $region51: #{tpu_custom_call.1} parent=11 // pred_region
          _
        $region52: #{tpu_custom_call.1} parent=11 // pred_fallthru
          _
        // Predicated region
        $region53: #{tpu_custom_call.1} parent=11 // pred_check
          %p491 = pneg %p309
        $region54: #{tpu_custom_call.1} parent=11 // pred_check_branch
          %493 = sbr.rel (%p491) target = $region56
        $region55: #{tpu_custom_call.1} parent=11 // pred_region
          %s495 = ssub.s32 2048, 2048
          %496 = vsyncadd [#allocation16], %s495
          %s497 = sshll.u32 [#allocation15], 4
          %s498 = int_to_ptr.vmem [resolvable:$true] %s497
          %503 = dma.hbm_to_vmem [thread:$0]  %s11, 2048, %s498, [#allocation16], 128, 128, 8
        $region56: #{tpu_custom_call.1} parent=11 // pred_fallthru
          _
        // Predicated region
        $region57: #{tpu_custom_call.1} parent=11 // pred_check
          %p504 = pneg %p330
        $region58: #{tpu_custom_call.1} parent=11 // pred_check_branch
          %506 = sbr.rel (%p504) target = $region60
        $region59: #{tpu_custom_call.1} parent=11 // pred_region
          _
        $region60: #{tpu_custom_call.1} parent=11 // pred_fallthru
          _
        // Predicated region
        $region61: #{tpu_custom_call.1} parent=11 // pred_check
          %p507 = pneg %p351
        $region62: #{tpu_custom_call.1} parent=11 // pred_check_branch
          %509 = sbr.rel (%p507) target = $region64
        $region63: #{tpu_custom_call.1} parent=11 // pred_region
          _
        $region64: #{tpu_custom_call.1} parent=11 // pred_fallthru
          _
        // Predicated region
        $region65: #{tpu_custom_call.1} parent=11 // pred_check
          %p510 = pneg %p372
        $region66: #{tpu_custom_call.1} parent=11 // pred_check_branch
          %512 = sbr.rel (%p510) target = $region68
        $region67: #{tpu_custom_call.1} parent=11 // pred_region
          _
        $region68: #{tpu_custom_call.1} parent=11 // pred_fallthru
          _
      $region12: #{tpu_custom_call.1} parent=5 // pred_fallthru
        _
      %p513 = scmp.lt.s32.totalorder %s28, 2
      // Predicated region
      $region69: #{tpu_custom_call.1} parent=5 // pred_check
        %p514 = pneg %p513
      $region70: #{tpu_custom_call.1} parent=5 // pred_check_branch
        %516 = sbr.rel (%p514) target = $region72
      $region71: #{tpu_custom_call.1} parent=5 // pred_region
        // Predicated region
        $region73: #{tpu_custom_call.1} parent=71 // pred_check
          %p517 = pneg %p62
        $region74: #{tpu_custom_call.1} parent=71 // pred_check_branch
          %519 = sbr.rel (%p517) target = $region76
        $region75: #{tpu_custom_call.1} parent=71 // pred_region
          %s520 = sand.u32 %s52, 1
          %s521 = scalar_lea.sflag [#allocation8], %s520
          %s522 = sand.u32 %s52, 1
          %s523 = smul.addr %s522, 16
          %s524 = scalar_lea.vmem [#allocation7], %s523
          %s525 = smul.u32 4, %s36
          %s527 = ssub.s32 256, 256
          %528 = vsyncadd %s521, %s527
          %s529 = sadd.s32 %s35, %s525
          %s530 = smul.addr %s529, 64
          %s531 = scalar_lea.hbm %s0, %s530
          %s532 = sshll.u32 %s524, 4
          %s533 = int_to_ptr.vmem [resolvable:$true] %s532
          %538 = dma.hbm_to_vmem [thread:$0]  %s531, 256, %s533, %s521, 64, 64, 4
        $region76: #{tpu_custom_call.1} parent=71 // pred_fallthru
          _
      $region72: #{tpu_custom_call.1} parent=5 // pred_fallthru
        _
      %p539 = scmp.le.s32.totalorder 1, %s28
      %p540 = scmp.lt.s32.totalorder %s28, 3
      %p541 = pnand %p539, %p540
      %p542 = pneg %p541
      // Predicated region
      $region77: #{tpu_custom_call.1} parent=5 // pred_check
        _
      $region78: #{tpu_custom_call.1} parent=5 // pred_check_branch
        %544 = sbr.rel (%p541) target = $region80
      $region79: #{tpu_custom_call.1} parent=5 // pred_region
        %s545 = ssub.s32 %s28, 1
        %s546 = sand.u32 %s55, 1
        %s547 = scalar_lea.sflag [#allocation8], %s546
        %s548 = sand.u32 %s55, 1
        %s549 = smul.addr %s548, 16
        %s550 = scalar_lea.vmem [#allocation7], %s549
        // Predicated region
        $region81: #{tpu_custom_call.1} parent=79 // pred_check
          %p551 = pneg %p68
        $region82: #{tpu_custom_call.1} parent=79 // pred_check_branch
          %553 = sbr.rel (%p551) target = $region84
        $region83: #{tpu_custom_call.1} parent=79 // pred_region
          %554 = dma.done %s547, 256
        $region84: #{tpu_custom_call.1} parent=79 // pred_fallthru
          _
        // Predicated region
        $region85: #{tpu_custom_call.1} parent=79 // pred_check
          %p555 = pneg %p141
        $region86: #{tpu_custom_call.1} parent=79 // pred_check_branch
          %557 = sbr.rel (%p555) target = $region88
        $region87: #{tpu_custom_call.1} parent=79 // pred_region
          %558 = dma.done [#allocation10], 8192
        $region88: #{tpu_custom_call.1} parent=79 // pred_fallthru
          _
        // Predicated region
        $region89: #{tpu_custom_call.1} parent=79 // pred_check
          %p559 = pneg %p162
        $region90: #{tpu_custom_call.1} parent=79 // pred_check_branch
          %561 = sbr.rel (%p559) target = $region92
        $region91: #{tpu_custom_call.1} parent=79 // pred_region
          %562 = dma.done [#allocation10], 8192
        $region92: #{tpu_custom_call.1} parent=79 // pred_fallthru
          _
        // Predicated region
        $region93: #{tpu_custom_call.1} parent=79 // pred_check
          %p563 = pneg %p204
        $region94: #{tpu_custom_call.1} parent=79 // pred_check_branch
          %565 = sbr.rel (%p563) target = $region96
        $region95: #{tpu_custom_call.1} parent=79 // pred_region
          %566 = dma.done [#allocation13], 8192
        $region96: #{tpu_custom_call.1} parent=79 // pred_fallthru
          _
        // Predicated region
        $region97: #{tpu_custom_call.1} parent=79 // pred_check
          %p567 = pneg %p225
        $region98: #{tpu_custom_call.1} parent=79 // pred_check_branch
          %569 = sbr.rel (%p567) target = $region100
        $region99: #{tpu_custom_call.1} parent=79 // pred_region
          %570 = dma.done [#allocation13], 8192
        $region100: #{tpu_custom_call.1} parent=79 // pred_fallthru
          _
        // Predicated region
        $region101: #{tpu_custom_call.1} parent=79 // pred_check
          %p571 = pneg %p309
        $region102: #{tpu_custom_call.1} parent=79 // pred_check_branch
          %573 = sbr.rel (%p571) target = $region104
        $region103: #{tpu_custom_call.1} parent=79 // pred_region
          %574 = dma.done [#allocation16], 2048
        $region104: #{tpu_custom_call.1} parent=79 // pred_fallthru
          _
        %s575 = sand.u32 %s55, 1
        %s576 = scalar_lea.sflag [#allocation8], %s575
        %s577 = sand.u32 %s55, 1
        %s578 = smul.addr %s577, 16
        %s579 = scalar_lea.vmem [#allocation7], %s578
        %p580 = pneg %p68
        %p581 = pneg %p65
        %p582 = scmp.lt.s32.totalorder %s37, 0
        %s583 = scalar_select %p582, %s37, 0
        %s584 = smul.addr %s583, 8
        %s585 = scalar_lea.vmem %s1, %s584
        %p586 = pneg %p94
        %p587 = pneg %p91
        %p588 = scmp.lt.s32.totalorder %s37, 0
        %s589 = scalar_select %p588, %s37, 0
        %s590 = smul.addr %s589, 8
        %s591 = scalar_lea.vmem %s2, %s590
        %p592 = pneg %p120
        %p593 = pneg %p117
        %p594 = pneg %p141
        %p595 = pneg %p138
        %p596 = pneg %p162
        %p597 = pneg %p159
        %p598 = pneg %p183
        %p599 = pneg %p180
        %p600 = pneg %p204
        %p601 = pneg %p201
        %p602 = pneg %p225
        %p603 = pneg %p222
        %p604 = pneg %p246
        %p605 = pneg %p243
        %p606 = pneg %p267
        %p607 = pneg %p264
        %p608 = pneg %p288
        %p609 = pneg %p285
        %p610 = pneg %p309
        %p611 = pneg %p306
        %p612 = pneg %p330
        %p613 = pneg %p327
        %p614 = pneg %p351
        %p615 = pneg %p348
        %p616 = pneg %p372
        %p617 = pneg %p369
        %p618 = pneg %p398
        %p619 = pneg %p395
        %p620 = scmp.lt.s32.totalorder %s37, 0
        %s621 = scalar_select %p620, %s37, 0
        %s622 = smul.addr %s621, 8
        %s623 = scalar_lea.vmem %s15, %s622
        %s624 = smul.u32 4, %s38
        %p625 = scmp.lt.s32.totalorder %s37, 0
        %s626 = scalar_select %p625, %s37, 0
        %s627 = smul.addr %s626, 8
        %s628 = scalar_lea.vmem %s1, %s627
        %p629 = scmp.lt.s32.totalorder %s37, 0
        %s630 = scalar_select %p629, %s37, 0
        %s631 = smul.addr %s630, 8
        %s632 = scalar_lea.vmem %s2, %s631
        %p633 = scmp.lt.s32.totalorder %s37, 0
        %s634 = scalar_select %p633, %s37, 0
        %s635 = smul.addr %s634, 8
        %s636 = scalar_lea.vmem %s15, %s635
        %p637 = scmp.eq.s32.totalorder %s38, 0
        // Predicated region
        $region105: #{tpu_custom_call.1} parent=79 // pred_check
          %p638 = pneg %p637
        $region106: #{tpu_custom_call.1} parent=79 // pred_check_branch
          %640 = sbr.rel (%p638) target = $region108
        $region107: #{tpu_custom_call.1} parent=79 // pred_region
          %641 = vst [vmem:[#allocation2] sm:$0xff] 0.0
          %642 = vst [vmem:[#allocation3] sm:$0xff] 0.0
          %643 = vst [vmem:[#allocation4] sm:$0xff] 0.0
          %644 = vst [vmem:[#allocation5] sm:$0xff] 0.0
        $region108: #{tpu_custom_call.1} parent=79 // pred_fallthru
          _
        %v645 = vld [vmem:[%s550] sm:$0xf]
        %v646 = vunpack.c.l.bf16 %v645
        %v647 = vld [vmem:[#allocation2] sm:$0xff]
        %v648 = vld [vmem:[#allocation3] sm:$0xff]
        %v649 = vld [vmem:[#allocation9] sm:$0xff]
        %v650 = vld [vmem:[#allocation9 + $0x8] sm:$0xff]
        %v651 = vld [vmem:[#allocation9 + $0x10] sm:$0xff]
        %v652 = vld [vmem:[#allocation9 + $0x18] sm:$0xff]
        %v653 = vld [vmem:[#allocation9 + $0x20] sm:$0xff]
        %v654 = vld [vmem:[#allocation9 + $0x28] sm:$0xff]
        %v655 = vld [vmem:[#allocation9 + $0x30] sm:$0xff]
        %v656 = vld [vmem:[#allocation9 + $0x38] sm:$0xff]
        %v657 = vld [vmem:[#allocation9 + $0x40] sm:$0xff]
        %v658 = vld [vmem:[#allocation9 + $0x48] sm:$0xff]
        %v659 = vld [vmem:[#allocation9 + $0x50] sm:$0xff]
        %v660 = vld [vmem:[#allocation9 + $0x58] sm:$0xff]
        %v661 = vld [vmem:[#allocation9 + $0x60] sm:$0xff]
        %v662 = vld [vmem:[#allocation9 + $0x68] sm:$0xff]
        %v663 = vld [vmem:[#allocation9 + $0x70] sm:$0xff]
        %v664 = vld [vmem:[#allocation9 + $0x78] sm:$0xff]
        %v665 = vld [vmem:[#allocation9 + $0x80] sm:$0xff]
        %v666 = vld [vmem:[#allocation9 + $0x88] sm:$0xff]
        %v667 = vld [vmem:[#allocation9 + $0x90] sm:$0xff]
        %v668 = vld [vmem:[#allocation9 + $0x98] sm:$0xff]
        %v669 = vld [vmem:[#allocation9 + $0xa0] sm:$0xff]
        %v670 = vld [vmem:[#allocation9 + $0xa8] sm:$0xff]
        %v671 = vld [vmem:[#allocation9 + $0xb0] sm:$0xff]
        %v672 = vld [vmem:[#allocation9 + $0xb8] sm:$0xff]
        %v673 = vld [vmem:[#allocation9 + $0xc0] sm:$0xff]
        %v674 = vld [vmem:[#allocation9 + $0xc8] sm:$0xff]
        %v675 = vld [vmem:[#allocation9 + $0xd0] sm:$0xff]
        %v676 = vld [vmem:[#allocation9 + $0xd8] sm:$0xff]
        %v677 = vld [vmem:[#allocation9 + $0xe0] sm:$0xff]
        %v678 = vld [vmem:[#allocation9 + $0xe8] sm:$0xff]
        %v679 = vld [vmem:[#allocation9 + $0xf0] sm:$0xff]
        %v680 = vld [vmem:[#allocation9 + $0xf8] sm:$0xff]
        %v681 = vld [vmem:[#allocation9 + $0x100] sm:$0xff]
        %v682 = vld [vmem:[#allocation9 + $0x108] sm:$0xff]
        %v683 = vld [vmem:[#allocation9 + $0x110] sm:$0xff]
        %v684 = vld [vmem:[#allocation9 + $0x118] sm:$0xff]
        %v685 = vld [vmem:[#allocation9 + $0x120] sm:$0xff]
        %v686 = vld [vmem:[#allocation9 + $0x128] sm:$0xff]
        %v687 = vld [vmem:[#allocation9 + $0x130] sm:$0xff]
        %v688 = vld [vmem:[#allocation9 + $0x138] sm:$0xff]
        %v689 = vld [vmem:[#allocation9 + $0x140] sm:$0xff]
        %v690 = vld [vmem:[#allocation9 + $0x148] sm:$0xff]
        %v691 = vld [vmem:[#allocation9 + $0x150] sm:$0xff]
        %v692 = vld [vmem:[#allocation9 + $0x158] sm:$0xff]
        %v693 = vld [vmem:[#allocation9 + $0x160] sm:$0xff]
        %v694 = vld [vmem:[#allocation9 + $0x168] sm:$0xff]
        %v695 = vld [vmem:[#allocation9 + $0x170] sm:$0xff]
        %v696 = vld [vmem:[#allocation9 + $0x178] sm:$0xff]
        %v697 = vld [vmem:[#allocation9 + $0x180] sm:$0xff]
        %v698 = vld [vmem:[#allocation9 + $0x188] sm:$0xff]
        %v699 = vld [vmem:[#allocation9 + $0x190] sm:$0xff]
        %v700 = vld [vmem:[#allocation9 + $0x198] sm:$0xff]
        %v701 = vld [vmem:[#allocation9 + $0x1a0] sm:$0xff]
        %v702 = vld [vmem:[#allocation9 + $0x1a8] sm:$0xff]
        %v703 = vld [vmem:[#allocation9 + $0x1b0] sm:$0xff]
        %v704 = vld [vmem:[#allocation9 + $0x1b8] sm:$0xff]
        %v705 = vld [vmem:[#allocation9 + $0x1c0] sm:$0xff]
        %v706 = vld [vmem:[#allocation9 + $0x1c8] sm:$0xff]
        %v707 = vld [vmem:[#allocation9 + $0x1d0] sm:$0xff]
        %v708 = vld [vmem:[#allocation9 + $0x1d8] sm:$0xff]
        %v709 = vld [vmem:[#allocation9 + $0x1e0] sm:$0xff]
        %v710 = vld [vmem:[#allocation9 + $0x1e8] sm:$0xff]
        %v711 = vld [vmem:[#allocation9 + $0x1f0] sm:$0xff]
        %v712 = vld [vmem:[#allocation9 + $0x1f8] sm:$0xff]
        %v713 = vld [vmem:[#allocation11] sm:$0xff]
        %v714 = vld [vmem:[#allocation11 + $0x8] sm:$0xff]
        %v715 = vld [vmem:[#allocation11 + $0x10] sm:$0xff]
        %v716 = vld [vmem:[#allocation11 + $0x18] sm:$0xff]
        %v717 = vld [vmem:[#allocation11 + $0x20] sm:$0xff]
        %v718 = vld [vmem:[#allocation11 + $0x28] sm:$0xff]
        %v719 = vld [vmem:[#allocation11 + $0x30] sm:$0xff]
        %v720 = vld [vmem:[#allocation11 + $0x38] sm:$0xff]
        %v721 = vld [vmem:[#allocation11 + $0x40] sm:$0xff]
        %v722 = vld [vmem:[#allocation11 + $0x48] sm:$0xff]
        %v723 = vld [vmem:[#allocation11 + $0x50] sm:$0xff]
        %v724 = vld [vmem:[#allocation11 + $0x58] sm:$0xff]
        %v725 = vld [vmem:[#allocation11 + $0x60] sm:$0xff]
        %v726 = vld [vmem:[#allocation11 + $0x68] sm:$0xff]
        %v727 = vld [vmem:[#allocation11 + $0x70] sm:$0xff]
        %v728 = vld [vmem:[#allocation11 + $0x78] sm:$0xff]
        %v729 = vld [vmem:[#allocation11 + $0x80] sm:$0xff]
        %v730 = vld [vmem:[#allocation11 + $0x88] sm:$0xff]
        %v731 = vld [vmem:[#allocation11 + $0x90] sm:$0xff]
        %v732 = vld [vmem:[#allocation11 + $0x98] sm:$0xff]
        %v733 = vld [vmem:[#allocation11 + $0xa0] sm:$0xff]
        %v734 = vld [vmem:[#allocation11 + $0xa8] sm:$0xff]
        %v735 = vld [vmem:[#allocation11 + $0xb0] sm:$0xff]
        %v736 = vld [vmem:[#allocation11 + $0xb8] sm:$0xff]
        %v737 = vld [vmem:[#allocation11 + $0xc0] sm:$0xff]
        %v738 = vld [vmem:[#allocation11 + $0xc8] sm:$0xff]
        %v739 = vld [vmem:[#allocation11 + $0xd0] sm:$0xff]
        %v740 = vld [vmem:[#allocation11 + $0xd8] sm:$0xff]
        %v741 = vld [vmem:[#allocation11 + $0xe0] sm:$0xff]
        %v742 = vld [vmem:[#allocation11 + $0xe8] sm:$0xff]
        %v743 = vld [vmem:[#allocation11 + $0xf0] sm:$0xff]
        %v744 = vld [vmem:[#allocation11 + $0xf8] sm:$0xff]
        %v745 = vld [vmem:[#allocation11 + $0x100] sm:$0xff]
        %v746 = vld [vmem:[#allocation11 + $0x108] sm:$0xff]
        %v747 = vld [vmem:[#allocation11 + $0x110] sm:$0xff]
        %v748 = vld [vmem:[#allocation11 + $0x118] sm:$0xff]
        %v749 = vld [vmem:[#allocation11 + $0x120] sm:$0xff]
        %v750 = vld [vmem:[#allocation11 + $0x128] sm:$0xff]
        %v751 = vld [vmem:[#allocation11 + $0x130] sm:$0xff]
        %v752 = vld [vmem:[#allocation11 + $0x138] sm:$0xff]
        %v753 = vld [vmem:[#allocation11 + $0x140] sm:$0xff]
        %v754 = vld [vmem:[#allocation11 + $0x148] sm:$0xff]
        %v755 = vld [vmem:[#allocation11 + $0x150] sm:$0xff]
        %v756 = vld [vmem:[#allocation11 + $0x158] sm:$0xff]
        %v757 = vld [vmem:[#allocation11 + $0x160] sm:$0xff]
        %v758 = vld [vmem:[#allocation11 + $0x168] sm:$0xff]
        %v759 = vld [vmem:[#allocation11 + $0x170] sm:$0xff]
        %v760 = vld [vmem:[#allocation11 + $0x178] sm:$0xff]
        %v761 = vld [vmem:[#allocation11 + $0x180] sm:$0xff]
        %v762 = vld [vmem:[#allocation11 + $0x188] sm:$0xff]
        %v763 = vld [vmem:[#allocation11 + $0x190] sm:$0xff]
        %v764 = vld [vmem:[#allocation11 + $0x198] sm:$0xff]
        %v765 = vld [vmem:[#allocation11 + $0x1a0] sm:$0xff]
        %v766 = vld [vmem:[#allocation11 + $0x1a8] sm:$0xff]
        %v767 = vld [vmem:[#allocation11 + $0x1b0] sm:$0xff]
        %v768 = vld [vmem:[#allocation11 + $0x1b8] sm:$0xff]
        %v769 = vld [vmem:[#allocation11 + $0x1c0] sm:$0xff]
        %v770 = vld [vmem:[#allocation11 + $0x1c8] sm:$0xff]
        %v771 = vld [vmem:[#allocation11 + $0x1d0] sm:$0xff]
        %v772 = vld [vmem:[#allocation11 + $0x1d8] sm:$0xff]
        %v773 = vld [vmem:[#allocation11 + $0x1e0] sm:$0xff]
        %v774 = vld [vmem:[#allocation11 + $0x1e8] sm:$0xff]
        %v775 = vld [vmem:[#allocation11 + $0x1f0] sm:$0xff]
        %v776 = vld [vmem:[#allocation11 + $0x1f8] sm:$0xff]
        %777 = vmatprep.subr.mxu0 %v774
        %778 = vmatpush1.msra.mxu0 %v773
        %779 = vmatprep.subr.mxu0 %v770
        %780 = vmatpush1.msra.mxu0 %v769
        %781 = vmatprep.subr.mxu0 %v766
        %782 = vmatpush1.msra.mxu0 %v765
        %783 = vmatprep.subr.mxu0 %v762
        %784 = vmatpush1.msra.mxu0 %v761
        %785 = vmatprep.subr.mxu0 %v758
        %786 = vmatpush1.msra.mxu0 %v757
        %787 = vmatprep.subr.mxu0 %v754
        %788 = vmatpush1.msra.mxu0 %v753
        %789 = vmatprep.subr.mxu0 %v750
        %790 = vmatpush1.msra.mxu0 %v749
        %791 = vmatprep.subr.mxu0 %v746
        %792 = vmatpush1.msra.mxu0 %v745
        %793 = vmatprep.subr.mxu0 %v742
        %794 = vmatpush1.msra.mxu0 %v741
        %795 = vmatprep.subr.mxu0 %v738
        %796 = vmatpush1.msra.mxu0 %v737
        %797 = vmatprep.subr.mxu0 %v734
        %798 = vmatpush1.msra.mxu0 %v733
        %799 = vmatprep.subr.mxu0 %v730
        %800 = vmatpush1.msra.mxu0 %v729
        %801 = vmatprep.subr.mxu0 %v726
        %802 = vmatpush1.msra.mxu0 %v725
        %803 = vmatprep.subr.mxu0 %v722
        %804 = vmatpush1.msra.mxu0 %v721
        %805 = vmatprep.subr.mxu0 %v718
        %806 = vmatpush1.msra.mxu0 %v717
        %807 = vmatprep.subr.mxu0 %v714
        %808 = vmatpush1.msra.mxu0 %v713
        %809 = vmatprep.subr.mxu0 0.0
        %810 = vmatpush2.msra.mxu0 0.0
        %811 = vmatprep.subr.mxu0 0.0
        %812 = vmatpush2.msra.mxu0 0.0
        %813 = vmatprep.subr.mxu0 0.0
        %814 = vmatpush2.msra.mxu0 0.0
        %815 = vmatprep.subr.mxu0 0.0
        %816 = vmatpush2.msra.mxu0 0.0
        %817 = vmatprep.subr.mxu0 0.0
        %818 = vmatpush2.msra.mxu0 0.0
        %819 = vmatprep.subr.mxu0 0.0
        %820 = vmatpush2.msra.mxu0 0.0
        %821 = vmatprep.subr.mxu0 0.0
        %822 = vmatpush2.msra.mxu0 0.0
        %823 = vmatprep.subr.mxu0 0.0
        %824 = vmatpush2.msra.mxu0 0.0
        %825 = vmatprep.subr.mxu0 0.0
        %826 = vmatpush2.msra.mxu0 0.0
        %827 = vmatprep.subr.mxu0 0.0
        %828 = vmatpush2.msra.mxu0 0.0
        %829 = vmatprep.subr.mxu0 0.0
        %830 = vmatpush2.msra.mxu0 0.0
        %831 = vmatprep.subr.mxu0 0.0
        %832 = vmatpush2.msra.mxu0 0.0
        %833 = vmatprep.subr.mxu0 0.0
        %834 = vmatpush2.msra.mxu0 0.0
        %835 = vmatprep.subr.mxu0 0.0
        %836 = vmatpush2.msra.mxu0 0.0
        %837 = vmatprep.subr.mxu0 0.0
        %838 = vmatpush2.msra.mxu0 0.0
        %839 = vmatprep.subr.mxu0 0.0
        %840 = vmatpush2.msra.mxu0 0.0
        %841 = vmatprep.mubr.f32.mxu0 0.0
        %842 = vmatmul.mubr.f32.gmra.mxu0 %v647
        %v843 = vpop.f32.mrf.mxu0
        %v844 = vadd.f32 0.0, %v843
        %v845 = vpop.f32.mrf.mxu0
        %v846 = vadd.f32 0.0, %v845
        %847 = vdwg.mxu0
        %848 = vmatprep.subr.mxu0 %v776
        %849 = vmatpush1.msra.mxu0 %v775
        %850 = vmatprep.subr.mxu0 %v772
        %851 = vmatpush1.msra.mxu0 %v771
        %852 = vmatprep.subr.mxu0 %v768
        %853 = vmatpush1.msra.mxu0 %v767
        %854 = vmatprep.subr.mxu0 %v764
        %855 = vmatpush1.msra.mxu0 %v763
        %856 = vmatprep.subr.mxu0 %v760
        %857 = vmatpush1.msra.mxu0 %v759
        %858 = vmatprep.subr.mxu0 %v756
        %859 = vmatpush1.msra.mxu0 %v755
        %860 = vmatprep.subr.mxu0 %v752
        %861 = vmatpush1.msra.mxu0 %v751
        %862 = vmatprep.subr.mxu0 %v748
        %863 = vmatpush1.msra.mxu0 %v747
        %864 = vmatprep.subr.mxu0 %v744
        %865 = vmatpush1.msra.mxu0 %v743
        %866 = vmatprep.subr.mxu0 %v740
        %867 = vmatpush1.msra.mxu0 %v739
        %868 = vmatprep.subr.mxu0 %v736
        %869 = vmatpush1.msra.mxu0 %v735
        %870 = vmatprep.subr.mxu0 %v732
        %871 = vmatpush1.msra.mxu0 %v731
        %872 = vmatprep.subr.mxu0 %v728
        %873 = vmatpush1.msra.mxu0 %v727
        %874 = vmatprep.subr.mxu0 %v724
        %875 = vmatpush1.msra.mxu0 %v723
        %876 = vmatprep.subr.mxu0 %v720
        %877 = vmatpush1.msra.mxu0 %v719
        %878 = vmatprep.subr.mxu0 %v716
        %879 = vmatpush1.msra.mxu0 %v715
        %880 = vmatprep.subr.mxu0 0.0
        %881 = vmatpush2.msra.mxu0 0.0
        %882 = vmatprep.subr.mxu0 0.0
        %883 = vmatpush2.msra.mxu0 0.0
        %884 = vmatprep.subr.mxu0 0.0
        %885 = vmatpush2.msra.mxu0 0.0
        %886 = vmatprep.subr.mxu0 0.0
        %887 = vmatpush2.msra.mxu0 0.0
        %888 = vmatprep.subr.mxu0 0.0
        %889 = vmatpush2.msra.mxu0 0.0
        %890 = vmatprep.subr.mxu0 0.0
        %891 = vmatpush2.msra.mxu0 0.0
        %892 = vmatprep.subr.mxu0 0.0
        %893 = vmatpush2.msra.mxu0 0.0
        %894 = vmatprep.subr.mxu0 0.0
        %895 = vmatpush2.msra.mxu0 0.0
        %896 = vmatprep.subr.mxu0 0.0
        %897 = vmatpush2.msra.mxu0 0.0
        %898 = vmatprep.subr.mxu0 0.0
        %899 = vmatpush2.msra.mxu0 0.0
        %900 = vmatprep.subr.mxu0 0.0
        %901 = vmatpush2.msra.mxu0 0.0
        %902 = vmatprep.subr.mxu0 0.0
        %903 = vmatpush2.msra.mxu0 0.0
        %904 = vmatprep.subr.mxu0 0.0
        %905 = vmatpush2.msra.mxu0 0.0
        %906 = vmatprep.subr.mxu0 0.0
        %907 = vmatpush2.msra.mxu0 0.0
        %908 = vmatprep.subr.mxu0 0.0
        %909 = vmatpush2.msra.mxu0 0.0
        %910 = vmatprep.subr.mxu0 0.0
        %911 = vmatpush2.msra.mxu0 0.0
        %912 = vmatprep.mubr.f32.mxu0 0.0
        %913 = vmatmul.mubr.f32.gmra.mxu0 %v647
        %v914 = vpop.f32.mrf.mxu0
        %v915 = vadd.f32 0.0, %v914
        %v916 = vpop.f32.mrf.mxu0
        %v917 = vadd.f32 0.0, %v916
        %918 = vdwg.mxu0
        %919 = vmatprep.subr.mxu0 %v710
        %920 = vmatpush1.msra.mxu0 %v709
        %921 = vmatprep.subr.mxu0 %v706
        %922 = vmatpush1.msra.mxu0 %v705
        %923 = vmatprep.subr.mxu0 %v702
        %924 = vmatpush1.msra.mxu0 %v701
        %925 = vmatprep.subr.mxu0 %v698
        %926 = vmatpush1.msra.mxu0 %v697
        %927 = vmatprep.subr.mxu0 %v694
        %928 = vmatpush1.msra.mxu0 %v693
        %929 = vmatprep.subr.mxu0 %v690
        %930 = vmatpush1.msra.mxu0 %v689
        %931 = vmatprep.subr.mxu0 %v686
        %932 = vmatpush1.msra.mxu0 %v685
        %933 = vmatprep.subr.mxu0 %v682
        %934 = vmatpush1.msra.mxu0 %v681
        %935 = vmatprep.subr.mxu0 %v678
        %936 = vmatpush1.msra.mxu0 %v677
        %937 = vmatprep.subr.mxu0 %v674
        %938 = vmatpush1.msra.mxu0 %v673
        %939 = vmatprep.subr.mxu0 %v670
        %940 = vmatpush1.msra.mxu0 %v669
        %941 = vmatprep.subr.mxu0 %v666
        %942 = vmatpush1.msra.mxu0 %v665
        %943 = vmatprep.subr.mxu0 %v662
        %944 = vmatpush1.msra.mxu0 %v661
        %945 = vmatprep.subr.mxu0 %v658
        %946 = vmatpush1.msra.mxu0 %v657
        %947 = vmatprep.subr.mxu0 %v654
        %948 = vmatpush1.msra.mxu0 %v653
        %949 = vmatprep.subr.mxu0 %v650
        %950 = vmatpush1.msra.mxu0 %v649
        %951 = vmatprep.subr.mxu0 0.0
        %952 = vmatpush2.msra.mxu0 0.0
        %953 = vmatprep.subr.mxu0 0.0
        %954 = vmatpush2.msra.mxu0 0.0
        %955 = vmatprep.subr.mxu0 0.0
        %956 = vmatpush2.msra.mxu0 0.0
        %957 = vmatprep.subr.mxu0 0.0
        %958 = vmatpush2.msra.mxu0 0.0
        %959 = vmatprep.subr.mxu0 0.0
        %960 = vmatpush2.msra.mxu0 0.0
        %961 = vmatprep.subr.mxu0 0.0
        %962 = vmatpush2.msra.mxu0 0.0
        %963 = vmatprep.subr.mxu0 0.0
        %964 = vmatpush2.msra.mxu0 0.0
        %965 = vmatprep.subr.mxu0 0.0
        %966 = vmatpush2.msra.mxu0 0.0
        %967 = vmatprep.subr.mxu0 0.0
        %968 = vmatpush2.msra.mxu0 0.0
        %969 = vmatprep.subr.mxu0 0.0
        %970 = vmatpush2.msra.mxu0 0.0
        %971 = vmatprep.subr.mxu0 0.0
        %972 = vmatpush2.msra.mxu0 0.0
        %973 = vmatprep.subr.mxu0 0.0
        %974 = vmatpush2.msra.mxu0 0.0
        %975 = vmatprep.subr.mxu0 0.0
        %976 = vmatpush2.msra.mxu0 0.0
        %977 = vmatprep.subr.mxu0 0.0
        %978 = vmatpush2.msra.mxu0 0.0
        %979 = vmatprep.subr.mxu0 0.0
        %980 = vmatpush2.msra.mxu0 0.0
        %981 = vmatprep.subr.mxu0 0.0
        %982 = vmatpush2.msra.mxu0 0.0
        %983 = vmatprep.mubr.f32.mxu0 0.0
        %984 = vmatmul.mubr.f32.gmra.mxu0 %v646
        %v985 = vpop.f32.mrf.mxu0
        %v986 = vadd.f32 %v844, %v985
        %v987 = vpop.f32.mrf.mxu0
        %v988 = vadd.f32 %v846, %v987
        %989 = vdwg.mxu0
        %990 = vmatprep.subr.mxu0 %v712
        %991 = vmatpush1.msra.mxu0 %v711
        %992 = vmatprep.subr.mxu0 %v708
        %993 = vmatpush1.msra.mxu0 %v707
        %994 = vmatprep.subr.mxu0 %v704
        %995 = vmatpush1.msra.mxu0 %v703
        %996 = vmatprep.subr.mxu0 %v700
        %997 = vmatpush1.msra.mxu0 %v699
        %998 = vmatprep.subr.mxu0 %v696
        %999 = vmatpush1.msra.mxu0 %v695
        %1000 = vmatprep.subr.mxu0 %v692
        %1001 = vmatpush1.msra.mxu0 %v691
        %1002 = vmatprep.subr.mxu0 %v688
        %1003 = vmatpush1.msra.mxu0 %v687
        %1004 = vmatprep.subr.mxu0 %v684
        %1005 = vmatpush1.msra.mxu0 %v683
        %1006 = vmatprep.subr.mxu0 %v680
        %1007 = vmatpush1.msra.mxu0 %v679
        %1008 = vmatprep.subr.mxu0 %v676
        %1009 = vmatpush1.msra.mxu0 %v675
        %1010 = vmatprep.subr.mxu0 %v672
        %1011 = vmatpush1.msra.mxu0 %v671
        %1012 = vmatprep.subr.mxu0 %v668
        %1013 = vmatpush1.msra.mxu0 %v667
        %1014 = vmatprep.subr.mxu0 %v664
        %1015 = vmatpush1.msra.mxu0 %v663
        %1016 = vmatprep.subr.mxu0 %v660
        %1017 = vmatpush1.msra.mxu0 %v659
        %1018 = vmatprep.subr.mxu0 %v656
        %1019 = vmatpush1.msra.mxu0 %v655
        %1020 = vmatprep.subr.mxu0 %v652
        %1021 = vmatpush1.msra.mxu0 %v651
        %1022 = vmatprep.subr.mxu0 0.0
        %1023 = vmatpush2.msra.mxu0 0.0
        %1024 = vmatprep.subr.mxu0 0.0
        %1025 = vmatpush2.msra.mxu0 0.0
        %1026 = vmatprep.subr.mxu0 0.0
        %1027 = vmatpush2.msra.mxu0 0.0
        %1028 = vmatprep.subr.mxu0 0.0
        %1029 = vmatpush2.msra.mxu0 0.0
        %1030 = vmatprep.subr.mxu0 0.0
        %1031 = vmatpush2.msra.mxu0 0.0
        %1032 = vmatprep.subr.mxu0 0.0
        %1033 = vmatpush2.msra.mxu0 0.0
        %1034 = vmatprep.subr.mxu0 0.0
        %1035 = vmatpush2.msra.mxu0 0.0
        %1036 = vmatprep.subr.mxu0 0.0
        %1037 = vmatpush2.msra.mxu0 0.0
        %1038 = vmatprep.subr.mxu0 0.0
        %1039 = vmatpush2.msra.mxu0 0.0
        %1040 = vmatprep.subr.mxu0 0.0
        %1041 = vmatpush2.msra.mxu0 0.0
        %1042 = vmatprep.subr.mxu0 0.0
        %1043 = vmatpush2.msra.mxu0 0.0
        %1044 = vmatprep.subr.mxu0 0.0
        %1045 = vmatpush2.msra.mxu0 0.0
        %1046 = vmatprep.subr.mxu0 0.0
        %1047 = vmatpush2.msra.mxu0 0.0
        %1048 = vmatprep.subr.mxu0 0.0
        %1049 = vmatpush2.msra.mxu0 0.0
        %1050 = vmatprep.subr.mxu0 0.0
        %1051 = vmatpush2.msra.mxu0 0.0
        %1052 = vmatprep.subr.mxu0 0.0
        %1053 = vmatpush2.msra.mxu0 0.0
        %1054 = vmatprep.mubr.f32.mxu0 0.0
        %1055 = vmatmul.mubr.f32.gmra.mxu0 %v646
        %v1056 = vpop.f32.mrf.mxu0
        %v1057 = vadd.f32 %v915, %v1056
        %v1058 = vpop.f32.mrf.mxu0
        %v1059 = vadd.f32 %v917, %v1058
        %1060 = vdwg.mxu0
        %v1061 = vld [vmem:[%s5] sm:$0xf]
        %v1063 = vlaneseq
        %v1064 = vshrl.u32 %v1063, 7
        %v1065 = vsub.s32 0, %v1064
        %v1066 = vrot.slane %v1061, %v1065
        %v1067 = vlaneseq
        %v1068 = vshrl.u32 %v1067, 7
        %v1069 = vsub.s32 1, %v1068
        %v1070 = vrot.slane %v1061, %v1069
        %v1071 = vlaneseq
        %v1072 = vshrl.u32 %v1071, 7
        %v1073 = vsub.s32 2, %v1072
        %v1074 = vrot.slane %v1061, %v1073
        %v1075 = vlaneseq
        %v1076 = vshrl.u32 %v1075, 7
        %v1077 = vsub.s32 3, %v1076
        %v1078 = vrot.slane %v1061, %v1077
        %v1083 = vadd.f32 %v986, %v1066
        %v1084 = vadd.f32 %v988, %v1070
        %v1085 = vadd.f32 %v1057, %v1074
        %v1086 = vadd.f32 %v1059, %v1078
        %v1087 = vsub.f32 0.0, %v1083
        %v1088 = vmul.f32 %v1087, 1.442695
        %v1089 = vpow.pop %v1088
        %v1090 = vadd.f32 %v1089, 1.0
        %v1091 = vrcp.pop %v1090
        %v1092 = vmul.f32 1.0, %v1091
        %v1093 = vsub.f32 0.0, %v1084
        %v1094 = vmul.f32 %v1093, 1.442695
        %v1095 = vpow.pop %v1094
        %v1096 = vadd.f32 %v1095, 1.0
        %v1097 = vrcp.pop %v1096
        %v1098 = vmul.f32 1.0, %v1097
        %v1099 = vtanh.pop %v1085
        %v1100 = vsub.f32 0.0, %v1086
        %v1101 = vmul.f32 %v1100, 1.442695
        %v1102 = vpow.pop %v1101
        %v1103 = vadd.f32 %v1102, 1.0
        %v1104 = vrcp.pop %v1103
        %v1105 = vmul.f32 1.0, %v1104
        %v1106 = vmul.f32 %v1098, %v648
        %v1107 = vmul.f32 %v1092, %v1099
        %v1108 = vadd.f32 %v1106, %v1107
        %v1109 = vtanh.pop %v1108
        %v1110 = vmul.f32 %v1105, %v1109
        %1111 = vst [vmem:[#allocation2] sm:$0xff] %v1110
        %1112 = vst [vmem:[#allocation3] sm:$0xff] %v1108
        %v1113 = vld [vmem:[#allocation4] sm:$0xff]
        %v1114 = vld [vmem:[#allocation5] sm:$0xff]
        %v1115 = vld [vmem:[#allocation12] sm:$0xff]
        %v1116 = vld [vmem:[#allocation12 + $0x8] sm:$0xff]
        %v1117 = vld [vmem:[#allocation12 + $0x10] sm:$0xff]
        %v1118 = vld [vmem:[#allocation12 + $0x18] sm:$0xff]
        %v1119 = vld [vmem:[#allocation12 + $0x20] sm:$0xff]
        %v1120 = vld [vmem:[#allocation12 + $0x28] sm:$0xff]
        %v1121 = vld [vmem:[#allocation12 + $0x30] sm:$0xff]
        %v1122 = vld [vmem:[#allocation12 + $0x38] sm:$0xff]
        %v1123 = vld [vmem:[#allocation12 + $0x40] sm:$0xff]
        %v1124 = vld [vmem:[#allocation12 + $0x48] sm:$0xff]
        %v1125 = vld [vmem:[#allocation12 + $0x50] sm:$0xff]
        %v1126 = vld [vmem:[#allocation12 + $0x58] sm:$0xff]
        %v1127 = vld [vmem:[#allocation12 + $0x60] sm:$0xff]
        %v1128 = vld [vmem:[#allocation12 + $0x68] sm:$0xff]
        %v1129 = vld [vmem:[#allocation12 + $0x70] sm:$0xff]
        %v1130 = vld [vmem:[#allocation12 + $0x78] sm:$0xff]
        %v1131 = vld [vmem:[#allocation12 + $0x80] sm:$0xff]
        %v1132 = vld [vmem:[#allocation12 + $0x88] sm:$0xff]
        %v1133 = vld [vmem:[#allocation12 + $0x90] sm:$0xff]
        %v1134 = vld [vmem:[#allocation12 + $0x98] sm:$0xff]
        %v1135 = vld [vmem:[#allocation12 + $0xa0] sm:$0xff]
        %v1136 = vld [vmem:[#allocation12 + $0xa8] sm:$0xff]
        %v1137 = vld [vmem:[#allocation12 + $0xb0] sm:$0xff]
        %v1138 = vld [vmem:[#allocation12 + $0xb8] sm:$0xff]
        %v1139 = vld [vmem:[#allocation12 + $0xc0] sm:$0xff]
        %v1140 = vld [vmem:[#allocation12 + $0xc8] sm:$0xff]
        %v1141 = vld [vmem:[#allocation12 + $0xd0] sm:$0xff]
        %v1142 = vld [vmem:[#allocation12 + $0xd8] sm:$0xff]
        %v1143 = vld [vmem:[#allocation12 + $0xe0] sm:$0xff]
        %v1144 = vld [vmem:[#allocation12 + $0xe8] sm:$0xff]
        %v1145 = vld [vmem:[#allocation12 + $0xf0] sm:$0xff]
        %v1146 = vld [vmem:[#allocation12 + $0xf8] sm:$0xff]
        %v1147 = vld [vmem:[#allocation12 + $0x100] sm:$0xff]
        %v1148 = vld [vmem:[#allocation12 + $0x108] sm:$0xff]
        %v1149 = vld [vmem:[#allocation12 + $0x110] sm:$0xff]
        %v1150 = vld [vmem:[#allocation12 + $0x118] sm:$0xff]
        %v1151 = vld [vmem:[#allocation12 + $0x120] sm:$0xff]
        %v1152 = vld [vmem:[#allocation12 + $0x128] sm:$0xff]
        %v1153 = vld [vmem:[#allocation12 + $0x130] sm:$0xff]
        %v1154 = vld [vmem:[#allocation12 + $0x138] sm:$0xff]
        %v1155 = vld [vmem:[#allocation12 + $0x140] sm:$0xff]
        %v1156 = vld [vmem:[#allocation12 + $0x148] sm:$0xff]
        %v1157 = vld [vmem:[#allocation12 + $0x150] sm:$0xff]
        %v1158 = vld [vmem:[#allocation12 + $0x158] sm:$0xff]
        %v1159 = vld [vmem:[#allocation12 + $0x160] sm:$0xff]
        %v1160 = vld [vmem:[#allocation12 + $0x168] sm:$0xff]
        %v1161 = vld [vmem:[#allocation12 + $0x170] sm:$0xff]
        %v1162 = vld [vmem:[#allocation12 + $0x178] sm:$0xff]
        %v1163 = vld [vmem:[#allocation12 + $0x180] sm:$0xff]
        %v1164 = vld [vmem:[#allocation12 + $0x188] sm:$0xff]
        %v1165 = vld [vmem:[#allocation12 + $0x190] sm:$0xff]
        %v1166 = vld [vmem:[#allocation12 + $0x198] sm:$0xff]
        %v1167 = vld [vmem:[#allocation12 + $0x1a0] sm:$0xff]
        %v1168 = vld [vmem:[#allocation12 + $0x1a8] sm:$0xff]
        %v1169 = vld [vmem:[#allocation12 + $0x1b0] sm:$0xff]
        %v1170 = vld [vmem:[#allocation12 + $0x1b8] sm:$0xff]
        %v1171 = vld [vmem:[#allocation12 + $0x1c0] sm:$0xff]
        %v1172 = vld [vmem:[#allocation12 + $0x1c8] sm:$0xff]
        %v1173 = vld [vmem:[#allocation12 + $0x1d0] sm:$0xff]
        %v1174 = vld [vmem:[#allocation12 + $0x1d8] sm:$0xff]
        %v1175 = vld [vmem:[#allocation12 + $0x1e0] sm:$0xff]
        %v1176 = vld [vmem:[#allocation12 + $0x1e8] sm:$0xff]
        %v1177 = vld [vmem:[#allocation12 + $0x1f0] sm:$0xff]
        %v1178 = vld [vmem:[#allocation12 + $0x1f8] sm:$0xff]
        %v1179 = vld [vmem:[#allocation14] sm:$0xff]
        %v1180 = vld [vmem:[#allocation14 + $0x8] sm:$0xff]
        %v1181 = vld [vmem:[#allocation14 + $0x10] sm:$0xff]
        %v1182 = vld [vmem:[#allocation14 + $0x18] sm:$0xff]
        %v1183 = vld [vmem:[#allocation14 + $0x20] sm:$0xff]
        %v1184 = vld [vmem:[#allocation14 + $0x28] sm:$0xff]
        %v1185 = vld [vmem:[#allocation14 + $0x30] sm:$0xff]
        %v1186 = vld [vmem:[#allocation14 + $0x38] sm:$0xff]
        %v1187 = vld [vmem:[#allocation14 + $0x40] sm:$0xff]
        %v1188 = vld [vmem:[#allocation14 + $0x48] sm:$0xff]
        %v1189 = vld [vmem:[#allocation14 + $0x50] sm:$0xff]
        %v1190 = vld [vmem:[#allocation14 + $0x58] sm:$0xff]
        %v1191 = vld [vmem:[#allocation14 + $0x60] sm:$0xff]
        %v1192 = vld [vmem:[#allocation14 + $0x68] sm:$0xff]
        %v1193 = vld [vmem:[#allocation14 + $0x70] sm:$0xff]
        %v1194 = vld [vmem:[#allocation14 + $0x78] sm:$0xff]
        %v1195 = vld [vmem:[#allocation14 + $0x80] sm:$0xff]
        %v1196 = vld [vmem:[#allocation14 + $0x88] sm:$0xff]
        %v1197 = vld [vmem:[#allocation14 + $0x90] sm:$0xff]
        %v1198 = vld [vmem:[#allocation14 + $0x98] sm:$0xff]
        %v1199 = vld [vmem:[#allocation14 + $0xa0] sm:$0xff]
        %v1200 = vld [vmem:[#allocation14 + $0xa8] sm:$0xff]
        %v1201 = vld [vmem:[#allocation14 + $0xb0] sm:$0xff]
        %v1202 = vld [vmem:[#allocation14 + $0xb8] sm:$0xff]
        %v1203 = vld [vmem:[#allocation14 + $0xc0] sm:$0xff]
        %v1204 = vld [vmem:[#allocation14 + $0xc8] sm:$0xff]
        %v1205 = vld [vmem:[#allocation14 + $0xd0] sm:$0xff]
        %v1206 = vld [vmem:[#allocation14 + $0xd8] sm:$0xff]
        %v1207 = vld [vmem:[#allocation14 + $0xe0] sm:$0xff]
        %v1208 = vld [vmem:[#allocation14 + $0xe8] sm:$0xff]
        %v1209 = vld [vmem:[#allocation14 + $0xf0] sm:$0xff]
        %v1210 = vld [vmem:[#allocation14 + $0xf8] sm:$0xff]
        %v1211 = vld [vmem:[#allocation14 + $0x100] sm:$0xff]
        %v1212 = vld [vmem:[#allocation14 + $0x108] sm:$0xff]
        %v1213 = vld [vmem:[#allocation14 + $0x110] sm:$0xff]
        %v1214 = vld [vmem:[#allocation14 + $0x118] sm:$0xff]
        %v1215 = vld [vmem:[#allocation14 + $0x120] sm:$0xff]
        %v1216 = vld [vmem:[#allocation14 + $0x128] sm:$0xff]
        %v1217 = vld [vmem:[#allocation14 + $0x130] sm:$0xff]
        %v1218 = vld [vmem:[#allocation14 + $0x138] sm:$0xff]
        %v1219 = vld [vmem:[#allocation14 + $0x140] sm:$0xff]
        %v1220 = vld [vmem:[#allocation14 + $0x148] sm:$0xff]
        %v1221 = vld [vmem:[#allocation14 + $0x150] sm:$0xff]
        %v1222 = vld [vmem:[#allocation14 + $0x158] sm:$0xff]
        %v1223 = vld [vmem:[#allocation14 + $0x160] sm:$0xff]
        %v1224 = vld [vmem:[#allocation14 + $0x168] sm:$0xff]
        %v1225 = vld [vmem:[#allocation14 + $0x170] sm:$0xff]
        %v1226 = vld [vmem:[#allocation14 + $0x178] sm:$0xff]
        %v1227 = vld [vmem:[#allocation14 + $0x180] sm:$0xff]
        %v1228 = vld [vmem:[#allocation14 + $0x188] sm:$0xff]
        %v1229 = vld [vmem:[#allocation14 + $0x190] sm:$0xff]
        %v1230 = vld [vmem:[#allocation14 + $0x198] sm:$0xff]
        %v1231 = vld [vmem:[#allocation14 + $0x1a0] sm:$0xff]
        %v1232 = vld [vmem:[#allocation14 + $0x1a8] sm:$0xff]
        %v1233 = vld [vmem:[#allocation14 + $0x1b0] sm:$0xff]
        %v1234 = vld [vmem:[#allocation14 + $0x1b8] sm:$0xff]
        %v1235 = vld [vmem:[#allocation14 + $0x1c0] sm:$0xff]
        %v1236 = vld [vmem:[#allocation14 + $0x1c8] sm:$0xff]
        %v1237 = vld [vmem:[#allocation14 + $0x1d0] sm:$0xff]
        %v1238 = vld [vmem:[#allocation14 + $0x1d8] sm:$0xff]
        %v1239 = vld [vmem:[#allocation14 + $0x1e0] sm:$0xff]
        %v1240 = vld [vmem:[#allocation14 + $0x1e8] sm:$0xff]
        %v1241 = vld [vmem:[#allocation14 + $0x1f0] sm:$0xff]
        %v1242 = vld [vmem:[#allocation14 + $0x1f8] sm:$0xff]
        %1243 = vmatprep.subr.mxu0 %v1240
        %1244 = vmatpush1.msra.mxu0 %v1239
        %1245 = vmatprep.subr.mxu0 %v1236
        %1246 = vmatpush1.msra.mxu0 %v1235
        %1247 = vmatprep.subr.mxu0 %v1232
        %1248 = vmatpush1.msra.mxu0 %v1231
        %1249 = vmatprep.subr.mxu0 %v1228
        %1250 = vmatpush1.msra.mxu0 %v1227
        %1251 = vmatprep.subr.mxu0 %v1224
        %1252 = vmatpush1.msra.mxu0 %v1223
        %1253 = vmatprep.subr.mxu0 %v1220
        %1254 = vmatpush1.msra.mxu0 %v1219
        %1255 = vmatprep.subr.mxu0 %v1216
        %1256 = vmatpush1.msra.mxu0 %v1215
        %1257 = vmatprep.subr.mxu0 %v1212
        %1258 = vmatpush1.msra.mxu0 %v1211
        %1259 = vmatprep.subr.mxu0 %v1208
        %1260 = vmatpush1.msra.mxu0 %v1207
        %1261 = vmatprep.subr.mxu0 %v1204
        %1262 = vmatpush1.msra.mxu0 %v1203
        %1263 = vmatprep.subr.mxu0 %v1200
        %1264 = vmatpush1.msra.mxu0 %v1199
        %1265 = vmatprep.subr.mxu0 %v1196
        %1266 = vmatpush1.msra.mxu0 %v1195
        %1267 = vmatprep.subr.mxu0 %v1192
        %1268 = vmatpush1.msra.mxu0 %v1191
        %1269 = vmatprep.subr.mxu0 %v1188
        %1270 = vmatpush1.msra.mxu0 %v1187
        %1271 = vmatprep.subr.mxu0 %v1184
        %1272 = vmatpush1.msra.mxu0 %v1183
        %1273 = vmatprep.subr.mxu0 %v1180
        %1274 = vmatpush1.msra.mxu0 %v1179
        %1275 = vmatprep.subr.mxu0 0.0
        %1276 = vmatpush2.msra.mxu0 0.0
        %1277 = vmatprep.subr.mxu0 0.0
        %1278 = vmatpush2.msra.mxu0 0.0
        %1279 = vmatprep.subr.mxu0 0.0
        %1280 = vmatpush2.msra.mxu0 0.0
        %1281 = vmatprep.subr.mxu0 0.0
        %1282 = vmatpush2.msra.mxu0 0.0
        %1283 = vmatprep.subr.mxu0 0.0
        %1284 = vmatpush2.msra.mxu0 0.0
        %1285 = vmatprep.subr.mxu0 0.0
        %1286 = vmatpush2.msra.mxu0 0.0
        %1287 = vmatprep.subr.mxu0 0.0
        %1288 = vmatpush2.msra.mxu0 0.0
        %1289 = vmatprep.subr.mxu0 0.0
        %1290 = vmatpush2.msra.mxu0 0.0
        %1291 = vmatprep.subr.mxu0 0.0
        %1292 = vmatpush2.msra.mxu0 0.0
        %1293 = vmatprep.subr.mxu0 0.0
        %1294 = vmatpush2.msra.mxu0 0.0
        %1295 = vmatprep.subr.mxu0 0.0
        %1296 = vmatpush2.msra.mxu0 0.0
        %1297 = vmatprep.subr.mxu0 0.0
        %1298 = vmatpush2.msra.mxu0 0.0
        %1299 = vmatprep.subr.mxu0 0.0
        %1300 = vmatpush2.msra.mxu0 0.0
        %1301 = vmatprep.subr.mxu0 0.0
        %1302 = vmatpush2.msra.mxu0 0.0
        %1303 = vmatprep.subr.mxu0 0.0
        %1304 = vmatpush2.msra.mxu0 0.0
        %1305 = vmatprep.subr.mxu0 0.0
        %1306 = vmatpush2.msra.mxu0 0.0
        %1307 = vmatprep.mubr.f32.mxu0 0.0
        %1308 = vmatmul.mubr.f32.gmra.mxu0 %v1113
        %v1309 = vpop.f32.mrf.mxu0
        %v1310 = vadd.f32 0.0, %v1309
        %v1311 = vpop.f32.mrf.mxu0
        %v1312 = vadd.f32 0.0, %v1311
        %1313 = vdwg.mxu0
        %1314 = vmatprep.subr.mxu0 %v1242
        %1315 = vmatpush1.msra.mxu0 %v1241
        %1316 = vmatprep.subr.mxu0 %v1238
        %1317 = vmatpush1.msra.mxu0 %v1237
        %1318 = vmatprep.subr.mxu0 %v1234
        %1319 = vmatpush1.msra.mxu0 %v1233
        %1320 = vmatprep.subr.mxu0 %v1230
        %1321 = vmatpush1.msra.mxu0 %v1229
        %1322 = vmatprep.subr.mxu0 %v1226
        %1323 = vmatpush1.msra.mxu0 %v1225
        %1324 = vmatprep.subr.mxu0 %v1222
        %1325 = vmatpush1.msra.mxu0 %v1221
        %1326 = vmatprep.subr.mxu0 %v1218
        %1327 = vmatpush1.msra.mxu0 %v1217
        %1328 = vmatprep.subr.mxu0 %v1214
        %1329 = vmatpush1.msra.mxu0 %v1213
        %1330 = vmatprep.subr.mxu0 %v1210
        %1331 = vmatpush1.msra.mxu0 %v1209
        %1332 = vmatprep.subr.mxu0 %v1206
        %1333 = vmatpush1.msra.mxu0 %v1205
        %1334 = vmatprep.subr.mxu0 %v1202
        %1335 = vmatpush1.msra.mxu0 %v1201
        %1336 = vmatprep.subr.mxu0 %v1198
        %1337 = vmatpush1.msra.mxu0 %v1197
        %1338 = vmatprep.subr.mxu0 %v1194
        %1339 = vmatpush1.msra.mxu0 %v1193
        %1340 = vmatprep.subr.mxu0 %v1190
        %1341 = vmatpush1.msra.mxu0 %v1189
        %1342 = vmatprep.subr.mxu0 %v1186
        %1343 = vmatpush1.msra.mxu0 %v1185
        %1344 = vmatprep.subr.mxu0 %v1182
        %1345 = vmatpush1.msra.mxu0 %v1181
        %1346 = vmatprep.subr.mxu0 0.0
        %1347 = vmatpush2.msra.mxu0 0.0
        %1348 = vmatprep.subr.mxu0 0.0
        %1349 = vmatpush2.msra.mxu0 0.0
        %1350 = vmatprep.subr.mxu0 0.0
        %1351 = vmatpush2.msra.mxu0 0.0
        %1352 = vmatprep.subr.mxu0 0.0
        %1353 = vmatpush2.msra.mxu0 0.0
        %1354 = vmatprep.subr.mxu0 0.0
        %1355 = vmatpush2.msra.mxu0 0.0
        %1356 = vmatprep.subr.mxu0 0.0
        %1357 = vmatpush2.msra.mxu0 0.0
        %1358 = vmatprep.subr.mxu0 0.0
        %1359 = vmatpush2.msra.mxu0 0.0
        %1360 = vmatprep.subr.mxu0 0.0
        %1361 = vmatpush2.msra.mxu0 0.0
        %1362 = vmatprep.subr.mxu0 0.0
        %1363 = vmatpush2.msra.mxu0 0.0
        %1364 = vmatprep.subr.mxu0 0.0
        %1365 = vmatpush2.msra.mxu0 0.0
        %1366 = vmatprep.subr.mxu0 0.0
        %1367 = vmatpush2.msra.mxu0 0.0
        %1368 = vmatprep.subr.mxu0 0.0
        %1369 = vmatpush2.msra.mxu0 0.0
        %1370 = vmatprep.subr.mxu0 0.0
        %1371 = vmatpush2.msra.mxu0 0.0
        %1372 = vmatprep.subr.mxu0 0.0
        %1373 = vmatpush2.msra.mxu0 0.0
        %1374 = vmatprep.subr.mxu0 0.0
        %1375 = vmatpush2.msra.mxu0 0.0
        %1376 = vmatprep.subr.mxu0 0.0
        %1377 = vmatpush2.msra.mxu0 0.0
        %1378 = vmatprep.mubr.f32.mxu0 0.0
        %1379 = vmatmul.mubr.f32.gmra.mxu0 %v1113
        %v1380 = vpop.f32.mrf.mxu0
        %v1381 = vadd.f32 0.0, %v1380
        %v1382 = vpop.f32.mrf.mxu0
        %v1383 = vadd.f32 0.0, %v1382
        %1384 = vdwg.mxu0
        %1385 = vmatprep.subr.mxu0 %v1176
        %1386 = vmatpush1.msra.mxu0 %v1175
        %1387 = vmatprep.subr.mxu0 %v1172
        %1388 = vmatpush1.msra.mxu0 %v1171
        %1389 = vmatprep.subr.mxu0 %v1168
        %1390 = vmatpush1.msra.mxu0 %v1167
        %1391 = vmatprep.subr.mxu0 %v1164
        %1392 = vmatpush1.msra.mxu0 %v1163
        %1393 = vmatprep.subr.mxu0 %v1160
        %1394 = vmatpush1.msra.mxu0 %v1159
        %1395 = vmatprep.subr.mxu0 %v1156
        %1396 = vmatpush1.msra.mxu0 %v1155
        %1397 = vmatprep.subr.mxu0 %v1152
        %1398 = vmatpush1.msra.mxu0 %v1151
        %1399 = vmatprep.subr.mxu0 %v1148
        %1400 = vmatpush1.msra.mxu0 %v1147
        %1401 = vmatprep.subr.mxu0 %v1144
        %1402 = vmatpush1.msra.mxu0 %v1143
        %1403 = vmatprep.subr.mxu0 %v1140
        %1404 = vmatpush1.msra.mxu0 %v1139
        %1405 = vmatprep.subr.mxu0 %v1136
        %1406 = vmatpush1.msra.mxu0 %v1135
        %1407 = vmatprep.subr.mxu0 %v1132
        %1408 = vmatpush1.msra.mxu0 %v1131
        %1409 = vmatprep.subr.mxu0 %v1128
        %1410 = vmatpush1.msra.mxu0 %v1127
        %1411 = vmatprep.subr.mxu0 %v1124
        %1412 = vmatpush1.msra.mxu0 %v1123
        %1413 = vmatprep.subr.mxu0 %v1120
        %1414 = vmatpush1.msra.mxu0 %v1119
        %1415 = vmatprep.subr.mxu0 %v1116
        %1416 = vmatpush1.msra.mxu0 %v1115
        %1417 = vmatprep.subr.mxu0 0.0
        %1418 = vmatpush2.msra.mxu0 0.0
        %1419 = vmatprep.subr.mxu0 0.0
        %1420 = vmatpush2.msra.mxu0 0.0
        %1421 = vmatprep.subr.mxu0 0.0
        %1422 = vmatpush2.msra.mxu0 0.0
        %1423 = vmatprep.subr.mxu0 0.0
        %1424 = vmatpush2.msra.mxu0 0.0
        %1425 = vmatprep.subr.mxu0 0.0
        %1426 = vmatpush2.msra.mxu0 0.0
        %1427 = vmatprep.subr.mxu0 0.0
        %1428 = vmatpush2.msra.mxu0 0.0
        %1429 = vmatprep.subr.mxu0 0.0
        %1430 = vmatpush2.msra.mxu0 0.0
        %1431 = vmatprep.subr.mxu0 0.0
        %1432 = vmatpush2.msra.mxu0 0.0
        %1433 = vmatprep.subr.mxu0 0.0
        %1434 = vmatpush2.msra.mxu0 0.0
        %1435 = vmatprep.subr.mxu0 0.0
        %1436 = vmatpush2.msra.mxu0 0.0
        %1437 = vmatprep.subr.mxu0 0.0
        %1438 = vmatpush2.msra.mxu0 0.0
        %1439 = vmatprep.subr.mxu0 0.0
        %1440 = vmatpush2.msra.mxu0 0.0
        %1441 = vmatprep.subr.mxu0 0.0
        %1442 = vmatpush2.msra.mxu0 0.0
        %1443 = vmatprep.subr.mxu0 0.0
        %1444 = vmatpush2.msra.mxu0 0.0
        %1445 = vmatprep.subr.mxu0 0.0
        %1446 = vmatpush2.msra.mxu0 0.0
        %1447 = vmatprep.subr.mxu0 0.0
        %1448 = vmatpush2.msra.mxu0 0.0
        %1449 = vmatprep.mubr.f32.mxu0 0.0
        %1450 = vmatmul.mubr.f32.gmra.mxu0 %v1110
        %v1451 = vpop.f32.mrf.mxu0
        %v1452 = vadd.f32 %v1310, %v1451
        %v1453 = vpop.f32.mrf.mxu0
        %v1454 = vadd.f32 %v1312, %v1453
        %1455 = vdwg.mxu0
        %1456 = vmatprep.subr.mxu0 %v1178
        %1457 = vmatpush1.msra.mxu0 %v1177
        %1458 = vmatprep.subr.mxu0 %v1174
        %1459 = vmatpush1.msra.mxu0 %v1173
        %1460 = vmatprep.subr.mxu0 %v1170
        %1461 = vmatpush1.msra.mxu0 %v1169
        %1462 = vmatprep.subr.mxu0 %v1166
        %1463 = vmatpush1.msra.mxu0 %v1165
        %1464 = vmatprep.subr.mxu0 %v1162
        %1465 = vmatpush1.msra.mxu0 %v1161
        %1466 = vmatprep.subr.mxu0 %v1158
        %1467 = vmatpush1.msra.mxu0 %v1157
        %1468 = vmatprep.subr.mxu0 %v1154
        %1469 = vmatpush1.msra.mxu0 %v1153
        %1470 = vmatprep.subr.mxu0 %v1150
        %1471 = vmatpush1.msra.mxu0 %v1149
        %1472 = vmatprep.subr.mxu0 %v1146
        %1473 = vmatpush1.msra.mxu0 %v1145
        %1474 = vmatprep.subr.mxu0 %v1142
        %1475 = vmatpush1.msra.mxu0 %v1141
        %1476 = vmatprep.subr.mxu0 %v1138
        %1477 = vmatpush1.msra.mxu0 %v1137
        %1478 = vmatprep.subr.mxu0 %v1134
        %1479 = vmatpush1.msra.mxu0 %v1133
        %1480 = vmatprep.subr.mxu0 %v1130
        %1481 = vmatpush1.msra.mxu0 %v1129
        %1482 = vmatprep.subr.mxu0 %v1126
        %1483 = vmatpush1.msra.mxu0 %v1125
        %1484 = vmatprep.subr.mxu0 %v1122
        %1485 = vmatpush1.msra.mxu0 %v1121
        %1486 = vmatprep.subr.mxu0 %v1118
        %1487 = vmatpush1.msra.mxu0 %v1117
        %1488 = vmatprep.subr.mxu0 0.0
        %1489 = vmatpush2.msra.mxu0 0.0
        %1490 = vmatprep.subr.mxu0 0.0
        %1491 = vmatpush2.msra.mxu0 0.0
        %1492 = vmatprep.subr.mxu0 0.0
        %1493 = vmatpush2.msra.mxu0 0.0
        %1494 = vmatprep.subr.mxu0 0.0
        %1495 = vmatpush2.msra.mxu0 0.0
        %1496 = vmatprep.subr.mxu0 0.0
        %1497 = vmatpush2.msra.mxu0 0.0
        %1498 = vmatprep.subr.mxu0 0.0
        %1499 = vmatpush2.msra.mxu0 0.0
        %1500 = vmatprep.subr.mxu0 0.0
        %1501 = vmatpush2.msra.mxu0 0.0
        %1502 = vmatprep.subr.mxu0 0.0
        %1503 = vmatpush2.msra.mxu0 0.0
        %1504 = vmatprep.subr.mxu0 0.0
        %1505 = vmatpush2.msra.mxu0 0.0
        %1506 = vmatprep.subr.mxu0 0.0
        %1507 = vmatpush2.msra.mxu0 0.0
        %1508 = vmatprep.subr.mxu0 0.0
        %1509 = vmatpush2.msra.mxu0 0.0
        %1510 = vmatprep.subr.mxu0 0.0
        %1511 = vmatpush2.msra.mxu0 0.0
        %1512 = vmatprep.subr.mxu0 0.0
        %1513 = vmatpush2.msra.mxu0 0.0
        %1514 = vmatprep.subr.mxu0 0.0
        %1515 = vmatpush2.msra.mxu0 0.0
        %1516 = vmatprep.subr.mxu0 0.0
        %1517 = vmatpush2.msra.mxu0 0.0
        %1518 = vmatprep.subr.mxu0 0.0
        %1519 = vmatpush2.msra.mxu0 0.0
        %1520 = vmatprep.mubr.f32.mxu0 0.0
        %1521 = vmatmul.mubr.f32.gmra.mxu0 %v1110
        %v1522 = vpop.f32.mrf.mxu0
        %v1523 = vadd.f32 %v1381, %v1522
        %v1524 = vpop.f32.mrf.mxu0
        %v1525 = vadd.f32 %v1383, %v1524
        %1526 = vdwg.mxu0
        %v1527 = vld [vmem:[%s8] sm:$0xf]
        %v1529 = vlaneseq
        %v1530 = vshrl.u32 %v1529, 7
        %v1531 = vsub.s32 0, %v1530
        %v1532 = vrot.slane %v1527, %v1531
        %v1533 = vlaneseq
        %v1534 = vshrl.u32 %v1533, 7
        %v1535 = vsub.s32 1, %v1534
        %v1536 = vrot.slane %v1527, %v1535
        %v1537 = vlaneseq
        %v1538 = vshrl.u32 %v1537, 7
        %v1539 = vsub.s32 2, %v1538
        %v1540 = vrot.slane %v1527, %v1539
        %v1541 = vlaneseq
        %v1542 = vshrl.u32 %v1541, 7
        %v1543 = vsub.s32 3, %v1542
        %v1544 = vrot.slane %v1527, %v1543
        %v1549 = vadd.f32 %v1452, %v1532
        %v1550 = vadd.f32 %v1454, %v1536
        %v1551 = vadd.f32 %v1523, %v1540
        %v1552 = vadd.f32 %v1525, %v1544
        %v1553 = vsub.f32 0.0, %v1549
        %v1554 = vmul.f32 %v1553, 1.442695
        %v1555 = vpow.pop %v1554
        %v1556 = vadd.f32 %v1555, 1.0
        %v1557 = vrcp.pop %v1556
        %v1558 = vmul.f32 1.0, %v1557
        %v1559 = vsub.f32 0.0, %v1550
        %v1560 = vmul.f32 %v1559, 1.442695
        %v1561 = vpow.pop %v1560
        %v1562 = vadd.f32 %v1561, 1.0
        %v1563 = vrcp.pop %v1562
        %v1564 = vmul.f32 1.0, %v1563
        %v1565 = vtanh.pop %v1551
        %v1566 = vsub.f32 0.0, %v1552
        %v1567 = vmul.f32 %v1566, 1.442695
        %v1568 = vpow.pop %v1567
        %v1569 = vadd.f32 %v1568, 1.0
        %v1570 = vrcp.pop %v1569
        %v1571 = vmul.f32 1.0, %v1570
        %v1572 = vmul.f32 %v1564, %v1114
        %v1573 = vmul.f32 %v1558, %v1565
        %v1574 = vadd.f32 %v1572, %v1573
        %v1575 = vtanh.pop %v1574
        %v1576 = vmul.f32 %v1571, %v1575
        %1577 = vst [vmem:[#allocation4] sm:$0xff] %v1576
        %1578 = vst [vmem:[#allocation5] sm:$0xff] %v1574
        %s1579 = scalar_lea.vmem %s550, 4 [#allocation7]
        %v1580 = vld [vmem:[%s1579] sm:$0xf]
        %v1581 = vunpack.c.l.bf16 %v1580
        %v1582 = vld [vmem:[#allocation2] sm:$0xff]
        %v1583 = vld [vmem:[#allocation3] sm:$0xff]
        %v1584 = vld [vmem:[#allocation9] sm:$0xff]
        %v1585 = vld [vmem:[#allocation9 + $0x8] sm:$0xff]
        %v1586 = vld [vmem:[#allocation9 + $0x10] sm:$0xff]
        %v1587 = vld [vmem:[#allocation9 + $0x18] sm:$0xff]
        %v1588 = vld [vmem:[#allocation9 + $0x20] sm:$0xff]
        %v1589 = vld [vmem:[#allocation9 + $0x28] sm:$0xff]
        %v1590 = vld [vmem:[#allocation9 + $0x30] sm:$0xff]
        %v1591 = vld [vmem:[#allocation9 + $0x38] sm:$0xff]
        %v1592 = vld [vmem:[#allocation9 + $0x40] sm:$0xff]
        %v1593 = vld [vmem:[#allocation9 + $0x48] sm:$0xff]
        %v1594 = vld [vmem:[#allocation9 + $0x50] sm:$0xff]
        %v1595 = vld [vmem:[#allocation9 + $0x58] sm:$0xff]
        %v1596 = vld [vmem:[#allocation9 + $0x60] sm:$0xff]
        %v1597 = vld [vmem:[#allocation9 + $0x68] sm:$0xff]
        %v1598 = vld [vmem:[#allocation9 + $0x70] sm:$0xff]
        %v1599 = vld [vmem:[#allocation9 + $0x78] sm:$0xff]
        %v1600 = vld [vmem:[#allocation9 + $0x80] sm:$0xff]
        %v1601 = vld [vmem:[#allocation9 + $0x88] sm:$0xff]
        %v1602 = vld [vmem:[#allocation9 + $0x90] sm:$0xff]
        %v1603 = vld [vmem:[#allocation9 + $0x98] sm:$0xff]
        %v1604 = vld [vmem:[#allocation9 + $0xa0] sm:$0xff]
        %v1605 = vld [vmem:[#allocation9 + $0xa8] sm:$0xff]
        %v1606 = vld [vmem:[#allocation9 + $0xb0] sm:$0xff]
        %v1607 = vld [vmem:[#allocation9 + $0xb8] sm:$0xff]
        %v1608 = vld [vmem:[#allocation9 + $0xc0] sm:$0xff]
        %v1609 = vld [vmem:[#allocation9 + $0xc8] sm:$0xff]
        %v1610 = vld [vmem:[#allocation9 + $0xd0] sm:$0xff]
        %v1611 = vld [vmem:[#allocation9 + $0xd8] sm:$0xff]
        %v1612 = vld [vmem:[#allocation9 + $0xe0] sm:$0xff]
        %v1613 = vld [vmem:[#allocation9 + $0xe8] sm:$0xff]
        %v1614 = vld [vmem:[#allocation9 + $0xf0] sm:$0xff]
        %v1615 = vld [vmem:[#allocation9 + $0xf8] sm:$0xff]
        %v1616 = vld [vmem:[#allocation9 + $0x100] sm:$0xff]
        %v1617 = vld [vmem:[#allocation9 + $0x108] sm:$0xff]
        %v1618 = vld [vmem:[#allocation9 + $0x110] sm:$0xff]
        %v1619 = vld [vmem:[#allocation9 + $0x118] sm:$0xff]
        %v1620 = vld [vmem:[#allocation9 + $0x120] sm:$0xff]
        %v1621 = vld [vmem:[#allocation9 + $0x128] sm:$0xff]
        %v1622 = vld [vmem:[#allocation9 + $0x130] sm:$0xff]
        %v1623 = vld [vmem:[#allocation9 + $0x138] sm:$0xff]
        %v1624 = vld [vmem:[#allocation9 + $0x140] sm:$0xff]
        %v1625 = vld [vmem:[#allocation9 + $0x148] sm:$0xff]
        %v1626 = vld [vmem:[#allocation9 + $0x150] sm:$0xff]
        %v1627 = vld [vmem:[#allocation9 + $0x158] sm:$0xff]
        %v1628 = vld [vmem:[#allocation9 + $0x160] sm:$0xff]
        %v1629 = vld [vmem:[#allocation9 + $0x168] sm:$0xff]
        %v1630 = vld [vmem:[#allocation9 + $0x170] sm:$0xff]
        %v1631 = vld [vmem:[#allocation9 + $0x178] sm:$0xff]
        %v1632 = vld [vmem:[#allocation9 + $0x180] sm:$0xff]
        %v1633 = vld [vmem:[#allocation9 + $0x188] sm:$0xff]
        %v1634 = vld [vmem:[#allocation9 + $0x190] sm:$0xff]
        %v1635 = vld [vmem:[#allocation9 + $0x198] sm:$0xff]
        %v1636 = vld [vmem:[#allocation9 + $0x1a0] sm:$0xff]
        %v1637 = vld [vmem:[#allocation9 + $0x1a8] sm:$0xff]
        %v1638 = vld [vmem:[#allocation9 + $0x1b0] sm:$0xff]
        %v1639 = vld [vmem:[#allocation9 + $0x1b8] sm:$0xff]
        %v1640 = vld [vmem:[#allocation9 + $0x1c0] sm:$0xff]
        %v1641 = vld [vmem:[#allocation9 + $0x1c8] sm:$0xff]
        %v1642 = vld [vmem:[#allocation9 + $0x1d0] sm:$0xff]
        %v1643 = vld [vmem:[#allocation9 + $0x1d8] sm:$0xff]
        %v1644 = vld [vmem:[#allocation9 + $0x1e0] sm:$0xff]
        %v1645 = vld [vmem:[#allocation9 + $0x1e8] sm:$0xff]
        %v1646 = vld [vmem:[#allocation9 + $0x1f0] sm:$0xff]
        %v1647 = vld [vmem:[#allocation9 + $0x1f8] sm:$0xff]
        %v1648 = vld [vmem:[#allocation11] sm:$0xff]
        %v1649 = vld [vmem:[#allocation11 + $0x8] sm:$0xff]
        %v1650 = vld [vmem:[#allocation11 + $0x10] sm:$0xff]
        %v1651 = vld [vmem:[#allocation11 + $0x18] sm:$0xff]
        %v1652 = vld [vmem:[#allocation11 + $0x20] sm:$0xff]
        %v1653 = vld [vmem:[#allocation11 + $0x28] sm:$0xff]
        %v1654 = vld [vmem:[#allocation11 + $0x30] sm:$0xff]
        %v1655 = vld [vmem:[#allocation11 + $0x38] sm:$0xff]
        %v1656 = vld [vmem:[#allocation11 + $0x40] sm:$0xff]
        %v1657 = vld [vmem:[#allocation11 + $0x48] sm:$0xff]
        %v1658 = vld [vmem:[#allocation11 + $0x50] sm:$0xff]
        %v1659 = vld [vmem:[#allocation11 + $0x58] sm:$0xff]
        %v1660 = vld [vmem:[#allocation11 + $0x60] sm:$0xff]
        %v1661 = vld [vmem:[#allocation11 + $0x68] sm:$0xff]
        %v1662 = vld [vmem:[#allocation11 + $0x70] sm:$0xff]
        %v1663 = vld [vmem:[#allocation11 + $0x78] sm:$0xff]
        %v1664 = vld [vmem:[#allocation11 + $0x80] sm:$0xff]
        %v1665 = vld [vmem:[#allocation11 + $0x88] sm:$0xff]
        %v1666 = vld [vmem:[#allocation11 + $0x90] sm:$0xff]
        %v1667 = vld [vmem:[#allocation11 + $0x98] sm:$0xff]
        %v1668 = vld [vmem:[#allocation11 + $0xa0] sm:$0xff]
        %v1669 = vld [vmem:[#allocation11 + $0xa8] sm:$0xff]
        %v1670 = vld [vmem:[#allocation11 + $0xb0] sm:$0xff]
        %v1671 = vld [vmem:[#allocation11 + $0xb8] sm:$0xff]
        %v1672 = vld [vmem:[#allocation11 + $0xc0] sm:$0xff]
        %v1673 = vld [vmem:[#allocation11 + $0xc8] sm:$0xff]
        %v1674 = vld [vmem:[#allocation11 + $0xd0] sm:$0xff]
        %v1675 = vld [vmem:[#allocation11 + $0xd8] sm:$0xff]
        %v1676 = vld [vmem:[#allocation11 + $0xe0] sm:$0xff]
        %v1677 = vld [vmem:[#allocation11 + $0xe8] sm:$0xff]
        %v1678 = vld [vmem:[#allocation11 + $0xf0] sm:$0xff]
        %v1679 = vld [vmem:[#allocation11 + $0xf8] sm:$0xff]
        %v1680 = vld [vmem:[#allocation11 + $0x100] sm:$0xff]
        %v1681 = vld [vmem:[#allocation11 + $0x108] sm:$0xff]
        %v1682 = vld [vmem:[#allocation11 + $0x110] sm:$0xff]
        %v1683 = vld [vmem:[#allocation11 + $0x118] sm:$0xff]
        %v1684 = vld [vmem:[#allocation11 + $0x120] sm:$0xff]
        %v1685 = vld [vmem:[#allocation11 + $0x128] sm:$0xff]
        %v1686 = vld [vmem:[#allocation11 + $0x130] sm:$0xff]
        %v1687 = vld [vmem:[#allocation11 + $0x138] sm:$0xff]
        %v1688 = vld [vmem:[#allocation11 + $0x140] sm:$0xff]
        %v1689 = vld [vmem:[#allocation11 + $0x148] sm:$0xff]
        %v1690 = vld [vmem:[#allocation11 + $0x150] sm:$0xff]
        %v1691 = vld [vmem:[#allocation11 + $0x158] sm:$0xff]
        %v1692 = vld [vmem:[#allocation11 + $0x160] sm:$0xff]
        %v1693 = vld [vmem:[#allocation11 + $0x168] sm:$0xff]
        %v1694 = vld [vmem:[#allocation11 + $0x170] sm:$0xff]
        %v1695 = vld [vmem:[#allocation11 + $0x178] sm:$0xff]
        %v1696 = vld [vmem:[#allocation11 + $0x180] sm:$0xff]
        %v1697 = vld [vmem:[#allocation11 + $0x188] sm:$0xff]
        %v1698 = vld [vmem:[#allocation11 + $0x190] sm:$0xff]
        %v1699 = vld [vmem:[#allocation11 + $0x198] sm:$0xff]
        %v1700 = vld [vmem:[#allocation11 + $0x1a0] sm:$0xff]
        %v1701 = vld [vmem:[#allocation11 + $0x1a8] sm:$0xff]
        %v1702 = vld [vmem:[#allocation11 + $0x1b0] sm:$0xff]
        %v1703 = vld [vmem:[#allocation11 + $0x1b8] sm:$0xff]
        %v1704 = vld [vmem:[#allocation11 + $0x1c0] sm:$0xff]
        %v1705 = vld [vmem:[#allocation11 + $0x1c8] sm:$0xff]
        %v1706 = vld [vmem:[#allocation11 + $0x1d0] sm:$0xff]
        %v1707 = vld [vmem:[#allocation11 + $0x1d8] sm:$0xff]
        %v1708 = vld [vmem:[#allocation11 + $0x1e0] sm:$0xff]
        %v1709 = vld [vmem:[#allocation11 + $0x1e8] sm:$0xff]
        %v1710 = vld [vmem:[#allocation11 + $0x1f0] sm:$0xff]
        %v1711 = vld [vmem:[#allocation11 + $0x1f8] sm:$0xff]
        %1712 = vmatprep.subr.mxu0 %v1709
        %1713 = vmatpush1.msra.mxu0 %v1708
        %1714 = vmatprep.subr.mxu0 %v1705
        %1715 = vmatpush1.msra.mxu0 %v1704
        %1716 = vmatprep.subr.mxu0 %v1701
        %1717 = vmatpush1.msra.mxu0 %v1700
        %1718 = vmatprep.subr.mxu0 %v1697
        %1719 = vmatpush1.msra.mxu0 %v1696
        %1720 = vmatprep.subr.mxu0 %v1693
        %1721 = vmatpush1.msra.mxu0 %v1692
        %1722 = vmatprep.subr.mxu0 %v1689
        %1723 = vmatpush1.msra.mxu0 %v1688
        %1724 = vmatprep.subr.mxu0 %v1685
        %1725 = vmatpush1.msra.mxu0 %v1684
        %1726 = vmatprep.subr.mxu0 %v1681
        %1727 = vmatpush1.msra.mxu0 %v1680
        %1728 = vmatprep.subr.mxu0 %v1677
        %1729 = vmatpush1.msra.mxu0 %v1676
        %1730 = vmatprep.subr.mxu0 %v1673
        %1731 = vmatpush1.msra.mxu0 %v1672
        %1732 = vmatprep.subr.mxu0 %v1669
        %1733 = vmatpush1.msra.mxu0 %v1668
        %1734 = vmatprep.subr.mxu0 %v1665
        %1735 = vmatpush1.msra.mxu0 %v1664
        %1736 = vmatprep.subr.mxu0 %v1661
        %1737 = vmatpush1.msra.mxu0 %v1660
        %1738 = vmatprep.subr.mxu0 %v1657
        %1739 = vmatpush1.msra.mxu0 %v1656
        %1740 = vmatprep.subr.mxu0 %v1653
        %1741 = vmatpush1.msra.mxu0 %v1652
        %1742 = vmatprep.subr.mxu0 %v1649
        %1743 = vmatpush1.msra.mxu0 %v1648
        %1744 = vmatprep.subr.mxu0 0.0
        %1745 = vmatpush2.msra.mxu0 0.0
        %1746 = vmatprep.subr.mxu0 0.0
        %1747 = vmatpush2.msra.mxu0 0.0
        %1748 = vmatprep.subr.mxu0 0.0
        %1749 = vmatpush2.msra.mxu0 0.0
        %1750 = vmatprep.subr.mxu0 0.0
        %1751 = vmatpush2.msra.mxu0 0.0
        %1752 = vmatprep.subr.mxu0 0.0
        %1753 = vmatpush2.msra.mxu0 0.0
        %1754 = vmatprep.subr.mxu0 0.0
        %1755 = vmatpush2.msra.mxu0 0.0
        %1756 = vmatprep.subr.mxu0 0.0
        %1757 = vmatpush2.msra.mxu0 0.0
        %1758 = vmatprep.subr.mxu0 0.0
        %1759 = vmatpush2.msra.mxu0 0.0
        %1760 = vmatprep.subr.mxu0 0.0
        %1761 = vmatpush2.msra.mxu0 0.0
        %1762 = vmatprep.subr.mxu0 0.0
        %1763 = vmatpush2.msra.mxu0 0.0
        %1764 = vmatprep.subr.mxu0 0.0
        %1765 = vmatpush2.msra.mxu0 0.0
        %1766 = vmatprep.subr.mxu0 0.0
        %1767 = vmatpush2.msra.mxu0 0.0
        %1768 = vmatprep.subr.mxu0 0.0
        %1769 = vmatpush2.msra.mxu0 0.0
        %1770 = vmatprep.subr.mxu0 0.0
        %1771 = vmatpush2.msra.mxu0 0.0
        %1772 = vmatprep.subr.mxu0 0.0
        %1773 = vmatpush2.msra.mxu0 0.0
        %1774 = vmatprep.subr.mxu0 0.0
        %1775 = vmatpush2.msra.mxu0 0.0
        %1776 = vmatprep.mubr.f32.mxu0 0.0
        %1777 = vmatmul.mubr.f32.gmra.mxu0 %v1582
        %v1778 = vpop.f32.mrf.mxu0
        %v1779 = vadd.f32 0.0, %v1778
        %v1780 = vpop.f32.mrf.mxu0
        %v1781 = vadd.f32 0.0, %v1780
        %1782 = vdwg.mxu0
        %1783 = vmatprep.subr.mxu0 %v1711
        %1784 = vmatpush1.msra.mxu0 %v1710
        %1785 = vmatprep.subr.mxu0 %v1707
        %1786 = vmatpush1.msra.mxu0 %v1706
        %1787 = vmatprep.subr.mxu0 %v1703
        %1788 = vmatpush1.msra.mxu0 %v1702
        %1789 = vmatprep.subr.mxu0 %v1699
        %1790 = vmatpush1.msra.mxu0 %v1698
        %1791 = vmatprep.subr.mxu0 %v1695
        %1792 = vmatpush1.msra.mxu0 %v1694
        %1793 = vmatprep.subr.mxu0 %v1691
        %1794 = vmatpush1.msra.mxu0 %v1690
        %1795 = vmatprep.subr.mxu0 %v1687
        %1796 = vmatpush1.msra.mxu0 %v1686
        %1797 = vmatprep.subr.mxu0 %v1683
        %1798 = vmatpush1.msra.mxu0 %v1682
        %1799 = vmatprep.subr.mxu0 %v1679
        %1800 = vmatpush1.msra.mxu0 %v1678
        %1801 = vmatprep.subr.mxu0 %v1675
        %1802 = vmatpush1.msra.mxu0 %v1674
        %1803 = vmatprep.subr.mxu0 %v1671
        %1804 = vmatpush1.msra.mxu0 %v1670
        %1805 = vmatprep.subr.mxu0 %v1667
        %1806 = vmatpush1.msra.mxu0 %v1666
        %1807 = vmatprep.subr.mxu0 %v1663
        %1808 = vmatpush1.msra.mxu0 %v1662
        %1809 = vmatprep.subr.mxu0 %v1659
        %1810 = vmatpush1.msra.mxu0 %v1658
        %1811 = vmatprep.subr.mxu0 %v1655
        %1812 = vmatpush1.msra.mxu0 %v1654
        %1813 = vmatprep.subr.mxu0 %v1651
        %1814 = vmatpush1.msra.mxu0 %v1650
        %1815 = vmatprep.subr.mxu0 0.0
        %1816 = vmatpush2.msra.mxu0 0.0
        %1817 = vmatprep.subr.mxu0 0.0
        %1818 = vmatpush2.msra.mxu0 0.0
        %1819 = vmatprep.subr.mxu0 0.0
        %1820 = vmatpush2.msra.mxu0 0.0
        %1821 = vmatprep.subr.mxu0 0.0
        %1822 = vmatpush2.msra.mxu0 0.0
        %1823 = vmatprep.subr.mxu0 0.0
        %1824 = vmatpush2.msra.mxu0 0.0
        %1825 = vmatprep.subr.mxu0 0.0
        %1826 = vmatpush2.msra.mxu0 0.0
        %1827 = vmatprep.subr.mxu0 0.0
        %1828 = vmatpush2.msra.mxu0 0.0
        %1829 = vmatprep.subr.mxu0 0.0
        %1830 = vmatpush2.msra.mxu0 0.0
        %1831 = vmatprep.subr.mxu0 0.0
        %1832 = vmatpush2.msra.mxu0 0.0
        %1833 = vmatprep.subr.mxu0 0.0
        %1834 = vmatpush2.msra.mxu0 0.0
        %1835 = vmatprep.subr.mxu0 0.0
        %1836 = vmatpush2.msra.mxu0 0.0
        %1837 = vmatprep.subr.mxu0 0.0
        %1838 = vmatpush2.msra.mxu0 0.0
        %1839 = vmatprep.subr.mxu0 0.0
        %1840 = vmatpush2.msra.mxu0 0.0
        %1841 = vmatprep.subr.mxu0 0.0
        %1842 = vmatpush2.msra.mxu0 0.0
        %1843 = vmatprep.subr.mxu0 0.0
        %1844 = vmatpush2.msra.mxu0 0.0
        %1845 = vmatprep.subr.mxu0 0.0
        %1846 = vmatpush2.msra.mxu0 0.0
        %1847 = vmatprep.mubr.f32.mxu0 0.0
        %1848 = vmatmul.mubr.f32.gmra.mxu0 %v1582
        %v1849 = vpop.f32.mrf.mxu0
        %v1850 = vadd.f32 0.0, %v1849
        %v1851 = vpop.f32.mrf.mxu0
        %v1852 = vadd.f32 0.0, %v1851
        %1853 = vdwg.mxu0
        %1854 = vmatprep.subr.mxu0 %v1645
        %1855 = vmatpush1.msra.mxu0 %v1644
        %1856 = vmatprep.subr.mxu0 %v1641
        %1857 = vmatpush1.msra.mxu0 %v1640
        %1858 = vmatprep.subr.mxu0 %v1637
        %1859 = vmatpush1.msra.mxu0 %v1636
        %1860 = vmatprep.subr.mxu0 %v1633
        %1861 = vmatpush1.msra.mxu0 %v1632
        %1862 = vmatprep.subr.mxu0 %v1629
        %1863 = vmatpush1.msra.mxu0 %v1628
        %1864 = vmatprep.subr.mxu0 %v1625
        %1865 = vmatpush1.msra.mxu0 %v1624
        %1866 = vmatprep.subr.mxu0 %v1621
        %1867 = vmatpush1.msra.mxu0 %v1620
        %1868 = vmatprep.subr.mxu0 %v1617
        %1869 = vmatpush1.msra.mxu0 %v1616
        %1870 = vmatprep.subr.mxu0 %v1613
        %1871 = vmatpush1.msra.mxu0 %v1612
        %1872 = vmatprep.subr.mxu0 %v1609
        %1873 = vmatpush1.msra.mxu0 %v1608
        %1874 = vmatprep.subr.mxu0 %v1605
        %1875 = vmatpush1.msra.mxu0 %v1604
        %1876 = vmatprep.subr.mxu0 %v1601
        %1877 = vmatpush1.msra.mxu0 %v1600
        %1878 = vmatprep.subr.mxu0 %v1597
        %1879 = vmatpush1.msra.mxu0 %v1596
        %1880 = vmatprep.subr.mxu0 %v1593
        %1881 = vmatpush1.msra.mxu0 %v1592
        %1882 = vmatprep.subr.mxu0 %v1589
        %1883 = vmatpush1.msra.mxu0 %v1588
        %1884 = vmatprep.subr.mxu0 %v1585
        %1885 = vmatpush1.msra.mxu0 %v1584
        %1886 = vmatprep.subr.mxu0 0.0
        %1887 = vmatpush2.msra.mxu0 0.0
        %1888 = vmatprep.subr.mxu0 0.0
        %1889 = vmatpush2.msra.mxu0 0.0
        %1890 = vmatprep.subr.mxu0 0.0
        %1891 = vmatpush2.msra.mxu0 0.0
        %1892 = vmatprep.subr.mxu0 0.0
        %1893 = vmatpush2.msra.mxu0 0.0
        %1894 = vmatprep.subr.mxu0 0.0
        %1895 = vmatpush2.msra.mxu0 0.0
        %1896 = vmatprep.subr.mxu0 0.0
        %1897 = vmatpush2.msra.mxu0 0.0
        %1898 = vmatprep.subr.mxu0 0.0
        %1899 = vmatpush2.msra.mxu0 0.0
        %1900 = vmatprep.subr.mxu0 0.0
        %1901 = vmatpush2.msra.mxu0 0.0
        %1902 = vmatprep.subr.mxu0 0.0
        %1903 = vmatpush2.msra.mxu0 0.0
        %1904 = vmatprep.subr.mxu0 0.0
        %1905 = vmatpush2.msra.mxu0 0.0
        %1906 = vmatprep.subr.mxu0 0.0
        %1907 = vmatpush2.msra.mxu0 0.0
        %1908 = vmatprep.subr.mxu0 0.0
        %1909 = vmatpush2.msra.mxu0 0.0
        %1910 = vmatprep.subr.mxu0 0.0
        %1911 = vmatpush2.msra.mxu0 0.0
        %1912 = vmatprep.subr.mxu0 0.0
        %1913 = vmatpush2.msra.mxu0 0.0
        %1914 = vmatprep.subr.mxu0 0.0
        %1915 = vmatpush2.msra.mxu0 0.0
        %1916 = vmatprep.subr.mxu0 0.0
        %1917 = vmatpush2.msra.mxu0 0.0
        %1918 = vmatprep.mubr.f32.mxu0 0.0
        %1919 = vmatmul.mubr.f32.gmra.mxu0 %v1581
        %v1920 = vpop.f32.mrf.mxu0
        %v1921 = vadd.f32 %v1779, %v1920
        %v1922 = vpop.f32.mrf.mxu0
        %v1923 = vadd.f32 %v1781, %v1922
        %1924 = vdwg.mxu0
        %1925 = vmatprep.subr.mxu0 %v1647
        %1926 = vmatpush1.msra.mxu0 %v1646
        %1927 = vmatprep.subr.mxu0 %v1643
        %1928 = vmatpush1.msra.mxu0 %v1642
        %1929 = vmatprep.subr.mxu0 %v1639
        %1930 = vmatpush1.msra.mxu0 %v1638
        %1931 = vmatprep.subr.mxu0 %v1635
        %1932 = vmatpush1.msra.mxu0 %v1634
        %1933 = vmatprep.subr.mxu0 %v1631
        %1934 = vmatpush1.msra.mxu0 %v1630
        %1935 = vmatprep.subr.mxu0 %v1627
        %1936 = vmatpush1.msra.mxu0 %v1626
        %1937 = vmatprep.subr.mxu0 %v1623
        %1938 = vmatpush1.msra.mxu0 %v1622
        %1939 = vmatprep.subr.mxu0 %v1619
        %1940 = vmatpush1.msra.mxu0 %v1618
        %1941 = vmatprep.subr.mxu0 %v1615
        %1942 = vmatpush1.msra.mxu0 %v1614
        %1943 = vmatprep.subr.mxu0 %v1611
        %1944 = vmatpush1.msra.mxu0 %v1610
        %1945 = vmatprep.subr.mxu0 %v1607
        %1946 = vmatpush1.msra.mxu0 %v1606
        %1947 = vmatprep.subr.mxu0 %v1603
        %1948 = vmatpush1.msra.mxu0 %v1602
        %1949 = vmatprep.subr.mxu0 %v1599
        %1950 = vmatpush1.msra.mxu0 %v1598
        %1951 = vmatprep.subr.mxu0 %v1595
        %1952 = vmatpush1.msra.mxu0 %v1594
        %1953 = vmatprep.subr.mxu0 %v1591
        %1954 = vmatpush1.msra.mxu0 %v1590
        %1955 = vmatprep.subr.mxu0 %v1587
        %1956 = vmatpush1.msra.mxu0 %v1586
        %1957 = vmatprep.subr.mxu0 0.0
        %1958 = vmatpush2.msra.mxu0 0.0
        %1959 = vmatprep.subr.mxu0 0.0
        %1960 = vmatpush2.msra.mxu0 0.0
        %1961 = vmatprep.subr.mxu0 0.0
        %1962 = vmatpush2.msra.mxu0 0.0
        %1963 = vmatprep.subr.mxu0 0.0
        %1964 = vmatpush2.msra.mxu0 0.0
        %1965 = vmatprep.subr.mxu0 0.0
        %1966 = vmatpush2.msra.mxu0 0.0
        %1967 = vmatprep.subr.mxu0 0.0
        %1968 = vmatpush2.msra.mxu0 0.0
        %1969 = vmatprep.subr.mxu0 0.0
        %1970 = vmatpush2.msra.mxu0 0.0
        %1971 = vmatprep.subr.mxu0 0.0
        %1972 = vmatpush2.msra.mxu0 0.0
        %1973 = vmatprep.subr.mxu0 0.0
        %1974 = vmatpush2.msra.mxu0 0.0
        %1975 = vmatprep.subr.mxu0 0.0
        %1976 = vmatpush2.msra.mxu0 0.0
        %1977 = vmatprep.subr.mxu0 0.0
        %1978 = vmatpush2.msra.mxu0 0.0
        %1979 = vmatprep.subr.mxu0 0.0
        %1980 = vmatpush2.msra.mxu0 0.0
        %1981 = vmatprep.subr.mxu0 0.0
        %1982 = vmatpush2.msra.mxu0 0.0
        %1983 = vmatprep.subr.mxu0 0.0
        %1984 = vmatpush2.msra.mxu0 0.0
        %1985 = vmatprep.subr.mxu0 0.0
        %1986 = vmatpush2.msra.mxu0 0.0
        %1987 = vmatprep.subr.mxu0 0.0
        %1988 = vmatpush2.msra.mxu0 0.0
        %1989 = vmatprep.mubr.f32.mxu0 0.0
        %1990 = vmatmul.mubr.f32.gmra.mxu0 %v1581
        %v1991 = vpop.f32.mrf.mxu0
        %v1992 = vadd.f32 %v1850, %v1991
        %v1993 = vpop.f32.mrf.mxu0
        %v1994 = vadd.f32 %v1852, %v1993
        %1995 = vdwg.mxu0
        %v1996 = vld [vmem:[%s5] sm:$0xf]
        %v1998 = vlaneseq
        %v1999 = vshrl.u32 %v1998, 7
        %v2000 = vsub.s32 0, %v1999
        %v2001 = vrot.slane %v1996, %v2000
        %v2002 = vlaneseq
        %v2003 = vshrl.u32 %v2002, 7
        %v2004 = vsub.s32 1, %v2003
        %v2005 = vrot.slane %v1996, %v2004
        %v2006 = vlaneseq
        %v2007 = vshrl.u32 %v2006, 7
        %v2008 = vsub.s32 2, %v2007
        %v2009 = vrot.slane %v1996, %v2008
        %v2010 = vlaneseq
        %v2011 = vshrl.u32 %v2010, 7
        %v2012 = vsub.s32 3, %v2011
        %v2013 = vrot.slane %v1996, %v2012
        %v2018 = vadd.f32 %v1921, %v2001
        %v2019 = vadd.f32 %v1923, %v2005
        %v2020 = vadd.f32 %v1992, %v2009
        %v2021 = vadd.f32 %v1994, %v2013
        %v2022 = vsub.f32 0.0, %v2018
        %v2023 = vmul.f32 %v2022, 1.442695
        %v2024 = vpow.pop %v2023
        %v2025 = vadd.f32 %v2024, 1.0
        %v2026 = vrcp.pop %v2025
        %v2027 = vmul.f32 1.0, %v2026
        %v2028 = vsub.f32 0.0, %v2019
        %v2029 = vmul.f32 %v2028, 1.442695
        %v2030 = vpow.pop %v2029
        %v2031 = vadd.f32 %v2030, 1.0
        %v2032 = vrcp.pop %v2031
        %v2033 = vmul.f32 1.0, %v2032
        %v2034 = vtanh.pop %v2020
        %v2035 = vsub.f32 0.0, %v2021
        %v2036 = vmul.f32 %v2035, 1.442695
        %v2037 = vpow.pop %v2036
        %v2038 = vadd.f32 %v2037, 1.0
        %v2039 = vrcp.pop %v2038
        %v2040 = vmul.f32 1.0, %v2039
        %v2041 = vmul.f32 %v2033, %v1583
        %v2042 = vmul.f32 %v2027, %v2034
        %v2043 = vadd.f32 %v2041, %v2042
        %v2044 = vtanh.pop %v2043
        %v2045 = vmul.f32 %v2040, %v2044
        %2046 = vst [vmem:[#allocation2] sm:$0xff] %v2045
        %2047 = vst [vmem:[#allocation3] sm:$0xff] %v2043
        %v2048 = vld [vmem:[#allocation4] sm:$0xff]
        %v2049 = vld [vmem:[#allocation5] sm:$0xff]
        %v2050 = vld [vmem:[#allocation12] sm:$0xff]
        %v2051 = vld [vmem:[#allocation12 + $0x8] sm:$0xff]
        %v2052 = vld [vmem:[#allocation12 + $0x10] sm:$0xff]
        %v2053 = vld [vmem:[#allocation12 + $0x18] sm:$0xff]
        %v2054 = vld [vmem:[#allocation12 + $0x20] sm:$0xff]
        %v2055 = vld [vmem:[#allocation12 + $0x28] sm:$0xff]
        %v2056 = vld [vmem:[#allocation12 + $0x30] sm:$0xff]
        %v2057 = vld [vmem:[#allocation12 + $0x38] sm:$0xff]
        %v2058 = vld [vmem:[#allocation12 + $0x40] sm:$0xff]
        %v2059 = vld [vmem:[#allocation12 + $0x48] sm:$0xff]
        %v2060 = vld [vmem:[#allocation12 + $0x50] sm:$0xff]
        %v2061 = vld [vmem:[#allocation12 + $0x58] sm:$0xff]
        %v2062 = vld [vmem:[#allocation12 + $0x60] sm:$0xff]
        %v2063 = vld [vmem:[#allocation12 + $0x68] sm:$0xff]
        %v2064 = vld [vmem:[#allocation12 + $0x70] sm:$0xff]
        %v2065 = vld [vmem:[#allocation12 + $0x78] sm:$0xff]
        %v2066 = vld [vmem:[#allocation12 + $0x80] sm:$0xff]
        %v2067 = vld [vmem:[#allocation12 + $0x88] sm:$0xff]
        %v2068 = vld [vmem:[#allocation12 + $0x90] sm:$0xff]
        %v2069 = vld [vmem:[#allocation12 + $0x98] sm:$0xff]
        %v2070 = vld [vmem:[#allocation12 + $0xa0] sm:$0xff]
        %v2071 = vld [vmem:[#allocation12 + $0xa8] sm:$0xff]
        %v2072 = vld [vmem:[#allocation12 + $0xb0] sm:$0xff]
        %v2073 = vld [vmem:[#allocation12 + $0xb8] sm:$0xff]
        %v2074 = vld [vmem:[#allocation12 + $0xc0] sm:$0xff]
        %v2075 = vld [vmem:[#allocation12 + $0xc8] sm:$0xff]
        %v2076 = vld [vmem:[#allocation12 + $0xd0] sm:$0xff]
        %v2077 = vld [vmem:[#allocation12 + $0xd8] sm:$0xff]
        %v2078 = vld [vmem:[#allocation12 + $0xe0] sm:$0xff]
        %v2079 = vld [vmem:[#allocation12 + $0xe8] sm:$0xff]
        %v2080 = vld [vmem:[#allocation12 + $0xf0] sm:$0xff]
        %v2081 = vld [vmem:[#allocation12 + $0xf8] sm:$0xff]
        %v2082 = vld [vmem:[#allocation12 + $0x100] sm:$0xff]
        %v2083 = vld [vmem:[#allocation12 + $0x108] sm:$0xff]
        %v2084 = vld [vmem:[#allocation12 + $0x110] sm:$0xff]
        %v2085 = vld [vmem:[#allocation12 + $0x118] sm:$0xff]
        %v2086 = vld [vmem:[#allocation12 + $0x120] sm:$0xff]
        %v2087 = vld [vmem:[#allocation12 + $0x128] sm:$0xff]
        %v2088 = vld [vmem:[#allocation12 + $0x130] sm:$0xff]
        %v2089 = vld [vmem:[#allocation12 + $0x138] sm:$0xff]
        %v2090 = vld [vmem:[#allocation12 + $0x140] sm:$0xff]
        %v2091 = vld [vmem:[#allocation12 + $0x148] sm:$0xff]
        %v2092 = vld [vmem:[#allocation12 + $0x150] sm:$0xff]
        %v2093 = vld [vmem:[#allocation12 + $0x158] sm:$0xff]
        %v2094 = vld [vmem:[#allocation12 + $0x160] sm:$0xff]
        %v2095 = vld [vmem:[#allocation12 + $0x168] sm:$0xff]
        %v2096 = vld [vmem:[#allocation12 + $0x170] sm:$0xff]
        %v2097 = vld [vmem:[#allocation12 + $0x178] sm:$0xff]
        %v2098 = vld [vmem:[#allocation12 + $0x180] sm:$0xff]
        %v2099 = vld [vmem:[#allocation12 + $0x188] sm:$0xff]
        %v2100 = vld [vmem:[#allocation12 + $0x190] sm:$0xff]
        %v2101 = vld [vmem:[#allocation12 + $0x198] sm:$0xff]
        %v2102 = vld [vmem:[#allocation12 + $0x1a0] sm:$0xff]
        %v2103 = vld [vmem:[#allocation12 + $0x1a8] sm:$0xff]
        %v2104 = vld [vmem:[#allocation12 + $0x1b0] sm:$0xff]
        %v2105 = vld [vmem:[#allocation12 + $0x1b8] sm:$0xff]
        %v2106 = vld [vmem:[#allocation12 + $0x1c0] sm:$0xff]
        %v2107 = vld [vmem:[#allocation12 + $0x1c8] sm:$0xff]
        %v2108 = vld [vmem:[#allocation12 + $0x1d0] sm:$0xff]
        %v2109 = vld [vmem:[#allocation12 + $0x1d8] sm:$0xff]
        %v2110 = vld [vmem:[#allocation12 + $0x1e0] sm:$0xff]
        %v2111 = vld [vmem:[#allocation12 + $0x1e8] sm:$0xff]
        %v2112 = vld [vmem:[#allocation12 + $0x1f0] sm:$0xff]
        %v2113 = vld [vmem:[#allocation12 + $0x1f8] sm:$0xff]
        %v2114 = vld [vmem:[#allocation14] sm:$0xff]
        %v2115 = vld [vmem:[#allocation14 + $0x8] sm:$0xff]
        %v2116 = vld [vmem:[#allocation14 + $0x10] sm:$0xff]
        %v2117 = vld [vmem:[#allocation14 + $0x18] sm:$0xff]
        %v2118 = vld [vmem:[#allocation14 + $0x20] sm:$0xff]
        %v2119 = vld [vmem:[#allocation14 + $0x28] sm:$0xff]
        %v2120 = vld [vmem:[#allocation14 + $0x30] sm:$0xff]
        %v2121 = vld [vmem:[#allocation14 + $0x38] sm:$0xff]
        %v2122 = vld [vmem:[#allocation14 + $0x40] sm:$0xff]
        %v2123 = vld [vmem:[#allocation14 + $0x48] sm:$0xff]
        %v2124 = vld [vmem:[#allocation14 + $0x50] sm:$0xff]
        %v2125 = vld [vmem:[#allocation14 + $0x58] sm:$0xff]
        %v2126 = vld [vmem:[#allocation14 + $0x60] sm:$0xff]
        %v2127 = vld [vmem:[#allocation14 + $0x68] sm:$0xff]
        %v2128 = vld [vmem:[#allocation14 + $0x70] sm:$0xff]
        %v2129 = vld [vmem:[#allocation14 + $0x78] sm:$0xff]
        %v2130 = vld [vmem:[#allocation14 + $0x80] sm:$0xff]
        %v2131 = vld [vmem:[#allocation14 + $0x88] sm:$0xff]
        %v2132 = vld [vmem:[#allocation14 + $0x90] sm:$0xff]
        %v2133 = vld [vmem:[#allocation14 + $0x98] sm:$0xff]
        %v2134 = vld [vmem:[#allocation14 + $0xa0] sm:$0xff]
        %v2135 = vld [vmem:[#allocation14 + $0xa8] sm:$0xff]
        %v2136 = vld [vmem:[#allocation14 + $0xb0] sm:$0xff]
        %v2137 = vld [vmem:[#allocation14 + $0xb8] sm:$0xff]
        %v2138 = vld [vmem:[#allocation14 + $0xc0] sm:$0xff]
        %v2139 = vld [vmem:[#allocation14 + $0xc8] sm:$0xff]
        %v2140 = vld [vmem:[#allocation14 + $0xd0] sm:$0xff]
        %v2141 = vld [vmem:[#allocation14 + $0xd8] sm:$0xff]
        %v2142 = vld [vmem:[#allocation14 + $0xe0] sm:$0xff]
        %v2143 = vld [vmem:[#allocation14 + $0xe8] sm:$0xff]
        %v2144 = vld [vmem:[#allocation14 + $0xf0] sm:$0xff]
        %v2145 = vld [vmem:[#allocation14 + $0xf8] sm:$0xff]
        %v2146 = vld [vmem:[#allocation14 + $0x100] sm:$0xff]
        %v2147 = vld [vmem:[#allocation14 + $0x108] sm:$0xff]
        %v2148 = vld [vmem:[#allocation14 + $0x110] sm:$0xff]
        %v2149 = vld [vmem:[#allocation14 + $0x118] sm:$0xff]
        %v2150 = vld [vmem:[#allocation14 + $0x120] sm:$0xff]
        %v2151 = vld [vmem:[#allocation14 + $0x128] sm:$0xff]
        %v2152 = vld [vmem:[#allocation14 + $0x130] sm:$0xff]
        %v2153 = vld [vmem:[#allocation14 + $0x138] sm:$0xff]
        %v2154 = vld [vmem:[#allocation14 + $0x140] sm:$0xff]
        %v2155 = vld [vmem:[#allocation14 + $0x148] sm:$0xff]
        %v2156 = vld [vmem:[#allocation14 + $0x150] sm:$0xff]
        %v2157 = vld [vmem:[#allocation14 + $0x158] sm:$0xff]
        %v2158 = vld [vmem:[#allocation14 + $0x160] sm:$0xff]
        %v2159 = vld [vmem:[#allocation14 + $0x168] sm:$0xff]
        %v2160 = vld [vmem:[#allocation14 + $0x170] sm:$0xff]
        %v2161 = vld [vmem:[#allocation14 + $0x178] sm:$0xff]
        %v2162 = vld [vmem:[#allocation14 + $0x180] sm:$0xff]
        %v2163 = vld [vmem:[#allocation14 + $0x188] sm:$0xff]
        %v2164 = vld [vmem:[#allocation14 + $0x190] sm:$0xff]
        %v2165 = vld [vmem:[#allocation14 + $0x198] sm:$0xff]
        %v2166 = vld [vmem:[#allocation14 + $0x1a0] sm:$0xff]
        %v2167 = vld [vmem:[#allocation14 + $0x1a8] sm:$0xff]
        %v2168 = vld [vmem:[#allocation14 + $0x1b0] sm:$0xff]
        %v2169 = vld [vmem:[#allocation14 + $0x1b8] sm:$0xff]
        %v2170 = vld [vmem:[#allocation14 + $0x1c0] sm:$0xff]
        %v2171 = vld [vmem:[#allocation14 + $0x1c8] sm:$0xff]
        %v2172 = vld [vmem:[#allocation14 + $0x1d0] sm:$0xff]
        %v2173 = vld [vmem:[#allocation14 + $0x1d8] sm:$0xff]
        %v2174 = vld [vmem:[#allocation14 + $0x1e0] sm:$0xff]
        %v2175 = vld [vmem:[#allocation14 + $0x1e8] sm:$0xff]
        %v2176 = vld [vmem:[#allocation14 + $0x1f0] sm:$0xff]
        %v2177 = vld [vmem:[#allocation14 + $0x1f8] sm:$0xff]
        %2178 = vmatprep.subr.mxu0 %v2175
        %2179 = vmatpush1.msra.mxu0 %v2174
        %2180 = vmatprep.subr.mxu0 %v2171
        %2181 = vmatpush1.msra.mxu0 %v2170
        %2182 = vmatprep.subr.mxu0 %v2167
        %2183 = vmatpush1.msra.mxu0 %v2166
        %2184 = vmatprep.subr.mxu0 %v2163
        %2185 = vmatpush1.msra.mxu0 %v2162
        %2186 = vmatprep.subr.mxu0 %v2159
        %2187 = vmatpush1.msra.mxu0 %v2158
        %2188 = vmatprep.subr.mxu0 %v2155
        %2189 = vmatpush1.msra.mxu0 %v2154
        %2190 = vmatprep.subr.mxu0 %v2151
        %2191 = vmatpush1.msra.mxu0 %v2150
        %2192 = vmatprep.subr.mxu0 %v2147
        %2193 = vmatpush1.msra.mxu0 %v2146
        %2194 = vmatprep.subr.mxu0 %v2143
        %2195 = vmatpush1.msra.mxu0 %v2142
        %2196 = vmatprep.subr.mxu0 %v2139
        %2197 = vmatpush1.msra.mxu0 %v2138
        %2198 = vmatprep.subr.mxu0 %v2135
        %2199 = vmatpush1.msra.mxu0 %v2134
        %2200 = vmatprep.subr.mxu0 %v2131
        %2201 = vmatpush1.msra.mxu0 %v2130
        %2202 = vmatprep.subr.mxu0 %v2127
        %2203 = vmatpush1.msra.mxu0 %v2126
        %2204 = vmatprep.subr.mxu0 %v2123
        %2205 = vmatpush1.msra.mxu0 %v2122
        %2206 = vmatprep.subr.mxu0 %v2119
        %2207 = vmatpush1.msra.mxu0 %v2118
        %2208 = vmatprep.subr.mxu0 %v2115
        %2209 = vmatpush1.msra.mxu0 %v2114
        %2210 = vmatprep.subr.mxu0 0.0
        %2211 = vmatpush2.msra.mxu0 0.0
        %2212 = vmatprep.subr.mxu0 0.0
        %2213 = vmatpush2.msra.mxu0 0.0
        %2214 = vmatprep.subr.mxu0 0.0
        %2215 = vmatpush2.msra.mxu0 0.0
        %2216 = vmatprep.subr.mxu0 0.0
        %2217 = vmatpush2.msra.mxu0 0.0
        %2218 = vmatprep.subr.mxu0 0.0
        %2219 = vmatpush2.msra.mxu0 0.0
        %2220 = vmatprep.subr.mxu0 0.0
        %2221 = vmatpush2.msra.mxu0 0.0
        %2222 = vmatprep.subr.mxu0 0.0
        %2223 = vmatpush2.msra.mxu0 0.0
        %2224 = vmatprep.subr.mxu0 0.0
        %2225 = vmatpush2.msra.mxu0 0.0
        %2226 = vmatprep.subr.mxu0 0.0
        %2227 = vmatpush2.msra.mxu0 0.0
        %2228 = vmatprep.subr.mxu0 0.0
        %2229 = vmatpush2.msra.mxu0 0.0
        %2230 = vmatprep.subr.mxu0 0.0
        %2231 = vmatpush2.msra.mxu0 0.0
        %2232 = vmatprep.subr.mxu0 0.0
        %2233 = vmatpush2.msra.mxu0 0.0
        %2234 = vmatprep.subr.mxu0 0.0
        %2235 = vmatpush2.msra.mxu0 0.0
        %2236 = vmatprep.subr.mxu0 0.0
        %2237 = vmatpush2.msra.mxu0 0.0
        %2238 = vmatprep.subr.mxu0 0.0
        %2239 = vmatpush2.msra.mxu0 0.0
        %2240 = vmatprep.subr.mxu0 0.0
        %2241 = vmatpush2.msra.mxu0 0.0
        %2242 = vmatprep.mubr.f32.mxu0 0.0
        %2243 = vmatmul.mubr.f32.gmra.mxu0 %v2048
        %v2244 = vpop.f32.mrf.mxu0
        %v2245 = vadd.f32 0.0, %v2244
        %v2246 = vpop.f32.mrf.mxu0
        %v2247 = vadd.f32 0.0, %v2246
        %2248 = vdwg.mxu0
        %2249 = vmatprep.subr.mxu0 %v2177
        %2250 = vmatpush1.msra.mxu0 %v2176
        %2251 = vmatprep.subr.mxu0 %v2173
        %2252 = vmatpush1.msra.mxu0 %v2172
        %2253 = vmatprep.subr.mxu0 %v2169
        %2254 = vmatpush1.msra.mxu0 %v2168
        %2255 = vmatprep.subr.mxu0 %v2165
        %2256 = vmatpush1.msra.mxu0 %v2164
        %2257 = vmatprep.subr.mxu0 %v2161
        %2258 = vmatpush1.msra.mxu0 %v2160
        %2259 = vmatprep.subr.mxu0 %v2157
        %2260 = vmatpush1.msra.mxu0 %v2156
        %2261 = vmatprep.subr.mxu0 %v2153
        %2262 = vmatpush1.msra.mxu0 %v2152
        %2263 = vmatprep.subr.mxu0 %v2149
        %2264 = vmatpush1.msra.mxu0 %v2148
        %2265 = vmatprep.subr.mxu0 %v2145
        %2266 = vmatpush1.msra.mxu0 %v2144
        %2267 = vmatprep.subr.mxu0 %v2141
        %2268 = vmatpush1.msra.mxu0 %v2140
        %2269 = vmatprep.subr.mxu0 %v2137
        %2270 = vmatpush1.msra.mxu0 %v2136
        %2271 = vmatprep.subr.mxu0 %v2133
        %2272 = vmatpush1.msra.mxu0 %v2132
        %2273 = vmatprep.subr.mxu0 %v2129
        %2274 = vmatpush1.msra.mxu0 %v2128
        %2275 = vmatprep.subr.mxu0 %v2125
        %2276 = vmatpush1.msra.mxu0 %v2124
        %2277 = vmatprep.subr.mxu0 %v2121
        %2278 = vmatpush1.msra.mxu0 %v2120
        %2279 = vmatprep.subr.mxu0 %v2117
        %2280 = vmatpush1.msra.mxu0 %v2116
        %2281 = vmatprep.subr.mxu0 0.0
        %2282 = vmatpush2.msra.mxu0 0.0
        %2283 = vmatprep.subr.mxu0 0.0
        %2284 = vmatpush2.msra.mxu0 0.0
        %2285 = vmatprep.subr.mxu0 0.0
        %2286 = vmatpush2.msra.mxu0 0.0
        %2287 = vmatprep.subr.mxu0 0.0
        %2288 = vmatpush2.msra.mxu0 0.0
        %2289 = vmatprep.subr.mxu0 0.0
        %2290 = vmatpush2.msra.mxu0 0.0
        %2291 = vmatprep.subr.mxu0 0.0
        %2292 = vmatpush2.msra.mxu0 0.0
        %2293 = vmatprep.subr.mxu0 0.0
        %2294 = vmatpush2.msra.mxu0 0.0
        %2295 = vmatprep.subr.mxu0 0.0
        %2296 = vmatpush2.msra.mxu0 0.0
        %2297 = vmatprep.subr.mxu0 0.0
        %2298 = vmatpush2.msra.mxu0 0.0
        %2299 = vmatprep.subr.mxu0 0.0
        %2300 = vmatpush2.msra.mxu0 0.0
        %2301 = vmatprep.subr.mxu0 0.0
        %2302 = vmatpush2.msra.mxu0 0.0
        %2303 = vmatprep.subr.mxu0 0.0
        %2304 = vmatpush2.msra.mxu0 0.0
        %2305 = vmatprep.subr.mxu0 0.0
        %2306 = vmatpush2.msra.mxu0 0.0
        %2307 = vmatprep.subr.mxu0 0.0
        %2308 = vmatpush2.msra.mxu0 0.0
        %2309 = vmatprep.subr.mxu0 0.0
        %2310 = vmatpush2.msra.mxu0 0.0
        %2311 = vmatprep.subr.mxu0 0.0
        %2312 = vmatpush2.msra.mxu0 0.0
        %2313 = vmatprep.mubr.f32.mxu0 0.0
        %2314 = vmatmul.mubr.f32.gmra.mxu0 %v2048
        %v2315 = vpop.f32.mrf.mxu0
        %v2316 = vadd.f32 0.0, %v2315
        %v2317 = vpop.f32.mrf.mxu0
        %v2318 = vadd.f32 0.0, %v2317
        %2319 = vdwg.mxu0
        %2320 = vmatprep.subr.mxu0 %v2111
        %2321 = vmatpush1.msra.mxu0 %v2110
        %2322 = vmatprep.subr.mxu0 %v2107
        %2323 = vmatpush1.msra.mxu0 %v2106
        %2324 = vmatprep.subr.mxu0 %v2103
        %2325 = vmatpush1.msra.mxu0 %v2102
        %2326 = vmatprep.subr.mxu0 %v2099
        %2327 = vmatpush1.msra.mxu0 %v2098
        %2328 = vmatprep.subr.mxu0 %v2095
        %2329 = vmatpush1.msra.mxu0 %v2094
        %2330 = vmatprep.subr.mxu0 %v2091
        %2331 = vmatpush1.msra.mxu0 %v2090
        %2332 = vmatprep.subr.mxu0 %v2087
        %2333 = vmatpush1.msra.mxu0 %v2086
        %2334 = vmatprep.subr.mxu0 %v2083
        %2335 = vmatpush1.msra.mxu0 %v2082
        %2336 = vmatprep.subr.mxu0 %v2079
        %2337 = vmatpush1.msra.mxu0 %v2078
        %2338 = vmatprep.subr.mxu0 %v2075
        %2339 = vmatpush1.msra.mxu0 %v2074
        %2340 = vmatprep.subr.mxu0 %v2071
        %2341 = vmatpush1.msra.mxu0 %v2070
        %2342 = vmatprep.subr.mxu0 %v2067
        %2343 = vmatpush1.msra.mxu0 %v2066
        %2344 = vmatprep.subr.mxu0 %v2063
        %2345 = vmatpush1.msra.mxu0 %v2062
        %2346 = vmatprep.subr.mxu0 %v2059
        %2347 = vmatpush1.msra.mxu0 %v2058
        %2348 = vmatprep.subr.mxu0 %v2055
        %2349 = vmatpush1.msra.mxu0 %v2054
        %2350 = vmatprep.subr.mxu0 %v2051
        %2351 = vmatpush1.msra.mxu0 %v2050
        %2352 = vmatprep.subr.mxu0 0.0
        %2353 = vmatpush2.msra.mxu0 0.0
        %2354 = vmatprep.subr.mxu0 0.0
        %2355 = vmatpush2.msra.mxu0 0.0
        %2356 = vmatprep.subr.mxu0 0.0
        %2357 = vmatpush2.msra.mxu0 0.0
        %2358 = vmatprep.subr.mxu0 0.0
        %2359 = vmatpush2.msra.mxu0 0.0
        %2360 = vmatprep.subr.mxu0 0.0
        %2361 = vmatpush2.msra.mxu0 0.0
        %2362 = vmatprep.subr.mxu0 0.0
        %2363 = vmatpush2.msra.mxu0 0.0
        %2364 = vmatprep.subr.mxu0 0.0
        %2365 = vmatpush2.msra.mxu0 0.0
        %2366 = vmatprep.subr.mxu0 0.0
        %2367 = vmatpush2.msra.mxu0 0.0
        %2368 = vmatprep.subr.mxu0 0.0
        %2369 = vmatpush2.msra.mxu0 0.0
        %2370 = vmatprep.subr.mxu0 0.0
        %2371 = vmatpush2.msra.mxu0 0.0
        %2372 = vmatprep.subr.mxu0 0.0
        %2373 = vmatpush2.msra.mxu0 0.0
        %2374 = vmatprep.subr.mxu0 0.0
        %2375 = vmatpush2.msra.mxu0 0.0
        %2376 = vmatprep.subr.mxu0 0.0
        %2377 = vmatpush2.msra.mxu0 0.0
        %2378 = vmatprep.subr.mxu0 0.0
        %2379 = vmatpush2.msra.mxu0 0.0
        %2380 = vmatprep.subr.mxu0 0.0
        %2381 = vmatpush2.msra.mxu0 0.0
        %2382 = vmatprep.subr.mxu0 0.0
        %2383 = vmatpush2.msra.mxu0 0.0
        %2384 = vmatprep.mubr.f32.mxu0 0.0
        %2385 = vmatmul.mubr.f32.gmra.mxu0 %v2045
        %v2386 = vpop.f32.mrf.mxu0
        %v2387 = vadd.f32 %v2245, %v2386
        %v2388 = vpop.f32.mrf.mxu0
        %v2389 = vadd.f32 %v2247, %v2388
        %2390 = vdwg.mxu0
        %2391 = vmatprep.subr.mxu0 %v2113
        %2392 = vmatpush1.msra.mxu0 %v2112
        %2393 = vmatprep.subr.mxu0 %v2109
        %2394 = vmatpush1.msra.mxu0 %v2108
        %2395 = vmatprep.subr.mxu0 %v2105
        %2396 = vmatpush1.msra.mxu0 %v2104
        %2397 = vmatprep.subr.mxu0 %v2101
        %2398 = vmatpush1.msra.mxu0 %v2100
        %2399 = vmatprep.subr.mxu0 %v2097
        %2400 = vmatpush1.msra.mxu0 %v2096
        %2401 = vmatprep.subr.mxu0 %v2093
        %2402 = vmatpush1.msra.mxu0 %v2092
        %2403 = vmatprep.subr.mxu0 %v2089
        %2404 = vmatpush1.msra.mxu0 %v2088
        %2405 = vmatprep.subr.mxu0 %v2085
        %2406 = vmatpush1.msra.mxu0 %v2084
        %2407 = vmatprep.subr.mxu0 %v2081
        %2408 = vmatpush1.msra.mxu0 %v2080
        %2409 = vmatprep.subr.mxu0 %v2077
        %2410 = vmatpush1.msra.mxu0 %v2076
        %2411 = vmatprep.subr.mxu0 %v2073
        %2412 = vmatpush1.msra.mxu0 %v2072
        %2413 = vmatprep.subr.mxu0 %v2069
        %2414 = vmatpush1.msra.mxu0 %v2068
        %2415 = vmatprep.subr.mxu0 %v2065
        %2416 = vmatpush1.msra.mxu0 %v2064
        %2417 = vmatprep.subr.mxu0 %v2061
        %2418 = vmatpush1.msra.mxu0 %v2060
        %2419 = vmatprep.subr.mxu0 %v2057
        %2420 = vmatpush1.msra.mxu0 %v2056
        %2421 = vmatprep.subr.mxu0 %v2053
        %2422 = vmatpush1.msra.mxu0 %v2052
        %2423 = vmatprep.subr.mxu0 0.0
        %2424 = vmatpush2.msra.mxu0 0.0
        %2425 = vmatprep.subr.mxu0 0.0
        %2426 = vmatpush2.msra.mxu0 0.0
        %2427 = vmatprep.subr.mxu0 0.0
        %2428 = vmatpush2.msra.mxu0 0.0
        %2429 = vmatprep.subr.mxu0 0.0
        %2430 = vmatpush2.msra.mxu0 0.0
        %2431 = vmatprep.subr.mxu0 0.0
        %2432 = vmatpush2.msra.mxu0 0.0
        %2433 = vmatprep.subr.mxu0 0.0
        %2434 = vmatpush2.msra.mxu0 0.0
        %2435 = vmatprep.subr.mxu0 0.0
        %2436 = vmatpush2.msra.mxu0 0.0
        %2437 = vmatprep.subr.mxu0 0.0
        %2438 = vmatpush2.msra.mxu0 0.0
        %2439 = vmatprep.subr.mxu0 0.0
        %2440 = vmatpush2.msra.mxu0 0.0
        %2441 = vmatprep.subr.mxu0 0.0
        %2442 = vmatpush2.msra.mxu0 0.0
        %2443 = vmatprep.subr.mxu0 0.0
        %2444 = vmatpush2.msra.mxu0 0.0
        %2445 = vmatprep.subr.mxu0 0.0
        %2446 = vmatpush2.msra.mxu0 0.0
        %2447 = vmatprep.subr.mxu0 0.0
        %2448 = vmatpush2.msra.mxu0 0.0
        %2449 = vmatprep.subr.mxu0 0.0
        %2450 = vmatpush2.msra.mxu0 0.0
        %2451 = vmatprep.subr.mxu0 0.0
        %2452 = vmatpush2.msra.mxu0 0.0
        %2453 = vmatprep.subr.mxu0 0.0
        %2454 = vmatpush2.msra.mxu0 0.0
        %2455 = vmatprep.mubr.f32.mxu0 0.0
        %2456 = vmatmul.mubr.f32.gmra.mxu0 %v2045
        %v2457 = vpop.f32.mrf.mxu0
        %v2458 = vadd.f32 %v2316, %v2457
        %v2459 = vpop.f32.mrf.mxu0
        %v2460 = vadd.f32 %v2318, %v2459
        %2461 = vdwg.mxu0
        %v2462 = vld [vmem:[%s8] sm:$0xf]
        %v2464 = vlaneseq
        %v2465 = vshrl.u32 %v2464, 7
        %v2466 = vsub.s32 0, %v2465
        %v2467 = vrot.slane %v2462, %v2466
        %v2468 = vlaneseq
        %v2469 = vshrl.u32 %v2468, 7
        %v2470 = vsub.s32 1, %v2469
        %v2471 = vrot.slane %v2462, %v2470
        %v2472 = vlaneseq
        %v2473 = vshrl.u32 %v2472, 7
        %v2474 = vsub.s32 2, %v2473
        %v2475 = vrot.slane %v2462, %v2474
        %v2476 = vlaneseq
        %v2477 = vshrl.u32 %v2476, 7
        %v2478 = vsub.s32 3, %v2477
        %v2479 = vrot.slane %v2462, %v2478
        %v2484 = vadd.f32 %v2387, %v2467
        %v2485 = vadd.f32 %v2389, %v2471
        %v2486 = vadd.f32 %v2458, %v2475
        %v2487 = vadd.f32 %v2460, %v2479
        %v2488 = vsub.f32 0.0, %v2484
        %v2489 = vmul.f32 %v2488, 1.442695
        %v2490 = vpow.pop %v2489
        %v2491 = vadd.f32 %v2490, 1.0
        %v2492 = vrcp.pop %v2491
        %v2493 = vmul.f32 1.0, %v2492
        %v2494 = vsub.f32 0.0, %v2485
        %v2495 = vmul.f32 %v2494, 1.442695
        %v2496 = vpow.pop %v2495
        %v2497 = vadd.f32 %v2496, 1.0
        %v2498 = vrcp.pop %v2497
        %v2499 = vmul.f32 1.0, %v2498
        %v2500 = vtanh.pop %v2486
        %v2501 = vsub.f32 0.0, %v2487
        %v2502 = vmul.f32 %v2501, 1.442695
        %v2503 = vpow.pop %v2502
        %v2504 = vadd.f32 %v2503, 1.0
        %v2505 = vrcp.pop %v2504
        %v2506 = vmul.f32 1.0, %v2505
        %v2507 = vmul.f32 %v2499, %v2049
        %v2508 = vmul.f32 %v2493, %v2500
        %v2509 = vadd.f32 %v2507, %v2508
        %v2510 = vtanh.pop %v2509
        %v2511 = vmul.f32 %v2506, %v2510
        %2512 = vst [vmem:[#allocation4] sm:$0xff] %v2511
        %2513 = vst [vmem:[#allocation5] sm:$0xff] %v2509
        %s2514 = scalar_lea.vmem %s550, 8 [#allocation7]
        %v2515 = vld [vmem:[%s2514] sm:$0xf]
        %v2516 = vunpack.c.l.bf16 %v2515
        %v2517 = vld [vmem:[#allocation2] sm:$0xff]
        %v2518 = vld [vmem:[#allocation3] sm:$0xff]
        %v2519 = vld [vmem:[#allocation9] sm:$0xff]
        %v2520 = vld [vmem:[#allocation9 + $0x8] sm:$0xff]
        %v2521 = vld [vmem:[#allocation9 + $0x10] sm:$0xff]
        %v2522 = vld [vmem:[#allocation9 + $0x18] sm:$0xff]
        %v2523 = vld [vmem:[#allocation9 + $0x20] sm:$0xff]
        %v2524 = vld [vmem:[#allocation9 + $0x28] sm:$0xff]
        %v2525 = vld [vmem:[#allocation9 + $0x30] sm:$0xff]
        %v2526 = vld [vmem:[#allocation9 + $0x38] sm:$0xff]
        %v2527 = vld [vmem:[#allocation9 + $0x40] sm:$0xff]
        %v2528 = vld [vmem:[#allocation9 + $0x48] sm:$0xff]
        %v2529 = vld [vmem:[#allocation9 + $0x50] sm:$0xff]
        %v2530 = vld [vmem:[#allocation9 + $0x58] sm:$0xff]
        %v2531 = vld [vmem:[#allocation9 + $0x60] sm:$0xff]
        %v2532 = vld [vmem:[#allocation9 + $0x68] sm:$0xff]
        %v2533 = vld [vmem:[#allocation9 + $0x70] sm:$0xff]
        %v2534 = vld [vmem:[#allocation9 + $0x78] sm:$0xff]
        %v2535 = vld [vmem:[#allocation9 + $0x80] sm:$0xff]
        %v2536 = vld [vmem:[#allocation9 + $0x88] sm:$0xff]
        %v2537 = vld [vmem:[#allocation9 + $0x90] sm:$0xff]
        %v2538 = vld [vmem:[#allocation9 + $0x98] sm:$0xff]
        %v2539 = vld [vmem:[#allocation9 + $0xa0] sm:$0xff]
        %v2540 = vld [vmem:[#allocation9 + $0xa8] sm:$0xff]
        %v2541 = vld [vmem:[#allocation9 + $0xb0] sm:$0xff]
        %v2542 = vld [vmem:[#allocation9 + $0xb8] sm:$0xff]
        %v2543 = vld [vmem:[#allocation9 + $0xc0] sm:$0xff]
        %v2544 = vld [vmem:[#allocation9 + $0xc8] sm:$0xff]
        %v2545 = vld [vmem:[#allocation9 + $0xd0] sm:$0xff]
        %v2546 = vld [vmem:[#allocation9 + $0xd8] sm:$0xff]
        %v2547 = vld [vmem:[#allocation9 + $0xe0] sm:$0xff]
        %v2548 = vld [vmem:[#allocation9 + $0xe8] sm:$0xff]
        %v2549 = vld [vmem:[#allocation9 + $0xf0] sm:$0xff]
        %v2550 = vld [vmem:[#allocation9 + $0xf8] sm:$0xff]
        %v2551 = vld [vmem:[#allocation9 + $0x100] sm:$0xff]
        %v2552 = vld [vmem:[#allocation9 + $0x108] sm:$0xff]
        %v2553 = vld [vmem:[#allocation9 + $0x110] sm:$0xff]
        %v2554 = vld [vmem:[#allocation9 + $0x118] sm:$0xff]
        %v2555 = vld [vmem:[#allocation9 + $0x120] sm:$0xff]
        %v2556 = vld [vmem:[#allocation9 + $0x128] sm:$0xff]
        %v2557 = vld [vmem:[#allocation9 + $0x130] sm:$0xff]
        %v2558 = vld [vmem:[#allocation9 + $0x138] sm:$0xff]
        %v2559 = vld [vmem:[#allocation9 + $0x140] sm:$0xff]
        %v2560 = vld [vmem:[#allocation9 + $0x148] sm:$0xff]
        %v2561 = vld [vmem:[#allocation9 + $0x150] sm:$0xff]
        %v2562 = vld [vmem:[#allocation9 + $0x158] sm:$0xff]
        %v2563 = vld [vmem:[#allocation9 + $0x160] sm:$0xff]
        %v2564 = vld [vmem:[#allocation9 + $0x168] sm:$0xff]
        %v2565 = vld [vmem:[#allocation9 + $0x170] sm:$0xff]
        %v2566 = vld [vmem:[#allocation9 + $0x178] sm:$0xff]
        %v2567 = vld [vmem:[#allocation9 + $0x180] sm:$0xff]
        %v2568 = vld [vmem:[#allocation9 + $0x188] sm:$0xff]
        %v2569 = vld [vmem:[#allocation9 + $0x190] sm:$0xff]
        %v2570 = vld [vmem:[#allocation9 + $0x198] sm:$0xff]
        %v2571 = vld [vmem:[#allocation9 + $0x1a0] sm:$0xff]
        %v2572 = vld [vmem:[#allocation9 + $0x1a8] sm:$0xff]
        %v2573 = vld [vmem:[#allocation9 + $0x1b0] sm:$0xff]
        %v2574 = vld [vmem:[#allocation9 + $0x1b8] sm:$0xff]
        %v2575 = vld [vmem:[#allocation9 + $0x1c0] sm:$0xff]
        %v2576 = vld [vmem:[#allocation9 + $0x1c8] sm:$0xff]
        %v2577 = vld [vmem:[#allocation9 + $0x1d0] sm:$0xff]
        %v2578 = vld [vmem:[#allocation9 + $0x1d8] sm:$0xff]
        %v2579 = vld [vmem:[#allocation9 + $0x1e0] sm:$0xff]
        %v2580 = vld [vmem:[#allocation9 + $0x1e8] sm:$0xff]
        %v2581 = vld [vmem:[#allocation9 + $0x1f0] sm:$0xff]
        %v2582 = vld [vmem:[#allocation9 + $0x1f8] sm:$0xff]
        %v2583 = vld [vmem:[#allocation11] sm:$0xff]
        %v2584 = vld [vmem:[#allocation11 + $0x8] sm:$0xff]
        %v2585 = vld [vmem:[#allocation11 + $0x10] sm:$0xff]
        %v2586 = vld [vmem:[#allocation11 + $0x18] sm:$0xff]
        %v2587 = vld [vmem:[#allocation11 + $0x20] sm:$0xff]
        %v2588 = vld [vmem:[#allocation11 + $0x28] sm:$0xff]
        %v2589 = vld [vmem:[#allocation11 + $0x30] sm:$0xff]
        %v2590 = vld [vmem:[#allocation11 + $0x38] sm:$0xff]
        %v2591 = vld [vmem:[#allocation11 + $0x40] sm:$0xff]
        %v2592 = vld [vmem:[#allocation11 + $0x48] sm:$0xff]
        %v2593 = vld [vmem:[#allocation11 + $0x50] sm:$0xff]
        %v2594 = vld [vmem:[#allocation11 + $0x58] sm:$0xff]
        %v2595 = vld [vmem:[#allocation11 + $0x60] sm:$0xff]
        %v2596 = vld [vmem:[#allocation11 + $0x68] sm:$0xff]
        %v2597 = vld [vmem:[#allocation11 + $0x70] sm:$0xff]
        %v2598 = vld [vmem:[#allocation11 + $0x78] sm:$0xff]
        %v2599 = vld [vmem:[#allocation11 + $0x80] sm:$0xff]
        %v2600 = vld [vmem:[#allocation11 + $0x88] sm:$0xff]
        %v2601 = vld [vmem:[#allocation11 + $0x90] sm:$0xff]
        %v2602 = vld [vmem:[#allocation11 + $0x98] sm:$0xff]
        %v2603 = vld [vmem:[#allocation11 + $0xa0] sm:$0xff]
        %v2604 = vld [vmem:[#allocation11 + $0xa8] sm:$0xff]
        %v2605 = vld [vmem:[#allocation11 + $0xb0] sm:$0xff]
        %v2606 = vld [vmem:[#allocation11 + $0xb8] sm:$0xff]
        %v2607 = vld [vmem:[#allocation11 + $0xc0] sm:$0xff]
        %v2608 = vld [vmem:[#allocation11 + $0xc8] sm:$0xff]
        %v2609 = vld [vmem:[#allocation11 + $0xd0] sm:$0xff]
        %v2610 = vld [vmem:[#allocation11 + $0xd8] sm:$0xff]
        %v2611 = vld [vmem:[#allocation11 + $0xe0] sm:$0xff]
        %v2612 = vld [vmem:[#allocation11 + $0xe8] sm:$0xff]
        %v2613 = vld [vmem:[#allocation11 + $0xf0] sm:$0xff]
        %v2614 = vld [vmem:[#allocation11 + $0xf8] sm:$0xff]
        %v2615 = vld [vmem:[#allocation11 + $0x100] sm:$0xff]
        %v2616 = vld [vmem:[#allocation11 + $0x108] sm:$0xff]
        %v2617 = vld [vmem:[#allocation11 + $0x110] sm:$0xff]
        %v2618 = vld [vmem:[#allocation11 + $0x118] sm:$0xff]
        %v2619 = vld [vmem:[#allocation11 + $0x120] sm:$0xff]
        %v2620 = vld [vmem:[#allocation11 + $0x128] sm:$0xff]
        %v2621 = vld [vmem:[#allocation11 + $0x130] sm:$0xff]
        %v2622 = vld [vmem:[#allocation11 + $0x138] sm:$0xff]
        %v2623 = vld [vmem:[#allocation11 + $0x140] sm:$0xff]
        %v2624 = vld [vmem:[#allocation11 + $0x148] sm:$0xff]
        %v2625 = vld [vmem:[#allocation11 + $0x150] sm:$0xff]
        %v2626 = vld [vmem:[#allocation11 + $0x158] sm:$0xff]
        %v2627 = vld [vmem:[#allocation11 + $0x160] sm:$0xff]
        %v2628 = vld [vmem:[#allocation11 + $0x168] sm:$0xff]
        %v2629 = vld [vmem:[#allocation11 + $0x170] sm:$0xff]
        %v2630 = vld [vmem:[#allocation11 + $0x178] sm:$0xff]
        %v2631 = vld [vmem:[#allocation11 + $0x180] sm:$0xff]
        %v2632 = vld [vmem:[#allocation11 + $0x188] sm:$0xff]
        %v2633 = vld [vmem:[#allocation11 + $0x190] sm:$0xff]
        %v2634 = vld [vmem:[#allocation11 + $0x198] sm:$0xff]
        %v2635 = vld [vmem:[#allocation11 + $0x1a0] sm:$0xff]
        %v2636 = vld [vmem:[#allocation11 + $0x1a8] sm:$0xff]
        %v2637 = vld [vmem:[#allocation11 + $0x1b0] sm:$0xff]
        %v2638 = vld [vmem:[#allocation11 + $0x1b8] sm:$0xff]
        %v2639 = vld [vmem:[#allocation11 + $0x1c0] sm:$0xff]
        %v2640 = vld [vmem:[#allocation11 + $0x1c8] sm:$0xff]
        %v2641 = vld [vmem:[#allocation11 + $0x1d0] sm:$0xff]
        %v2642 = vld [vmem:[#allocation11 + $0x1d8] sm:$0xff]
        %v2643 = vld [vmem:[#allocation11 + $0x1e0] sm:$0xff]
        %v2644 = vld [vmem:[#allocation11 + $0x1e8] sm:$0xff]
        %v2645 = vld [vmem:[#allocation11 + $0x1f0] sm:$0xff]
        %v2646 = vld [vmem:[#allocation11 + $0x1f8] sm:$0xff]
        %2647 = vmatprep.subr.mxu0 %v2644
        %2648 = vmatpush1.msra.mxu0 %v2643
        %2649 = vmatprep.subr.mxu0 %v2640
        %2650 = vmatpush1.msra.mxu0 %v2639
        %2651 = vmatprep.subr.mxu0 %v2636
        %2652 = vmatpush1.msra.mxu0 %v2635
        %2653 = vmatprep.subr.mxu0 %v2632
        %2654 = vmatpush1.msra.mxu0 %v2631
        %2655 = vmatprep.subr.mxu0 %v2628
        %2656 = vmatpush1.msra.mxu0 %v2627
        %2657 = vmatprep.subr.mxu0 %v2624
        %2658 = vmatpush1.msra.mxu0 %v2623
        %2659 = vmatprep.subr.mxu0 %v2620
        %2660 = vmatpush1.msra.mxu0 %v2619
        %2661 = vmatprep.subr.mxu0 %v2616
        %2662 = vmatpush1.msra.mxu0 %v2615
        %2663 = vmatprep.subr.mxu0 %v2612
        %2664 = vmatpush1.msra.mxu0 %v2611
        %2665 = vmatprep.subr.mxu0 %v2608
        %2666 = vmatpush1.msra.mxu0 %v2607
        %2667 = vmatprep.subr.mxu0 %v2604
        %2668 = vmatpush1.msra.mxu0 %v2603
        %2669 = vmatprep.subr.mxu0 %v2600
        %2670 = vmatpush1.msra.mxu0 %v2599
        %2671 = vmatprep.subr.mxu0 %v2596
        %2672 = vmatpush1.msra.mxu0 %v2595
        %2673 = vmatprep.subr.mxu0 %v2592
        %2674 = vmatpush1.msra.mxu0 %v2591
        %2675 = vmatprep.subr.mxu0 %v2588
        %2676 = vmatpush1.msra.mxu0 %v2587
        %2677 = vmatprep.subr.mxu0 %v2584
        %2678 = vmatpush1.msra.mxu0 %v2583
        %2679 = vmatprep.subr.mxu0 0.0
        %2680 = vmatpush2.msra.mxu0 0.0
        %2681 = vmatprep.subr.mxu0 0.0
        %2682 = vmatpush2.msra.mxu0 0.0
        %2683 = vmatprep.subr.mxu0 0.0
        %2684 = vmatpush2.msra.mxu0 0.0
        %2685 = vmatprep.subr.mxu0 0.0
        %2686 = vmatpush2.msra.mxu0 0.0
        %2687 = vmatprep.subr.mxu0 0.0
        %2688 = vmatpush2.msra.mxu0 0.0
        %2689 = vmatprep.subr.mxu0 0.0
        %2690 = vmatpush2.msra.mxu0 0.0
        %2691 = vmatprep.subr.mxu0 0.0
        %2692 = vmatpush2.msra.mxu0 0.0
        %2693 = vmatprep.subr.mxu0 0.0
        %2694 = vmatpush2.msra.mxu0 0.0
        %2695 = vmatprep.subr.mxu0 0.0
        %2696 = vmatpush2.msra.mxu0 0.0
        %2697 = vmatprep.subr.mxu0 0.0
        %2698 = vmatpush2.msra.mxu0 0.0
        %2699 = vmatprep.subr.mxu0 0.0
        %2700 = vmatpush2.msra.mxu0 0.0
        %2701 = vmatprep.subr.mxu0 0.0
        %2702 = vmatpush2.msra.mxu0 0.0
        %2703 = vmatprep.subr.mxu0 0.0
        %2704 = vmatpush2.msra.mxu0 0.0
        %2705 = vmatprep.subr.mxu0 0.0
        %2706 = vmatpush2.msra.mxu0 0.0
        %2707 = vmatprep.subr.mxu0 0.0
        %2708 = vmatpush2.msra.mxu0 0.0
        %2709 = vmatprep.subr.mxu0 0.0
        %2710 = vmatpush2.msra.mxu0 0.0
        %2711 = vmatprep.mubr.f32.mxu0 0.0
        %2712 = vmatmul.mubr.f32.gmra.mxu0 %v2517
        %v2713 = vpop.f32.mrf.mxu0
        %v2714 = vadd.f32 0.0, %v2713
        %v2715 = vpop.f32.mrf.mxu0
        %v2716 = vadd.f32 0.0, %v2715
        %2717 = vdwg.mxu0
        %2718 = vmatprep.subr.mxu0 %v2646
        %2719 = vmatpush1.msra.mxu0 %v2645
        %2720 = vmatprep.subr.mxu0 %v2642
        %2721 = vmatpush1.msra.mxu0 %v2641
        %2722 = vmatprep.subr.mxu0 %v2638
        %2723 = vmatpush1.msra.mxu0 %v2637
        %2724 = vmatprep.subr.mxu0 %v2634
        %2725 = vmatpush1.msra.mxu0 %v2633
        %2726 = vmatprep.subr.mxu0 %v2630
        %2727 = vmatpush1.msra.mxu0 %v2629
        %2728 = vmatprep.subr.mxu0 %v2626
        %2729 = vmatpush1.msra.mxu0 %v2625
        %2730 = vmatprep.subr.mxu0 %v2622
        %2731 = vmatpush1.msra.mxu0 %v2621
        %2732 = vmatprep.subr.mxu0 %v2618
        %2733 = vmatpush1.msra.mxu0 %v2617
        %2734 = vmatprep.subr.mxu0 %v2614
        %2735 = vmatpush1.msra.mxu0 %v2613
        %2736 = vmatprep.subr.mxu0 %v2610
        %2737 = vmatpush1.msra.mxu0 %v2609
        %2738 = vmatprep.subr.mxu0 %v2606
        %2739 = vmatpush1.msra.mxu0 %v2605
        %2740 = vmatprep.subr.mxu0 %v2602
        %2741 = vmatpush1.msra.mxu0 %v2601
        %2742 = vmatprep.subr.mxu0 %v2598
        %2743 = vmatpush1.msra.mxu0 %v2597
        %2744 = vmatprep.subr.mxu0 %v2594
        %2745 = vmatpush1.msra.mxu0 %v2593
        %2746 = vmatprep.subr.mxu0 %v2590
        %2747 = vmatpush1.msra.mxu0 %v2589
        %2748 = vmatprep.subr.mxu0 %v2586
        %2749 = vmatpush1.msra.mxu0 %v2585
        %2750 = vmatprep.subr.mxu0 0.0
        %2751 = vmatpush2.msra.mxu0 0.0
        %2752 = vmatprep.subr.mxu0 0.0
        %2753 = vmatpush2.msra.mxu0 0.0
        %2754 = vmatprep.subr.mxu0 0.0
        %2755 = vmatpush2.msra.mxu0 0.0
        %2756 = vmatprep.subr.mxu0 0.0
        %2757 = vmatpush2.msra.mxu0 0.0
        %2758 = vmatprep.subr.mxu0 0.0
        %2759 = vmatpush2.msra.mxu0 0.0
        %2760 = vmatprep.subr.mxu0 0.0
        %2761 = vmatpush2.msra.mxu0 0.0
        %2762 = vmatprep.subr.mxu0 0.0
        %2763 = vmatpush2.msra.mxu0 0.0
        %2764 = vmatprep.subr.mxu0 0.0
        %2765 = vmatpush2.msra.mxu0 0.0
        %2766 = vmatprep.subr.mxu0 0.0
        %2767 = vmatpush2.msra.mxu0 0.0
        %2768 = vmatprep.subr.mxu0 0.0
        %2769 = vmatpush2.msra.mxu0 0.0
        %2770 = vmatprep.subr.mxu0 0.0
        %2771 = vmatpush2.msra.mxu0 0.0
        %2772 = vmatprep.subr.mxu0 0.0
        %2773 = vmatpush2.msra.mxu0 0.0
        %2774 = vmatprep.subr.mxu0 0.0
        %2775 = vmatpush2.msra.mxu0 0.0
        %2776 = vmatprep.subr.mxu0 0.0
        %2777 = vmatpush2.msra.mxu0 0.0
        %2778 = vmatprep.subr.mxu0 0.0
        %2779 = vmatpush2.msra.mxu0 0.0
        %2780 = vmatprep.subr.mxu0 0.0
        %2781 = vmatpush2.msra.mxu0 0.0
        %2782 = vmatprep.mubr.f32.mxu0 0.0
        %2783 = vmatmul.mubr.f32.gmra.mxu0 %v2517
        %v2784 = vpop.f32.mrf.mxu0
        %v2785 = vadd.f32 0.0, %v2784
        %v2786 = vpop.f32.mrf.mxu0
        %v2787 = vadd.f32 0.0, %v2786
        %2788 = vdwg.mxu0
        %2789 = vmatprep.subr.mxu0 %v2580
        %2790 = vmatpush1.msra.mxu0 %v2579
        %2791 = vmatprep.subr.mxu0 %v2576
        %2792 = vmatpush1.msra.mxu0 %v2575
        %2793 = vmatprep.subr.mxu0 %v2572
        %2794 = vmatpush1.msra.mxu0 %v2571
        %2795 = vmatprep.subr.mxu0 %v2568
        %2796 = vmatpush1.msra.mxu0 %v2567
        %2797 = vmatprep.subr.mxu0 %v2564
        %2798 = vmatpush1.msra.mxu0 %v2563
        %2799 = vmatprep.subr.mxu0 %v2560
        %2800 = vmatpush1.msra.mxu0 %v2559
        %2801 = vmatprep.subr.mxu0 %v2556
        %2802 = vmatpush1.msra.mxu0 %v2555
        %2803 = vmatprep.subr.mxu0 %v2552
        %2804 = vmatpush1.msra.mxu0 %v2551
        %2805 = vmatprep.subr.mxu0 %v2548
        %2806 = vmatpush1.msra.mxu0 %v2547
        %2807 = vmatprep.subr.mxu0 %v2544
        %2808 = vmatpush1.msra.mxu0 %v2543
        %2809 = vmatprep.subr.mxu0 %v2540
        %2810 = vmatpush1.msra.mxu0 %v2539
        %2811 = vmatprep.subr.mxu0 %v2536
        %2812 = vmatpush1.msra.mxu0 %v2535
        %2813 = vmatprep.subr.mxu0 %v2532
        %2814 = vmatpush1.msra.mxu0 %v2531
        %2815 = vmatprep.subr.mxu0 %v2528
        %2816 = vmatpush1.msra.mxu0 %v2527
        %2817 = vmatprep.subr.mxu0 %v2524
        %2818 = vmatpush1.msra.mxu0 %v2523
        %2819 = vmatprep.subr.mxu0 %v2520
        %2820 = vmatpush1.msra.mxu0 %v2519
        %2821 = vmatprep.subr.mxu0 0.0
        %2822 = vmatpush2.msra.mxu0 0.0
        %2823 = vmatprep.subr.mxu0 0.0
        %2824 = vmatpush2.msra.mxu0 0.0
        %2825 = vmatprep.subr.mxu0 0.0
        %2826 = vmatpush2.msra.mxu0 0.0
        %2827 = vmatprep.subr.mxu0 0.0
        %2828 = vmatpush2.msra.mxu0 0.0
        %2829 = vmatprep.subr.mxu0 0.0
        %2830 = vmatpush2.msra.mxu0 0.0
        %2831 = vmatprep.subr.mxu0 0.0
        %2832 = vmatpush2.msra.mxu0 0.0
        %2833 = vmatprep.subr.mxu0 0.0
        %2834 = vmatpush2.msra.mxu0 0.0
        %2835 = vmatprep.subr.mxu0 0.0
        %2836 = vmatpush2.msra.mxu0 0.0
        %2837 = vmatprep.subr.mxu0 0.0
        %2838 = vmatpush2.msra.mxu0 0.0
        %2839 = vmatprep.subr.mxu0 0.0
        %2840 = vmatpush2.msra.mxu0 0.0
        %2841 = vmatprep.subr.mxu0 0.0
        %2842 = vmatpush2.msra.mxu0 0.0
        %2843 = vmatprep.subr.mxu0 0.0
        %2844 = vmatpush2.msra.mxu0 0.0
        %2845 = vmatprep.subr.mxu0 0.0
        %2846 = vmatpush2.msra.mxu0 0.0
        %2847 = vmatprep.subr.mxu0 0.0
        %2848 = vmatpush2.msra.mxu0 0.0
        %2849 = vmatprep.subr.mxu0 0.0
        %2850 = vmatpush2.msra.mxu0 0.0
        %2851 = vmatprep.subr.mxu0 0.0
        %2852 = vmatpush2.msra.mxu0 0.0
        %2853 = vmatprep.mubr.f32.mxu0 0.0
        %2854 = vmatmul.mubr.f32.gmra.mxu0 %v2516
        %v2855 = vpop.f32.mrf.mxu0
        %v2856 = vadd.f32 %v2714, %v2855
        %v2857 = vpop.f32.mrf.mxu0
        %v2858 = vadd.f32 %v2716, %v2857
        %2859 = vdwg.mxu0
        %2860 = vmatprep.subr.mxu0 %v2582
        %2861 = vmatpush1.msra.mxu0 %v2581
        %2862 = vmatprep.subr.mxu0 %v2578
        %2863 = vmatpush1.msra.mxu0 %v2577
        %2864 = vmatprep.subr.mxu0 %v2574
        %2865 = vmatpush1.msra.mxu0 %v2573
        %2866 = vmatprep.subr.mxu0 %v2570
        %2867 = vmatpush1.msra.mxu0 %v2569
        %2868 = vmatprep.subr.mxu0 %v2566
        %2869 = vmatpush1.msra.mxu0 %v2565
        %2870 = vmatprep.subr.mxu0 %v2562
        %2871 = vmatpush1.msra.mxu0 %v2561
        %2872 = vmatprep.subr.mxu0 %v2558
        %2873 = vmatpush1.msra.mxu0 %v2557
        %2874 = vmatprep.subr.mxu0 %v2554
        %2875 = vmatpush1.msra.mxu0 %v2553
        %2876 = vmatprep.subr.mxu0 %v2550
        %2877 = vmatpush1.msra.mxu0 %v2549
        %2878 = vmatprep.subr.mxu0 %v2546
        %2879 = vmatpush1.msra.mxu0 %v2545
        %2880 = vmatprep.subr.mxu0 %v2542
        %2881 = vmatpush1.msra.mxu0 %v2541
        %2882 = vmatprep.subr.mxu0 %v2538
        %2883 = vmatpush1.msra.mxu0 %v2537
        %2884 = vmatprep.subr.mxu0 %v2534
        %2885 = vmatpush1.msra.mxu0 %v2533
        %2886 = vmatprep.subr.mxu0 %v2530
        %2887 = vmatpush1.msra.mxu0 %v2529
        %2888 = vmatprep.subr.mxu0 %v2526
        %2889 = vmatpush1.msra.mxu0 %v2525
        %2890 = vmatprep.subr.mxu0 %v2522
        %2891 = vmatpush1.msra.mxu0 %v2521
        %2892 = vmatprep.subr.mxu0 0.0
        %2893 = vmatpush2.msra.mxu0 0.0
        %2894 = vmatprep.subr.mxu0 0.0
        %2895 = vmatpush2.msra.mxu0 0.0
        %2896 = vmatprep.subr.mxu0 0.0
        %2897 = vmatpush2.msra.mxu0 0.0
        %2898 = vmatprep.subr.mxu0 0.0
        %2899 = vmatpush2.msra.mxu0 0.0
        %2900 = vmatprep.subr.mxu0 0.0
        %2901 = vmatpush2.msra.mxu0 0.0
        %2902 = vmatprep.subr.mxu0 0.0
        %2903 = vmatpush2.msra.mxu0 0.0
        %2904 = vmatprep.subr.mxu0 0.0
        %2905 = vmatpush2.msra.mxu0 0.0
        %2906 = vmatprep.subr.mxu0 0.0
        %2907 = vmatpush2.msra.mxu0 0.0
        %2908 = vmatprep.subr.mxu0 0.0
        %2909 = vmatpush2.msra.mxu0 0.0
        %2910 = vmatprep.subr.mxu0 0.0
        %2911 = vmatpush2.msra.mxu0 0.0
        %2912 = vmatprep.subr.mxu0 0.0
        %2913 = vmatpush2.msra.mxu0 0.0
        %2914 = vmatprep.subr.mxu0 0.0
        %2915 = vmatpush2.msra.mxu0 0.0
        %2916 = vmatprep.subr.mxu0 0.0
        %2917 = vmatpush2.msra.mxu0 0.0
        %2918 = vmatprep.subr.mxu0 0.0
        %2919 = vmatpush2.msra.mxu0 0.0
        %2920 = vmatprep.subr.mxu0 0.0
        %2921 = vmatpush2.msra.mxu0 0.0
        %2922 = vmatprep.subr.mxu0 0.0
        %2923 = vmatpush2.msra.mxu0 0.0
        %2924 = vmatprep.mubr.f32.mxu0 0.0
        %2925 = vmatmul.mubr.f32.gmra.mxu0 %v2516
        %v2926 = vpop.f32.mrf.mxu0
        %v2927 = vadd.f32 %v2785, %v2926
        %v2928 = vpop.f32.mrf.mxu0
        %v2929 = vadd.f32 %v2787, %v2928
        %2930 = vdwg.mxu0
        %v2931 = vld [vmem:[%s5] sm:$0xf]
        %v2933 = vlaneseq
        %v2934 = vshrl.u32 %v2933, 7
        %v2935 = vsub.s32 0, %v2934
        %v2936 = vrot.slane %v2931, %v2935
        %v2937 = vlaneseq
        %v2938 = vshrl.u32 %v2937, 7
        %v2939 = vsub.s32 1, %v2938
        %v2940 = vrot.slane %v2931, %v2939
        %v2941 = vlaneseq
        %v2942 = vshrl.u32 %v2941, 7
        %v2943 = vsub.s32 2, %v2942
        %v2944 = vrot.slane %v2931, %v2943
        %v2945 = vlaneseq
        %v2946 = vshrl.u32 %v2945, 7
        %v2947 = vsub.s32 3, %v2946
        %v2948 = vrot.slane %v2931, %v2947
        %v2953 = vadd.f32 %v2856, %v2936
        %v2954 = vadd.f32 %v2858, %v2940
        %v2955 = vadd.f32 %v2927, %v2944
        %v2956 = vadd.f32 %v2929, %v2948
        %v2957 = vsub.f32 0.0, %v2953
        %v2958 = vmul.f32 %v2957, 1.442695
        %v2959 = vpow.pop %v2958
        %v2960 = vadd.f32 %v2959, 1.0
        %v2961 = vrcp.pop %v2960
        %v2962 = vmul.f32 1.0, %v2961
        %v2963 = vsub.f32 0.0, %v2954
        %v2964 = vmul.f32 %v2963, 1.442695
        %v2965 = vpow.pop %v2964
        %v2966 = vadd.f32 %v2965, 1.0
        %v2967 = vrcp.pop %v2966
        %v2968 = vmul.f32 1.0, %v2967
        %v2969 = vtanh.pop %v2955
        %v2970 = vsub.f32 0.0, %v2956
        %v2971 = vmul.f32 %v2970, 1.442695
        %v2972 = vpow.pop %v2971
        %v2973 = vadd.f32 %v2972, 1.0
        %v2974 = vrcp.pop %v2973
        %v2975 = vmul.f32 1.0, %v2974
        %v2976 = vmul.f32 %v2968, %v2518
        %v2977 = vmul.f32 %v2962, %v2969
        %v2978 = vadd.f32 %v2976, %v2977
        %v2979 = vtanh.pop %v2978
        %v2980 = vmul.f32 %v2975, %v2979
        %2981 = vst [vmem:[#allocation2] sm:$0xff] %v2980
        %2982 = vst [vmem:[#allocation3] sm:$0xff] %v2978
        %v2983 = vld [vmem:[#allocation4] sm:$0xff]
        %v2984 = vld [vmem:[#allocation5] sm:$0xff]
        %v2985 = vld [vmem:[#allocation12] sm:$0xff]
        %v2986 = vld [vmem:[#allocation12 + $0x8] sm:$0xff]
        %v2987 = vld [vmem:[#allocation12 + $0x10] sm:$0xff]
        %v2988 = vld [vmem:[#allocation12 + $0x18] sm:$0xff]
        %v2989 = vld [vmem:[#allocation12 + $0x20] sm:$0xff]
        %v2990 = vld [vmem:[#allocation12 + $0x28] sm:$0xff]
        %v2991 = vld [vmem:[#allocation12 + $0x30] sm:$0xff]
        %v2992 = vld [vmem:[#allocation12 + $0x38] sm:$0xff]
        %v2993 = vld [vmem:[#allocation12 + $0x40] sm:$0xff]
        %v2994 = vld [vmem:[#allocation12 + $0x48] sm:$0xff]
        %v2995 = vld [vmem:[#allocation12 + $0x50] sm:$0xff]
        %v2996 = vld [vmem:[#allocation12 + $0x58] sm:$0xff]
        %v2997 = vld [vmem:[#allocation12 + $0x60] sm:$0xff]
        %v2998 = vld [vmem:[#allocation12 + $0x68] sm:$0xff]
        %v2999 = vld [vmem:[#allocation12 + $0x70] sm:$0xff]
        %v3000 = vld [vmem:[#allocation12 + $0x78] sm:$0xff]
        %v3001 = vld [vmem:[#allocation12 + $0x80] sm:$0xff]
        %v3002 = vld [vmem:[#allocation12 + $0x88] sm:$0xff]
        %v3003 = vld [vmem:[#allocation12 + $0x90] sm:$0xff]
        %v3004 = vld [vmem:[#allocation12 + $0x98] sm:$0xff]
        %v3005 = vld [vmem:[#allocation12 + $0xa0] sm:$0xff]
        %v3006 = vld [vmem:[#allocation12 + $0xa8] sm:$0xff]
        %v3007 = vld [vmem:[#allocation12 + $0xb0] sm:$0xff]
        %v3008 = vld [vmem:[#allocation12 + $0xb8] sm:$0xff]
        %v3009 = vld [vmem:[#allocation12 + $0xc0] sm:$0xff]
        %v3010 = vld [vmem:[#allocation12 + $0xc8] sm:$0xff]
        %v3011 = vld [vmem:[#allocation12 + $0xd0] sm:$0xff]
        %v3012 = vld [vmem:[#allocation12 + $0xd8] sm:$0xff]
        %v3013 = vld [vmem:[#allocation12 + $0xe0] sm:$0xff]
        %v3014 = vld [vmem:[#allocation12 + $0xe8] sm:$0xff]
        %v3015 = vld [vmem:[#allocation12 + $0xf0] sm:$0xff]
        %v3016 = vld [vmem:[#allocation12 + $0xf8] sm:$0xff]
        %v3017 = vld [vmem:[#allocation12 + $0x100] sm:$0xff]
        %v3018 = vld [vmem:[#allocation12 + $0x108] sm:$0xff]
        %v3019 = vld [vmem:[#allocation12 + $0x110] sm:$0xff]
        %v3020 = vld [vmem:[#allocation12 + $0x118] sm:$0xff]
        %v3021 = vld [vmem:[#allocation12 + $0x120] sm:$0xff]
        %v3022 = vld [vmem:[#allocation12 + $0x128] sm:$0xff]
        %v3023 = vld [vmem:[#allocation12 + $0x130] sm:$0xff]
        %v3024 = vld [vmem:[#allocation12 + $0x138] sm:$0xff]
        %v3025 = vld [vmem:[#allocation12 + $0x140] sm:$0xff]
        %v3026 = vld [vmem:[#allocation12 + $0x148] sm:$0xff]
        %v3027 = vld [vmem:[#allocation12 + $0x150] sm:$0xff]
        %v3028 = vld [vmem:[#allocation12 + $0x158] sm:$0xff]
        %v3029 = vld [vmem:[#allocation12 + $0x160] sm:$0xff]
        %v3030 = vld [vmem:[#allocation12 + $0x168] sm:$0xff]
        %v3031 = vld [vmem:[#allocation12 + $0x170] sm:$0xff]
        %v3032 = vld [vmem:[#allocation12 + $0x178] sm:$0xff]
        %v3033 = vld [vmem:[#allocation12 + $0x180] sm:$0xff]
        %v3034 = vld [vmem:[#allocation12 + $0x188] sm:$0xff]
        %v3035 = vld [vmem:[#allocation12 + $0x190] sm:$0xff]
        %v3036 = vld [vmem:[#allocation12 + $0x198] sm:$0xff]
        %v3037 = vld [vmem:[#allocation12 + $0x1a0] sm:$0xff]
        %v3038 = vld [vmem:[#allocation12 + $0x1a8] sm:$0xff]
        %v3039 = vld [vmem:[#allocation12 + $0x1b0] sm:$0xff]
        %v3040 = vld [vmem:[#allocation12 + $0x1b8] sm:$0xff]
        %v3041 = vld [vmem:[#allocation12 + $0x1c0] sm:$0xff]
        %v3042 = vld [vmem:[#allocation12 + $0x1c8] sm:$0xff]
        %v3043 = vld [vmem:[#allocation12 + $0x1d0] sm:$0xff]
        %v3044 = vld [vmem:[#allocation12 + $0x1d8] sm:$0xff]
        %v3045 = vld [vmem:[#allocation12 + $0x1e0] sm:$0xff]
        %v3046 = vld [vmem:[#allocation12 + $0x1e8] sm:$0xff]
        %v3047 = vld [vmem:[#allocation12 + $0x1f0] sm:$0xff]
        %v3048 = vld [vmem:[#allocation12 + $0x1f8] sm:$0xff]
        %v3049 = vld [vmem:[#allocation14] sm:$0xff]
        %v3050 = vld [vmem:[#allocation14 + $0x8] sm:$0xff]
        %v3051 = vld [vmem:[#allocation14 + $0x10] sm:$0xff]
        %v3052 = vld [vmem:[#allocation14 + $0x18] sm:$0xff]
        %v3053 = vld [vmem:[#allocation14 + $0x20] sm:$0xff]
        %v3054 = vld [vmem:[#allocation14 + $0x28] sm:$0xff]
        %v3055 = vld [vmem:[#allocation14 + $0x30] sm:$0xff]
        %v3056 = vld [vmem:[#allocation14 + $0x38] sm:$0xff]
        %v3057 = vld [vmem:[#allocation14 + $0x40] sm:$0xff]
        %v3058 = vld [vmem:[#allocation14 + $0x48] sm:$0xff]
        %v3059 = vld [vmem:[#allocation14 + $0x50] sm:$0xff]
        %v3060 = vld [vmem:[#allocation14 + $0x58] sm:$0xff]
        %v3061 = vld [vmem:[#allocation14 + $0x60] sm:$0xff]
        %v3062 = vld [vmem:[#allocation14 + $0x68] sm:$0xff]
        %v3063 = vld [vmem:[#allocation14 + $0x70] sm:$0xff]
        %v3064 = vld [vmem:[#allocation14 + $0x78] sm:$0xff]
        %v3065 = vld [vmem:[#allocation14 + $0x80] sm:$0xff]
        %v3066 = vld [vmem:[#allocation14 + $0x88] sm:$0xff]
        %v3067 = vld [vmem:[#allocation14 + $0x90] sm:$0xff]
        %v3068 = vld [vmem:[#allocation14 + $0x98] sm:$0xff]
        %v3069 = vld [vmem:[#allocation14 + $0xa0] sm:$0xff]
        %v3070 = vld [vmem:[#allocation14 + $0xa8] sm:$0xff]
        %v3071 = vld [vmem:[#allocation14 + $0xb0] sm:$0xff]
        %v3072 = vld [vmem:[#allocation14 + $0xb8] sm:$0xff]
        %v3073 = vld [vmem:[#allocation14 + $0xc0] sm:$0xff]
        %v3074 = vld [vmem:[#allocation14 + $0xc8] sm:$0xff]
        %v3075 = vld [vmem:[#allocation14 + $0xd0] sm:$0xff]
        %v3076 = vld [vmem:[#allocation14 + $0xd8] sm:$0xff]
        %v3077 = vld [vmem:[#allocation14 + $0xe0] sm:$0xff]
        %v3078 = vld [vmem:[#allocation14 + $0xe8] sm:$0xff]
        %v3079 = vld [vmem:[#allocation14 + $0xf0] sm:$0xff]
        %v3080 = vld [vmem:[#allocation14 + $0xf8] sm:$0xff]
        %v3081 = vld [vmem:[#allocation14 + $0x100] sm:$0xff]
        %v3082 = vld [vmem:[#allocation14 + $0x108] sm:$0xff]
        %v3083 = vld [vmem:[#allocation14 + $0x110] sm:$0xff]
        %v3084 = vld [vmem:[#allocation14 + $0x118] sm:$0xff]
        %v3085 = vld [vmem:[#allocation14 + $0x120] sm:$0xff]
        %v3086 = vld [vmem:[#allocation14 + $0x128] sm:$0xff]
        %v3087 = vld [vmem:[#allocation14 + $0x130] sm:$0xff]
        %v3088 = vld [vmem:[#allocation14 + $0x138] sm:$0xff]
        %v3089 = vld [vmem:[#allocation14 + $0x140] sm:$0xff]
        %v3090 = vld [vmem:[#allocation14 + $0x148] sm:$0xff]
        %v3091 = vld [vmem:[#allocation14 + $0x150] sm:$0xff]
        %v3092 = vld [vmem:[#allocation14 + $0x158] sm:$0xff]
        %v3093 = vld [vmem:[#allocation14 + $0x160] sm:$0xff]
        %v3094 = vld [vmem:[#allocation14 + $0x168] sm:$0xff]
        %v3095 = vld [vmem:[#allocation14 + $0x170] sm:$0xff]
        %v3096 = vld [vmem:[#allocation14 + $0x178] sm:$0xff]
        %v3097 = vld [vmem:[#allocation14 + $0x180] sm:$0xff]
        %v3098 = vld [vmem:[#allocation14 + $0x188] sm:$0xff]
        %v3099 = vld [vmem:[#allocation14 + $0x190] sm:$0xff]
        %v3100 = vld [vmem:[#allocation14 + $0x198] sm:$0xff]
        %v3101 = vld [vmem:[#allocation14 + $0x1a0] sm:$0xff]
        %v3102 = vld [vmem:[#allocation14 + $0x1a8] sm:$0xff]
        %v3103 = vld [vmem:[#allocation14 + $0x1b0] sm:$0xff]
        %v3104 = vld [vmem:[#allocation14 + $0x1b8] sm:$0xff]
        %v3105 = vld [vmem:[#allocation14 + $0x1c0] sm:$0xff]
        %v3106 = vld [vmem:[#allocation14 + $0x1c8] sm:$0xff]
        %v3107 = vld [vmem:[#allocation14 + $0x1d0] sm:$0xff]
        %v3108 = vld [vmem:[#allocation14 + $0x1d8] sm:$0xff]
        %v3109 = vld [vmem:[#allocation14 + $0x1e0] sm:$0xff]
        %v3110 = vld [vmem:[#allocation14 + $0x1e8] sm:$0xff]
        %v3111 = vld [vmem:[#allocation14 + $0x1f0] sm:$0xff]
        %v3112 = vld [vmem:[#allocation14 + $0x1f8] sm:$0xff]
        %3113 = vmatprep.subr.mxu0 %v3110
        %3114 = vmatpush1.msra.mxu0 %v3109
        %3115 = vmatprep.subr.mxu0 %v3106
        %3116 = vmatpush1.msra.mxu0 %v3105
        %3117 = vmatprep.subr.mxu0 %v3102
        %3118 = vmatpush1.msra.mxu0 %v3101
        %3119 = vmatprep.subr.mxu0 %v3098
        %3120 = vmatpush1.msra.mxu0 %v3097
        %3121 = vmatprep.subr.mxu0 %v3094
        %3122 = vmatpush1.msra.mxu0 %v3093
        %3123 = vmatprep.subr.mxu0 %v3090
        %3124 = vmatpush1.msra.mxu0 %v3089
        %3125 = vmatprep.subr.mxu0 %v3086
        %3126 = vmatpush1.msra.mxu0 %v3085
        %3127 = vmatprep.subr.mxu0 %v3082
        %3128 = vmatpush1.msra.mxu0 %v3081
        %3129 = vmatprep.subr.mxu0 %v3078
        %3130 = vmatpush1.msra.mxu0 %v3077
        %3131 = vmatprep.subr.mxu0 %v3074
        %3132 = vmatpush1.msra.mxu0 %v3073
        %3133 = vmatprep.subr.mxu0 %v3070
        %3134 = vmatpush1.msra.mxu0 %v3069
        %3135 = vmatprep.subr.mxu0 %v3066
        %3136 = vmatpush1.msra.mxu0 %v3065
        %3137 = vmatprep.subr.mxu0 %v3062
        %3138 = vmatpush1.msra.mxu0 %v3061
        %3139 = vmatprep.subr.mxu0 %v3058
        %3140 = vmatpush1.msra.mxu0 %v3057
        %3141 = vmatprep.subr.mxu0 %v3054
        %3142 = vmatpush1.msra.mxu0 %v3053
        %3143 = vmatprep.subr.mxu0 %v3050
        %3144 = vmatpush1.msra.mxu0 %v3049
        %3145 = vmatprep.subr.mxu0 0.0
        %3146 = vmatpush2.msra.mxu0 0.0
        %3147 = vmatprep.subr.mxu0 0.0
        %3148 = vmatpush2.msra.mxu0 0.0
        %3149 = vmatprep.subr.mxu0 0.0
        %3150 = vmatpush2.msra.mxu0 0.0
        %3151 = vmatprep.subr.mxu0 0.0
        %3152 = vmatpush2.msra.mxu0 0.0
        %3153 = vmatprep.subr.mxu0 0.0
        %3154 = vmatpush2.msra.mxu0 0.0
        %3155 = vmatprep.subr.mxu0 0.0
        %3156 = vmatpush2.msra.mxu0 0.0
        %3157 = vmatprep.subr.mxu0 0.0
        %3158 = vmatpush2.msra.mxu0 0.0
        %3159 = vmatprep.subr.mxu0 0.0
        %3160 = vmatpush2.msra.mxu0 0.0
        %3161 = vmatprep.subr.mxu0 0.0
        %3162 = vmatpush2.msra.mxu0 0.0
        %3163 = vmatprep.subr.mxu0 0.0
        %3164 = vmatpush2.msra.mxu0 0.0
        %3165 = vmatprep.subr.mxu0 0.0
        %3166 = vmatpush2.msra.mxu0 0.0
        %3167 = vmatprep.subr.mxu0 0.0
        %3168 = vmatpush2.msra.mxu0 0.0
        %3169 = vmatprep.subr.mxu0 0.0
        %3170 = vmatpush2.msra.mxu0 0.0
        %3171 = vmatprep.subr.mxu0 0.0
        %3172 = vmatpush2.msra.mxu0 0.0
        %3173 = vmatprep.subr.mxu0 0.0
        %3174 = vmatpush2.msra.mxu0 0.0
        %3175 = vmatprep.subr.mxu0 0.0
        %3176 = vmatpush2.msra.mxu0 0.0
        %3177 = vmatprep.mubr.f32.mxu0 0.0
        %3178 = vmatmul.mubr.f32.gmra.mxu0 %v2983
        %v3179 = vpop.f32.mrf.mxu0
        %v3180 = vadd.f32 0.0, %v3179
        %v3181 = vpop.f32.mrf.mxu0
        %v3182 = vadd.f32 0.0, %v3181
        %3183 = vdwg.mxu0
        %3184 = vmatprep.subr.mxu0 %v3112
        %3185 = vmatpush1.msra.mxu0 %v3111
        %3186 = vmatprep.subr.mxu0 %v3108
        %3187 = vmatpush1.msra.mxu0 %v3107
        %3188 = vmatprep.subr.mxu0 %v3104
        %3189 = vmatpush1.msra.mxu0 %v3103
        %3190 = vmatprep.subr.mxu0 %v3100
        %3191 = vmatpush1.msra.mxu0 %v3099
        %3192 = vmatprep.subr.mxu0 %v3096
        %3193 = vmatpush1.msra.mxu0 %v3095
        %3194 = vmatprep.subr.mxu0 %v3092
        %3195 = vmatpush1.msra.mxu0 %v3091
        %3196 = vmatprep.subr.mxu0 %v3088
        %3197 = vmatpush1.msra.mxu0 %v3087
        %3198 = vmatprep.subr.mxu0 %v3084
        %3199 = vmatpush1.msra.mxu0 %v3083
        %3200 = vmatprep.subr.mxu0 %v3080
        %3201 = vmatpush1.msra.mxu0 %v3079
        %3202 = vmatprep.subr.mxu0 %v3076
        %3203 = vmatpush1.msra.mxu0 %v3075
        %3204 = vmatprep.subr.mxu0 %v3072
        %3205 = vmatpush1.msra.mxu0 %v3071
        %3206 = vmatprep.subr.mxu0 %v3068
        %3207 = vmatpush1.msra.mxu0 %v3067
        %3208 = vmatprep.subr.mxu0 %v3064
        %3209 = vmatpush1.msra.mxu0 %v3063
        %3210 = vmatprep.subr.mxu0 %v3060
        %3211 = vmatpush1.msra.mxu0 %v3059
        %3212 = vmatprep.subr.mxu0 %v3056
        %3213 = vmatpush1.msra.mxu0 %v3055
        %3214 = vmatprep.subr.mxu0 %v3052
        %3215 = vmatpush1.msra.mxu0 %v3051
        %3216 = vmatprep.subr.mxu0 0.0
        %3217 = vmatpush2.msra.mxu0 0.0
        %3218 = vmatprep.subr.mxu0 0.0
        %3219 = vmatpush2.msra.mxu0 0.0
        %3220 = vmatprep.subr.mxu0 0.0
        %3221 = vmatpush2.msra.mxu0 0.0
        %3222 = vmatprep.subr.mxu0 0.0
        %3223 = vmatpush2.msra.mxu0 0.0
        %3224 = vmatprep.subr.mxu0 0.0
        %3225 = vmatpush2.msra.mxu0 0.0
        %3226 = vmatprep.subr.mxu0 0.0
        %3227 = vmatpush2.msra.mxu0 0.0
        %3228 = vmatprep.subr.mxu0 0.0
        %3229 = vmatpush2.msra.mxu0 0.0
        %3230 = vmatprep.subr.mxu0 0.0
        %3231 = vmatpush2.msra.mxu0 0.0
        %3232 = vmatprep.subr.mxu0 0.0
        %3233 = vmatpush2.msra.mxu0 0.0
        %3234 = vmatprep.subr.mxu0 0.0
        %3235 = vmatpush2.msra.mxu0 0.0
        %3236 = vmatprep.subr.mxu0 0.0
        %3237 = vmatpush2.msra.mxu0 0.0
        %3238 = vmatprep.subr.mxu0 0.0
        %3239 = vmatpush2.msra.mxu0 0.0
        %3240 = vmatprep.subr.mxu0 0.0
        %3241 = vmatpush2.msra.mxu0 0.0
        %3242 = vmatprep.subr.mxu0 0.0
        %3243 = vmatpush2.msra.mxu0 0.0
        %3244 = vmatprep.subr.mxu0 0.0
        %3245 = vmatpush2.msra.mxu0 0.0
        %3246 = vmatprep.subr.mxu0 0.0
        %3247 = vmatpush2.msra.mxu0 0.0
        %3248 = vmatprep.mubr.f32.mxu0 0.0
        %3249 = vmatmul.mubr.f32.gmra.mxu0 %v2983
        %v3250 = vpop.f32.mrf.mxu0
        %v3251 = vadd.f32 0.0, %v3250
        %v3252 = vpop.f32.mrf.mxu0
        %v3253 = vadd.f32 0.0, %v3252
        %3254 = vdwg.mxu0
        %3255 = vmatprep.subr.mxu0 %v3046
        %3256 = vmatpush1.msra.mxu0 %v3045
        %3257 = vmatprep.subr.mxu0 %v3042
        %3258 = vmatpush1.msra.mxu0 %v3041
        %3259 = vmatprep.subr.mxu0 %v3038
        %3260 = vmatpush1.msra.mxu0 %v3037
        %3261 = vmatprep.subr.mxu0 %v3034
        %3262 = vmatpush1.msra.mxu0 %v3033
        %3263 = vmatprep.subr.mxu0 %v3030
        %3264 = vmatpush1.msra.mxu0 %v3029
        %3265 = vmatprep.subr.mxu0 %v3026
        %3266 = vmatpush1.msra.mxu0 %v3025
        %3267 = vmatprep.subr.mxu0 %v3022
        %3268 = vmatpush1.msra.mxu0 %v3021
        %3269 = vmatprep.subr.mxu0 %v3018
        %3270 = vmatpush1.msra.mxu0 %v3017
        %3271 = vmatprep.subr.mxu0 %v3014
        %3272 = vmatpush1.msra.mxu0 %v3013
        %3273 = vmatprep.subr.mxu0 %v3010
        %3274 = vmatpush1.msra.mxu0 %v3009
        %3275 = vmatprep.subr.mxu0 %v3006
        %3276 = vmatpush1.msra.mxu0 %v3005
        %3277 = vmatprep.subr.mxu0 %v3002
        %3278 = vmatpush1.msra.mxu0 %v3001
        %3279 = vmatprep.subr.mxu0 %v2998
        %3280 = vmatpush1.msra.mxu0 %v2997
        %3281 = vmatprep.subr.mxu0 %v2994
        %3282 = vmatpush1.msra.mxu0 %v2993
        %3283 = vmatprep.subr.mxu0 %v2990
        %3284 = vmatpush1.msra.mxu0 %v2989
        %3285 = vmatprep.subr.mxu0 %v2986
        %3286 = vmatpush1.msra.mxu0 %v2985
        %3287 = vmatprep.subr.mxu0 0.0
        %3288 = vmatpush2.msra.mxu0 0.0
        %3289 = vmatprep.subr.mxu0 0.0
        %3290 = vmatpush2.msra.mxu0 0.0
        %3291 = vmatprep.subr.mxu0 0.0
        %3292 = vmatpush2.msra.mxu0 0.0
        %3293 = vmatprep.subr.mxu0 0.0
        %3294 = vmatpush2.msra.mxu0 0.0
        %3295 = vmatprep.subr.mxu0 0.0
        %3296 = vmatpush2.msra.mxu0 0.0
        %3297 = vmatprep.subr.mxu0 0.0
        %3298 = vmatpush2.msra.mxu0 0.0
        %3299 = vmatprep.subr.mxu0 0.0
        %3300 = vmatpush2.msra.mxu0 0.0
        %3301 = vmatprep.subr.mxu0 0.0
        %3302 = vmatpush2.msra.mxu0 0.0
        %3303 = vmatprep.subr.mxu0 0.0
        %3304 = vmatpush2.msra.mxu0 0.0
        %3305 = vmatprep.subr.mxu0 0.0
        %3306 = vmatpush2.msra.mxu0 0.0
        %3307 = vmatprep.subr.mxu0 0.0
        %3308 = vmatpush2.msra.mxu0 0.0
        %3309 = vmatprep.subr.mxu0 0.0
        %3310 = vmatpush2.msra.mxu0 0.0
        %3311 = vmatprep.subr.mxu0 0.0
        %3312 = vmatpush2.msra.mxu0 0.0
        %3313 = vmatprep.subr.mxu0 0.0
        %3314 = vmatpush2.msra.mxu0 0.0
        %3315 = vmatprep.subr.mxu0 0.0
        %3316 = vmatpush2.msra.mxu0 0.0
        %3317 = vmatprep.subr.mxu0 0.0
        %3318 = vmatpush2.msra.mxu0 0.0
        %3319 = vmatprep.mubr.f32.mxu0 0.0
        %3320 = vmatmul.mubr.f32.gmra.mxu0 %v2980
        %v3321 = vpop.f32.mrf.mxu0
        %v3322 = vadd.f32 %v3180, %v3321
        %v3323 = vpop.f32.mrf.mxu0
        %v3324 = vadd.f32 %v3182, %v3323
        %3325 = vdwg.mxu0
        %3326 = vmatprep.subr.mxu0 %v3048
        %3327 = vmatpush1.msra.mxu0 %v3047
        %3328 = vmatprep.subr.mxu0 %v3044
        %3329 = vmatpush1.msra.mxu0 %v3043
        %3330 = vmatprep.subr.mxu0 %v3040
        %3331 = vmatpush1.msra.mxu0 %v3039
        %3332 = vmatprep.subr.mxu0 %v3036
        %3333 = vmatpush1.msra.mxu0 %v3035
        %3334 = vmatprep.subr.mxu0 %v3032
        %3335 = vmatpush1.msra.mxu0 %v3031
        %3336 = vmatprep.subr.mxu0 %v3028
        %3337 = vmatpush1.msra.mxu0 %v3027
        %3338 = vmatprep.subr.mxu0 %v3024
        %3339 = vmatpush1.msra.mxu0 %v3023
        %3340 = vmatprep.subr.mxu0 %v3020
        %3341 = vmatpush1.msra.mxu0 %v3019
        %3342 = vmatprep.subr.mxu0 %v3016
        %3343 = vmatpush1.msra.mxu0 %v3015
        %3344 = vmatprep.subr.mxu0 %v3012
        %3345 = vmatpush1.msra.mxu0 %v3011
        %3346 = vmatprep.subr.mxu0 %v3008
        %3347 = vmatpush1.msra.mxu0 %v3007
        %3348 = vmatprep.subr.mxu0 %v3004
        %3349 = vmatpush1.msra.mxu0 %v3003
        %3350 = vmatprep.subr.mxu0 %v3000
        %3351 = vmatpush1.msra.mxu0 %v2999
        %3352 = vmatprep.subr.mxu0 %v2996
        %3353 = vmatpush1.msra.mxu0 %v2995
        %3354 = vmatprep.subr.mxu0 %v2992
        %3355 = vmatpush1.msra.mxu0 %v2991
        %3356 = vmatprep.subr.mxu0 %v2988
        %3357 = vmatpush1.msra.mxu0 %v2987
        %3358 = vmatprep.subr.mxu0 0.0
        %3359 = vmatpush2.msra.mxu0 0.0
        %3360 = vmatprep.subr.mxu0 0.0
        %3361 = vmatpush2.msra.mxu0 0.0
        %3362 = vmatprep.subr.mxu0 0.0
        %3363 = vmatpush2.msra.mxu0 0.0
        %3364 = vmatprep.subr.mxu0 0.0
        %3365 = vmatpush2.msra.mxu0 0.0
        %3366 = vmatprep.subr.mxu0 0.0
        %3367 = vmatpush2.msra.mxu0 0.0
        %3368 = vmatprep.subr.mxu0 0.0
        %3369 = vmatpush2.msra.mxu0 0.0
        %3370 = vmatprep.subr.mxu0 0.0
        %3371 = vmatpush2.msra.mxu0 0.0
        %3372 = vmatprep.subr.mxu0 0.0
        %3373 = vmatpush2.msra.mxu0 0.0
        %3374 = vmatprep.subr.mxu0 0.0
        %3375 = vmatpush2.msra.mxu0 0.0
        %3376 = vmatprep.subr.mxu0 0.0
        %3377 = vmatpush2.msra.mxu0 0.0
        %3378 = vmatprep.subr.mxu0 0.0
        %3379 = vmatpush2.msra.mxu0 0.0
        %3380 = vmatprep.subr.mxu0 0.0
        %3381 = vmatpush2.msra.mxu0 0.0
        %3382 = vmatprep.subr.mxu0 0.0
        %3383 = vmatpush2.msra.mxu0 0.0
        %3384 = vmatprep.subr.mxu0 0.0
        %3385 = vmatpush2.msra.mxu0 0.0
        %3386 = vmatprep.subr.mxu0 0.0
        %3387 = vmatpush2.msra.mxu0 0.0
        %3388 = vmatprep.subr.mxu0 0.0
        %3389 = vmatpush2.msra.mxu0 0.0
        %3390 = vmatprep.mubr.f32.mxu0 0.0
        %3391 = vmatmul.mubr.f32.gmra.mxu0 %v2980
        %v3392 = vpop.f32.mrf.mxu0
        %v3393 = vadd.f32 %v3251, %v3392
        %v3394 = vpop.f32.mrf.mxu0
        %v3395 = vadd.f32 %v3253, %v3394
        %3396 = vdwg.mxu0
        %v3397 = vld [vmem:[%s8] sm:$0xf]
        %v3399 = vlaneseq
        %v3400 = vshrl.u32 %v3399, 7
        %v3401 = vsub.s32 0, %v3400
        %v3402 = vrot.slane %v3397, %v3401
        %v3403 = vlaneseq
        %v3404 = vshrl.u32 %v3403, 7
        %v3405 = vsub.s32 1, %v3404
        %v3406 = vrot.slane %v3397, %v3405
        %v3407 = vlaneseq
        %v3408 = vshrl.u32 %v3407, 7
        %v3409 = vsub.s32 2, %v3408
        %v3410 = vrot.slane %v3397, %v3409
        %v3411 = vlaneseq
        %v3412 = vshrl.u32 %v3411, 7
        %v3413 = vsub.s32 3, %v3412
        %v3414 = vrot.slane %v3397, %v3413
        %v3419 = vadd.f32 %v3322, %v3402
        %v3420 = vadd.f32 %v3324, %v3406
        %v3421 = vadd.f32 %v3393, %v3410
        %v3422 = vadd.f32 %v3395, %v3414
        %v3423 = vsub.f32 0.0, %v3419
        %v3424 = vmul.f32 %v3423, 1.442695
        %v3425 = vpow.pop %v3424
        %v3426 = vadd.f32 %v3425, 1.0
        %v3427 = vrcp.pop %v3426
        %v3428 = vmul.f32 1.0, %v3427
        %v3429 = vsub.f32 0.0, %v3420
        %v3430 = vmul.f32 %v3429, 1.442695
        %v3431 = vpow.pop %v3430
        %v3432 = vadd.f32 %v3431, 1.0
        %v3433 = vrcp.pop %v3432
        %v3434 = vmul.f32 1.0, %v3433
        %v3435 = vtanh.pop %v3421
        %v3436 = vsub.f32 0.0, %v3422
        %v3437 = vmul.f32 %v3436, 1.442695
        %v3438 = vpow.pop %v3437
        %v3439 = vadd.f32 %v3438, 1.0
        %v3440 = vrcp.pop %v3439
        %v3441 = vmul.f32 1.0, %v3440
        %v3442 = vmul.f32 %v3434, %v2984
        %v3443 = vmul.f32 %v3428, %v3435
        %v3444 = vadd.f32 %v3442, %v3443
        %v3445 = vtanh.pop %v3444
        %v3446 = vmul.f32 %v3441, %v3445
        %3447 = vst [vmem:[#allocation4] sm:$0xff] %v3446
        %3448 = vst [vmem:[#allocation5] sm:$0xff] %v3444
        %s3449 = scalar_lea.vmem %s550, 12 [#allocation7]
        %v3450 = vld [vmem:[%s3449] sm:$0xf]
        %v3451 = vunpack.c.l.bf16 %v3450
        %v3452 = vld [vmem:[#allocation2] sm:$0xff]
        %v3453 = vld [vmem:[#allocation3] sm:$0xff]
        %v3454 = vld [vmem:[#allocation9] sm:$0xff]
        %v3455 = vld [vmem:[#allocation9 + $0x8] sm:$0xff]
        %v3456 = vld [vmem:[#allocation9 + $0x10] sm:$0xff]
        %v3457 = vld [vmem:[#allocation9 + $0x18] sm:$0xff]
        %v3458 = vld [vmem:[#allocation9 + $0x20] sm:$0xff]
        %v3459 = vld [vmem:[#allocation9 + $0x28] sm:$0xff]
        %v3460 = vld [vmem:[#allocation9 + $0x30] sm:$0xff]
        %v3461 = vld [vmem:[#allocation9 + $0x38] sm:$0xff]
        %v3462 = vld [vmem:[#allocation9 + $0x40] sm:$0xff]
        %v3463 = vld [vmem:[#allocation9 + $0x48] sm:$0xff]
        %v3464 = vld [vmem:[#allocation9 + $0x50] sm:$0xff]
        %v3465 = vld [vmem:[#allocation9 + $0x58] sm:$0xff]
        %v3466 = vld [vmem:[#allocation9 + $0x60] sm:$0xff]
        %v3467 = vld [vmem:[#allocation9 + $0x68] sm:$0xff]
        %v3468 = vld [vmem:[#allocation9 + $0x70] sm:$0xff]
        %v3469 = vld [vmem:[#allocation9 + $0x78] sm:$0xff]
        %v3470 = vld [vmem:[#allocation9 + $0x80] sm:$0xff]
        %v3471 = vld [vmem:[#allocation9 + $0x88] sm:$0xff]
        %v3472 = vld [vmem:[#allocation9 + $0x90] sm:$0xff]
        %v3473 = vld [vmem:[#allocation9 + $0x98] sm:$0xff]
        %v3474 = vld [vmem:[#allocation9 + $0xa0] sm:$0xff]
        %v3475 = vld [vmem:[#allocation9 + $0xa8] sm:$0xff]
        %v3476 = vld [vmem:[#allocation9 + $0xb0] sm:$0xff]
        %v3477 = vld [vmem:[#allocation9 + $0xb8] sm:$0xff]
        %v3478 = vld [vmem:[#allocation9 + $0xc0] sm:$0xff]
        %v3479 = vld [vmem:[#allocation9 + $0xc8] sm:$0xff]
        %v3480 = vld [vmem:[#allocation9 + $0xd0] sm:$0xff]
        %v3481 = vld [vmem:[#allocation9 + $0xd8] sm:$0xff]
        %v3482 = vld [vmem:[#allocation9 + $0xe0] sm:$0xff]
        %v3483 = vld [vmem:[#allocation9 + $0xe8] sm:$0xff]
        %v3484 = vld [vmem:[#allocation9 + $0xf0] sm:$0xff]
        %v3485 = vld [vmem:[#allocation9 + $0xf8] sm:$0xff]
        %v3486 = vld [vmem:[#allocation9 + $0x100] sm:$0xff]
        %v3487 = vld [vmem:[#allocation9 + $0x108] sm:$0xff]
        %v3488 = vld [vmem:[#allocation9 + $0x110] sm:$0xff]
        %v3489 = vld [vmem:[#allocation9 + $0x118] sm:$0xff]
        %v3490 = vld [vmem:[#allocation9 + $0x120] sm:$0xff]
        %v3491 = vld [vmem:[#allocation9 + $0x128] sm:$0xff]
        %v3492 = vld [vmem:[#allocation9 + $0x130] sm:$0xff]
        %v3493 = vld [vmem:[#allocation9 + $0x138] sm:$0xff]
        %v3494 = vld [vmem:[#allocation9 + $0x140] sm:$0xff]
        %v3495 = vld [vmem:[#allocation9 + $0x148] sm:$0xff]
        %v3496 = vld [vmem:[#allocation9 + $0x150] sm:$0xff]
        %v3497 = vld [vmem:[#allocation9 + $0x158] sm:$0xff]
        %v3498 = vld [vmem:[#allocation9 + $0x160] sm:$0xff]
        %v3499 = vld [vmem:[#allocation9 + $0x168] sm:$0xff]
        %v3500 = vld [vmem:[#allocation9 + $0x170] sm:$0xff]
        %v3501 = vld [vmem:[#allocation9 + $0x178] sm:$0xff]
        %v3502 = vld [vmem:[#allocation9 + $0x180] sm:$0xff]
        %v3503 = vld [vmem:[#allocation9 + $0x188] sm:$0xff]
        %v3504 = vld [vmem:[#allocation9 + $0x190] sm:$0xff]
        %v3505 = vld [vmem:[#allocation9 + $0x198] sm:$0xff]
        %v3506 = vld [vmem:[#allocation9 + $0x1a0] sm:$0xff]
        %v3507 = vld [vmem:[#allocation9 + $0x1a8] sm:$0xff]
        %v3508 = vld [vmem:[#allocation9 + $0x1b0] sm:$0xff]
        %v3509 = vld [vmem:[#allocation9 + $0x1b8] sm:$0xff]
        %v3510 = vld [vmem:[#allocation9 + $0x1c0] sm:$0xff]
        %v3511 = vld [vmem:[#allocation9 + $0x1c8] sm:$0xff]
        %v3512 = vld [vmem:[#allocation9 + $0x1d0] sm:$0xff]
        %v3513 = vld [vmem:[#allocation9 + $0x1d8] sm:$0xff]
        %v3514 = vld [vmem:[#allocation9 + $0x1e0] sm:$0xff]
        %v3515 = vld [vmem:[#allocation9 + $0x1e8] sm:$0xff]
        %v3516 = vld [vmem:[#allocation9 + $0x1f0] sm:$0xff]
        %v3517 = vld [vmem:[#allocation9 + $0x1f8] sm:$0xff]
        %v3518 = vld [vmem:[#allocation11] sm:$0xff]
        %v3519 = vld [vmem:[#allocation11 + $0x8] sm:$0xff]
        %v3520 = vld [vmem:[#allocation11 + $0x10] sm:$0xff]
        %v3521 = vld [vmem:[#allocation11 + $0x18] sm:$0xff]
        %v3522 = vld [vmem:[#allocation11 + $0x20] sm:$0xff]
        %v3523 = vld [vmem:[#allocation11 + $0x28] sm:$0xff]
        %v3524 = vld [vmem:[#allocation11 + $0x30] sm:$0xff]
        %v3525 = vld [vmem:[#allocation11 + $0x38] sm:$0xff]
        %v3526 = vld [vmem:[#allocation11 + $0x40] sm:$0xff]
        %v3527 = vld [vmem:[#allocation11 + $0x48] sm:$0xff]
        %v3528 = vld [vmem:[#allocation11 + $0x50] sm:$0xff]
        %v3529 = vld [vmem:[#allocation11 + $0x58] sm:$0xff]
        %v3530 = vld [vmem:[#allocation11 + $0x60] sm:$0xff]
        %v3531 = vld [vmem:[#allocation11 + $0x68] sm:$0xff]
        %v3532 = vld [vmem:[#allocation11 + $0x70] sm:$0xff]
        %v3533 = vld [vmem:[#allocation11 + $0x78] sm:$0xff]
        %v3534 = vld [vmem:[#allocation11 + $0x80] sm:$0xff]
        %v3535 = vld [vmem:[#allocation11 + $0x88] sm:$0xff]
        %v3536 = vld [vmem:[#allocation11 + $0x90] sm:$0xff]
        %v3537 = vld [vmem:[#allocation11 + $0x98] sm:$0xff]
        %v3538 = vld [vmem:[#allocation11 + $0xa0] sm:$0xff]
        %v3539 = vld [vmem:[#allocation11 + $0xa8] sm:$0xff]
        %v3540 = vld [vmem:[#allocation11 + $0xb0] sm:$0xff]
        %v3541 = vld [vmem:[#allocation11 + $0xb8] sm:$0xff]
        %v3542 = vld [vmem:[#allocation11 + $0xc0] sm:$0xff]
        %v3543 = vld [vmem:[#allocation11 + $0xc8] sm:$0xff]
        %v3544 = vld [vmem:[#allocation11 + $0xd0] sm:$0xff]
        %v3545 = vld [vmem:[#allocation11 + $0xd8] sm:$0xff]
        %v3546 = vld [vmem:[#allocation11 + $0xe0] sm:$0xff]
        %v3547 = vld [vmem:[#allocation11 + $0xe8] sm:$0xff]
        %v3548 = vld [vmem:[#allocation11 + $0xf0] sm:$0xff]
        %v3549 = vld [vmem:[#allocation11 + $0xf8] sm:$0xff]
        %v3550 = vld [vmem:[#allocation11 + $0x100] sm:$0xff]
        %v3551 = vld [vmem:[#allocation11 + $0x108] sm:$0xff]
        %v3552 = vld [vmem:[#allocation11 + $0x110] sm:$0xff]
        %v3553 = vld [vmem:[#allocation11 + $0x118] sm:$0xff]
        %v3554 = vld [vmem:[#allocation11 + $0x120] sm:$0xff]
        %v3555 = vld [vmem:[#allocation11 + $0x128] sm:$0xff]
        %v3556 = vld [vmem:[#allocation11 + $0x130] sm:$0xff]
        %v3557 = vld [vmem:[#allocation11 + $0x138] sm:$0xff]
        %v3558 = vld [vmem:[#allocation11 + $0x140] sm:$0xff]
        %v3559 = vld [vmem:[#allocation11 + $0x148] sm:$0xff]
        %v3560 = vld [vmem:[#allocation11 + $0x150] sm:$0xff]
        %v3561 = vld [vmem:[#allocation11 + $0x158] sm:$0xff]
        %v3562 = vld [vmem:[#allocation11 + $0x160] sm:$0xff]
        %v3563 = vld [vmem:[#allocation11 + $0x168] sm:$0xff]
        %v3564 = vld [vmem:[#allocation11 + $0x170] sm:$0xff]
        %v3565 = vld [vmem:[#allocation11 + $0x178] sm:$0xff]
        %v3566 = vld [vmem:[#allocation11 + $0x180] sm:$0xff]
        %v3567 = vld [vmem:[#allocation11 + $0x188] sm:$0xff]
        %v3568 = vld [vmem:[#allocation11 + $0x190] sm:$0xff]
        %v3569 = vld [vmem:[#allocation11 + $0x198] sm:$0xff]
        %v3570 = vld [vmem:[#allocation11 + $0x1a0] sm:$0xff]
        %v3571 = vld [vmem:[#allocation11 + $0x1a8] sm:$0xff]
        %v3572 = vld [vmem:[#allocation11 + $0x1b0] sm:$0xff]
        %v3573 = vld [vmem:[#allocation11 + $0x1b8] sm:$0xff]
        %v3574 = vld [vmem:[#allocation11 + $0x1c0] sm:$0xff]
        %v3575 = vld [vmem:[#allocation11 + $0x1c8] sm:$0xff]
        %v3576 = vld [vmem:[#allocation11 + $0x1d0] sm:$0xff]
        %v3577 = vld [vmem:[#allocation11 + $0x1d8] sm:$0xff]
        %v3578 = vld [vmem:[#allocation11 + $0x1e0] sm:$0xff]
        %v3579 = vld [vmem:[#allocation11 + $0x1e8] sm:$0xff]
        %v3580 = vld [vmem:[#allocation11 + $0x1f0] sm:$0xff]
        %v3581 = vld [vmem:[#allocation11 + $0x1f8] sm:$0xff]
        %3582 = vmatprep.subr.mxu0 %v3579
        %3583 = vmatpush1.msra.mxu0 %v3578
        %3584 = vmatprep.subr.mxu0 %v3575
        %3585 = vmatpush1.msra.mxu0 %v3574
        %3586 = vmatprep.subr.mxu0 %v3571
        %3587 = vmatpush1.msra.mxu0 %v3570
        %3588 = vmatprep.subr.mxu0 %v3567
        %3589 = vmatpush1.msra.mxu0 %v3566
        %3590 = vmatprep.subr.mxu0 %v3563
        %3591 = vmatpush1.msra.mxu0 %v3562
        %3592 = vmatprep.subr.mxu0 %v3559
        %3593 = vmatpush1.msra.mxu0 %v3558
        %3594 = vmatprep.subr.mxu0 %v3555
        %3595 = vmatpush1.msra.mxu0 %v3554
        %3596 = vmatprep.subr.mxu0 %v3551
        %3597 = vmatpush1.msra.mxu0 %v3550
        %3598 = vmatprep.subr.mxu0 %v3547
        %3599 = vmatpush1.msra.mxu0 %v3546
        %3600 = vmatprep.subr.mxu0 %v3543
        %3601 = vmatpush1.msra.mxu0 %v3542
        %3602 = vmatprep.subr.mxu0 %v3539
        %3603 = vmatpush1.msra.mxu0 %v3538
        %3604 = vmatprep.subr.mxu0 %v3535
        %3605 = vmatpush1.msra.mxu0 %v3534
        %3606 = vmatprep.subr.mxu0 %v3531
        %3607 = vmatpush1.msra.mxu0 %v3530
        %3608 = vmatprep.subr.mxu0 %v3527
        %3609 = vmatpush1.msra.mxu0 %v3526
        %3610 = vmatprep.subr.mxu0 %v3523
        %3611 = vmatpush1.msra.mxu0 %v3522
        %3612 = vmatprep.subr.mxu0 %v3519
        %3613 = vmatpush1.msra.mxu0 %v3518
        %3614 = vmatprep.subr.mxu0 0.0
        %3615 = vmatpush2.msra.mxu0 0.0
        %3616 = vmatprep.subr.mxu0 0.0
        %3617 = vmatpush2.msra.mxu0 0.0
        %3618 = vmatprep.subr.mxu0 0.0
        %3619 = vmatpush2.msra.mxu0 0.0
        %3620 = vmatprep.subr.mxu0 0.0
        %3621 = vmatpush2.msra.mxu0 0.0
        %3622 = vmatprep.subr.mxu0 0.0
        %3623 = vmatpush2.msra.mxu0 0.0
        %3624 = vmatprep.subr.mxu0 0.0
        %3625 = vmatpush2.msra.mxu0 0.0
        %3626 = vmatprep.subr.mxu0 0.0
        %3627 = vmatpush2.msra.mxu0 0.0
        %3628 = vmatprep.subr.mxu0 0.0
        %3629 = vmatpush2.msra.mxu0 0.0
        %3630 = vmatprep.subr.mxu0 0.0
        %3631 = vmatpush2.msra.mxu0 0.0
        %3632 = vmatprep.subr.mxu0 0.0
        %3633 = vmatpush2.msra.mxu0 0.0
        %3634 = vmatprep.subr.mxu0 0.0
        %3635 = vmatpush2.msra.mxu0 0.0
        %3636 = vmatprep.subr.mxu0 0.0
        %3637 = vmatpush2.msra.mxu0 0.0
        %3638 = vmatprep.subr.mxu0 0.0
        %3639 = vmatpush2.msra.mxu0 0.0
        %3640 = vmatprep.subr.mxu0 0.0
        %3641 = vmatpush2.msra.mxu0 0.0
        %3642 = vmatprep.subr.mxu0 0.0
        %3643 = vmatpush2.msra.mxu0 0.0
        %3644 = vmatprep.subr.mxu0 0.0
        %3645 = vmatpush2.msra.mxu0 0.0
        %3646 = vmatprep.mubr.f32.mxu0 0.0
        %3647 = vmatmul.mubr.f32.gmra.mxu0 %v3452
        %v3648 = vpop.f32.mrf.mxu0
        %v3649 = vadd.f32 0.0, %v3648
        %v3650 = vpop.f32.mrf.mxu0
        %v3651 = vadd.f32 0.0, %v3650
        %3652 = vdwg.mxu0
        %3653 = vmatprep.subr.mxu0 %v3581
        %3654 = vmatpush1.msra.mxu0 %v3580
        %3655 = vmatprep.subr.mxu0 %v3577
        %3656 = vmatpush1.msra.mxu0 %v3576
        %3657 = vmatprep.subr.mxu0 %v3573
        %3658 = vmatpush1.msra.mxu0 %v3572
        %3659 = vmatprep.subr.mxu0 %v3569
        %3660 = vmatpush1.msra.mxu0 %v3568
        %3661 = vmatprep.subr.mxu0 %v3565
        %3662 = vmatpush1.msra.mxu0 %v3564
        %3663 = vmatprep.subr.mxu0 %v3561
        %3664 = vmatpush1.msra.mxu0 %v3560
        %3665 = vmatprep.subr.mxu0 %v3557
        %3666 = vmatpush1.msra.mxu0 %v3556
        %3667 = vmatprep.subr.mxu0 %v3553
        %3668 = vmatpush1.msra.mxu0 %v3552
        %3669 = vmatprep.subr.mxu0 %v3549
        %3670 = vmatpush1.msra.mxu0 %v3548
        %3671 = vmatprep.subr.mxu0 %v3545
        %3672 = vmatpush1.msra.mxu0 %v3544
        %3673 = vmatprep.subr.mxu0 %v3541
        %3674 = vmatpush1.msra.mxu0 %v3540
        %3675 = vmatprep.subr.mxu0 %v3537
        %3676 = vmatpush1.msra.mxu0 %v3536
        %3677 = vmatprep.subr.mxu0 %v3533
        %3678 = vmatpush1.msra.mxu0 %v3532
        %3679 = vmatprep.subr.mxu0 %v3529
        %3680 = vmatpush1.msra.mxu0 %v3528
        %3681 = vmatprep.subr.mxu0 %v3525
        %3682 = vmatpush1.msra.mxu0 %v3524
        %3683 = vmatprep.subr.mxu0 %v3521
        %3684 = vmatpush1.msra.mxu0 %v3520
        %3685 = vmatprep.subr.mxu0 0.0
        %3686 = vmatpush2.msra.mxu0 0.0
        %3687 = vmatprep.subr.mxu0 0.0
        %3688 = vmatpush2.msra.mxu0 0.0
        %3689 = vmatprep.subr.mxu0 0.0
        %3690 = vmatpush2.msra.mxu0 0.0
        %3691 = vmatprep.subr.mxu0 0.0
        %3692 = vmatpush2.msra.mxu0 0.0
        %3693 = vmatprep.subr.mxu0 0.0
        %3694 = vmatpush2.msra.mxu0 0.0
        %3695 = vmatprep.subr.mxu0 0.0
        %3696 = vmatpush2.msra.mxu0 0.0
        %3697 = vmatprep.subr.mxu0 0.0
        %3698 = vmatpush2.msra.mxu0 0.0
        %3699 = vmatprep.subr.mxu0 0.0
        %3700 = vmatpush2.msra.mxu0 0.0
        %3701 = vmatprep.subr.mxu0 0.0
        %3702 = vmatpush2.msra.mxu0 0.0
        %3703 = vmatprep.subr.mxu0 0.0
        %3704 = vmatpush2.msra.mxu0 0.0
        %3705 = vmatprep.subr.mxu0 0.0
        %3706 = vmatpush2.msra.mxu0 0.0
        %3707 = vmatprep.subr.mxu0 0.0
        %3708 = vmatpush2.msra.mxu0 0.0
        %3709 = vmatprep.subr.mxu0 0.0
        %3710 = vmatpush2.msra.mxu0 0.0
        %3711 = vmatprep.subr.mxu0 0.0
        %3712 = vmatpush2.msra.mxu0 0.0
        %3713 = vmatprep.subr.mxu0 0.0
        %3714 = vmatpush2.msra.mxu0 0.0
        %3715 = vmatprep.subr.mxu0 0.0
        %3716 = vmatpush2.msra.mxu0 0.0
        %3717 = vmatprep.mubr.f32.mxu0 0.0
        %3718 = vmatmul.mubr.f32.gmra.mxu0 %v3452
        %v3719 = vpop.f32.mrf.mxu0
        %v3720 = vadd.f32 0.0, %v3719
        %v3721 = vpop.f32.mrf.mxu0
        %v3722 = vadd.f32 0.0, %v3721
        %3723 = vdwg.mxu0
        %3724 = vmatprep.subr.mxu0 %v3515
        %3725 = vmatpush1.msra.mxu0 %v3514
        %3726 = vmatprep.subr.mxu0 %v3511
        %3727 = vmatpush1.msra.mxu0 %v3510
        %3728 = vmatprep.subr.mxu0 %v3507
        %3729 = vmatpush1.msra.mxu0 %v3506
        %3730 = vmatprep.subr.mxu0 %v3503
        %3731 = vmatpush1.msra.mxu0 %v3502
        %3732 = vmatprep.subr.mxu0 %v3499
        %3733 = vmatpush1.msra.mxu0 %v3498
        %3734 = vmatprep.subr.mxu0 %v3495
        %3735 = vmatpush1.msra.mxu0 %v3494
        %3736 = vmatprep.subr.mxu0 %v3491
        %3737 = vmatpush1.msra.mxu0 %v3490
        %3738 = vmatprep.subr.mxu0 %v3487
        %3739 = vmatpush1.msra.mxu0 %v3486
        %3740 = vmatprep.subr.mxu0 %v3483
        %3741 = vmatpush1.msra.mxu0 %v3482
        %3742 = vmatprep.subr.mxu0 %v3479
        %3743 = vmatpush1.msra.mxu0 %v3478
        %3744 = vmatprep.subr.mxu0 %v3475
        %3745 = vmatpush1.msra.mxu0 %v3474
        %3746 = vmatprep.subr.mxu0 %v3471
        %3747 = vmatpush1.msra.mxu0 %v3470
        %3748 = vmatprep.subr.mxu0 %v3467
        %3749 = vmatpush1.msra.mxu0 %v3466
        %3750 = vmatprep.subr.mxu0 %v3463
        %3751 = vmatpush1.msra.mxu0 %v3462
        %3752 = vmatprep.subr.mxu0 %v3459
        %3753 = vmatpush1.msra.mxu0 %v3458
        %3754 = vmatprep.subr.mxu0 %v3455
        %3755 = vmatpush1.msra.mxu0 %v3454
        %3756 = vmatprep.subr.mxu0 0.0
        %3757 = vmatpush2.msra.mxu0 0.0
        %3758 = vmatprep.subr.mxu0 0.0
        %3759 = vmatpush2.msra.mxu0 0.0
        %3760 = vmatprep.subr.mxu0 0.0
        %3761 = vmatpush2.msra.mxu0 0.0
        %3762 = vmatprep.subr.mxu0 0.0
        %3763 = vmatpush2.msra.mxu0 0.0
        %3764 = vmatprep.subr.mxu0 0.0
        %3765 = vmatpush2.msra.mxu0 0.0
        %3766 = vmatprep.subr.mxu0 0.0
        %3767 = vmatpush2.msra.mxu0 0.0
        %3768 = vmatprep.subr.mxu0 0.0
        %3769 = vmatpush2.msra.mxu0 0.0
        %3770 = vmatprep.subr.mxu0 0.0
        %3771 = vmatpush2.msra.mxu0 0.0
        %3772 = vmatprep.subr.mxu0 0.0
        %3773 = vmatpush2.msra.mxu0 0.0
        %3774 = vmatprep.subr.mxu0 0.0
        %3775 = vmatpush2.msra.mxu0 0.0
        %3776 = vmatprep.subr.mxu0 0.0
        %3777 = vmatpush2.msra.mxu0 0.0
        %3778 = vmatprep.subr.mxu0 0.0
        %3779 = vmatpush2.msra.mxu0 0.0
        %3780 = vmatprep.subr.mxu0 0.0
        %3781 = vmatpush2.msra.mxu0 0.0
        %3782 = vmatprep.subr.mxu0 0.0
        %3783 = vmatpush2.msra.mxu0 0.0
        %3784 = vmatprep.subr.mxu0 0.0
        %3785 = vmatpush2.msra.mxu0 0.0
        %3786 = vmatprep.subr.mxu0 0.0
        %3787 = vmatpush2.msra.mxu0 0.0
        %3788 = vmatprep.mubr.f32.mxu0 0.0
        %3789 = vmatmul.mubr.f32.gmra.mxu0 %v3451
        %v3790 = vpop.f32.mrf.mxu0
        %v3791 = vadd.f32 %v3649, %v3790
        %v3792 = vpop.f32.mrf.mxu0
        %v3793 = vadd.f32 %v3651, %v3792
        %3794 = vdwg.mxu0
        %3795 = vmatprep.subr.mxu0 %v3517
        %3796 = vmatpush1.msra.mxu0 %v3516
        %3797 = vmatprep.subr.mxu0 %v3513
        %3798 = vmatpush1.msra.mxu0 %v3512
        %3799 = vmatprep.subr.mxu0 %v3509
        %3800 = vmatpush1.msra.mxu0 %v3508
        %3801 = vmatprep.subr.mxu0 %v3505
        %3802 = vmatpush1.msra.mxu0 %v3504
        %3803 = vmatprep.subr.mxu0 %v3501
        %3804 = vmatpush1.msra.mxu0 %v3500
        %3805 = vmatprep.subr.mxu0 %v3497
        %3806 = vmatpush1.msra.mxu0 %v3496
        %3807 = vmatprep.subr.mxu0 %v3493
        %3808 = vmatpush1.msra.mxu0 %v3492
        %3809 = vmatprep.subr.mxu0 %v3489
        %3810 = vmatpush1.msra.mxu0 %v3488
        %3811 = vmatprep.subr.mxu0 %v3485
        %3812 = vmatpush1.msra.mxu0 %v3484
        %3813 = vmatprep.subr.mxu0 %v3481
        %3814 = vmatpush1.msra.mxu0 %v3480
        %3815 = vmatprep.subr.mxu0 %v3477
        %3816 = vmatpush1.msra.mxu0 %v3476
        %3817 = vmatprep.subr.mxu0 %v3473
        %3818 = vmatpush1.msra.mxu0 %v3472
        %3819 = vmatprep.subr.mxu0 %v3469
        %3820 = vmatpush1.msra.mxu0 %v3468
        %3821 = vmatprep.subr.mxu0 %v3465
        %3822 = vmatpush1.msra.mxu0 %v3464
        %3823 = vmatprep.subr.mxu0 %v3461
        %3824 = vmatpush1.msra.mxu0 %v3460
        %3825 = vmatprep.subr.mxu0 %v3457
        %3826 = vmatpush1.msra.mxu0 %v3456
        %3827 = vmatprep.subr.mxu0 0.0
        %3828 = vmatpush2.msra.mxu0 0.0
        %3829 = vmatprep.subr.mxu0 0.0
        %3830 = vmatpush2.msra.mxu0 0.0
        %3831 = vmatprep.subr.mxu0 0.0
        %3832 = vmatpush2.msra.mxu0 0.0
        %3833 = vmatprep.subr.mxu0 0.0
        %3834 = vmatpush2.msra.mxu0 0.0
        %3835 = vmatprep.subr.mxu0 0.0
        %3836 = vmatpush2.msra.mxu0 0.0
        %3837 = vmatprep.subr.mxu0 0.0
        %3838 = vmatpush2.msra.mxu0 0.0
        %3839 = vmatprep.subr.mxu0 0.0
        %3840 = vmatpush2.msra.mxu0 0.0
        %3841 = vmatprep.subr.mxu0 0.0
        %3842 = vmatpush2.msra.mxu0 0.0
        %3843 = vmatprep.subr.mxu0 0.0
        %3844 = vmatpush2.msra.mxu0 0.0
        %3845 = vmatprep.subr.mxu0 0.0
        %3846 = vmatpush2.msra.mxu0 0.0
        %3847 = vmatprep.subr.mxu0 0.0
        %3848 = vmatpush2.msra.mxu0 0.0
        %3849 = vmatprep.subr.mxu0 0.0
        %3850 = vmatpush2.msra.mxu0 0.0
        %3851 = vmatprep.subr.mxu0 0.0
        %3852 = vmatpush2.msra.mxu0 0.0
        %3853 = vmatprep.subr.mxu0 0.0
        %3854 = vmatpush2.msra.mxu0 0.0
        %3855 = vmatprep.subr.mxu0 0.0
        %3856 = vmatpush2.msra.mxu0 0.0
        %3857 = vmatprep.subr.mxu0 0.0
        %3858 = vmatpush2.msra.mxu0 0.0
        %3859 = vmatprep.mubr.f32.mxu0 0.0
        %3860 = vmatmul.mubr.f32.gmra.mxu0 %v3451
        %v3861 = vpop.f32.mrf.mxu0
        %v3862 = vadd.f32 %v3720, %v3861
        %v3863 = vpop.f32.mrf.mxu0
        %v3864 = vadd.f32 %v3722, %v3863
        %3865 = vdwg.mxu0
        %v3866 = vld [vmem:[%s5] sm:$0xf]
        %v3868 = vlaneseq
        %v3869 = vshrl.u32 %v3868, 7
        %v3870 = vsub.s32 0, %v3869
        %v3871 = vrot.slane %v3866, %v3870
        %v3872 = vlaneseq
        %v3873 = vshrl.u32 %v3872, 7
        %v3874 = vsub.s32 1, %v3873
        %v3875 = vrot.slane %v3866, %v3874
        %v3876 = vlaneseq
        %v3877 = vshrl.u32 %v3876, 7
        %v3878 = vsub.s32 2, %v3877
        %v3879 = vrot.slane %v3866, %v3878
        %v3880 = vlaneseq
        %v3881 = vshrl.u32 %v3880, 7
        %v3882 = vsub.s32 3, %v3881
        %v3883 = vrot.slane %v3866, %v3882
        %v3888 = vadd.f32 %v3791, %v3871
        %v3889 = vadd.f32 %v3793, %v3875
        %v3890 = vadd.f32 %v3862, %v3879
        %v3891 = vadd.f32 %v3864, %v3883
        %v3892 = vsub.f32 0.0, %v3888
        %v3893 = vmul.f32 %v3892, 1.442695
        %v3894 = vpow.pop %v3893
        %v3895 = vadd.f32 %v3894, 1.0
        %v3896 = vrcp.pop %v3895
        %v3897 = vmul.f32 1.0, %v3896
        %v3898 = vsub.f32 0.0, %v3889
        %v3899 = vmul.f32 %v3898, 1.442695
        %v3900 = vpow.pop %v3899
        %v3901 = vadd.f32 %v3900, 1.0
        %v3902 = vrcp.pop %v3901
        %v3903 = vmul.f32 1.0, %v3902
        %v3904 = vtanh.pop %v3890
        %v3905 = vsub.f32 0.0, %v3891
        %v3906 = vmul.f32 %v3905, 1.442695
        %v3907 = vpow.pop %v3906
        %v3908 = vadd.f32 %v3907, 1.0
        %v3909 = vrcp.pop %v3908
        %v3910 = vmul.f32 1.0, %v3909
        %v3911 = vmul.f32 %v3903, %v3453
        %v3912 = vmul.f32 %v3897, %v3904
        %v3913 = vadd.f32 %v3911, %v3912
        %v3914 = vtanh.pop %v3913
        %v3915 = vmul.f32 %v3910, %v3914
        %3916 = vst [vmem:[#allocation2] sm:$0xff] %v3915
        %3917 = vst [vmem:[#allocation3] sm:$0xff] %v3913
        %v3918 = vld [vmem:[#allocation4] sm:$0xff]
        %v3919 = vld [vmem:[#allocation5] sm:$0xff]
        %v3920 = vld [vmem:[#allocation12] sm:$0xff]
        %v3921 = vld [vmem:[#allocation12 + $0x8] sm:$0xff]
        %v3922 = vld [vmem:[#allocation12 + $0x10] sm:$0xff]
        %v3923 = vld [vmem:[#allocation12 + $0x18] sm:$0xff]
        %v3924 = vld [vmem:[#allocation12 + $0x20] sm:$0xff]
        %v3925 = vld [vmem:[#allocation12 + $0x28] sm:$0xff]
        %v3926 = vld [vmem:[#allocation12 + $0x30] sm:$0xff]
        %v3927 = vld [vmem:[#allocation12 + $0x38] sm:$0xff]
        %v3928 = vld [vmem:[#allocation12 + $0x40] sm:$0xff]
        %v3929 = vld [vmem:[#allocation12 + $0x48] sm:$0xff]
        %v3930 = vld [vmem:[#allocation12 + $0x50] sm:$0xff]
        %v3931 = vld [vmem:[#allocation12 + $0x58] sm:$0xff]
        %v3932 = vld [vmem:[#allocation12 + $0x60] sm:$0xff]
        %v3933 = vld [vmem:[#allocation12 + $0x68] sm:$0xff]
        %v3934 = vld [vmem:[#allocation12 + $0x70] sm:$0xff]
        %v3935 = vld [vmem:[#allocation12 + $0x78] sm:$0xff]
        %v3936 = vld [vmem:[#allocation12 + $0x80] sm:$0xff]
        %v3937 = vld [vmem:[#allocation12 + $0x88] sm:$0xff]
        %v3938 = vld [vmem:[#allocation12 + $0x90] sm:$0xff]
        %v3939 = vld [vmem:[#allocation12 + $0x98] sm:$0xff]
        %v3940 = vld [vmem:[#allocation12 + $0xa0] sm:$0xff]
        %v3941 = vld [vmem:[#allocation12 + $0xa8] sm:$0xff]
        %v3942 = vld [vmem:[#allocation12 + $0xb0] sm:$0xff]
        %v3943 = vld [vmem:[#allocation12 + $0xb8] sm:$0xff]
        %v3944 = vld [vmem:[#allocation12 + $0xc0] sm:$0xff]
        %v3945 = vld [vmem:[#allocation12 + $0xc8] sm:$0xff]
        %v3946 = vld [vmem:[#allocation12 + $0xd0] sm:$0xff]
        %v3947 = vld [vmem:[#allocation12 + $0xd8] sm:$0xff]
        %v3948 = vld [vmem:[#allocation12 + $0xe0] sm:$0xff]
        %v3949 = vld [vmem:[#allocation12 + $0xe8] sm:$0xff]
        %v3950 = vld [vmem:[#allocation12 + $0xf0] sm:$0xff]
        %v3951 = vld [vmem:[#allocation12 + $0xf8] sm:$0xff]
        %v3952 = vld [vmem:[#allocation12 + $0x100] sm:$0xff]
        %v3953 = vld [vmem:[#allocation12 + $0x108] sm:$0xff]
        %v3954 = vld [vmem:[#allocation12 + $0x110] sm:$0xff]
        %v3955 = vld [vmem:[#allocation12 + $0x118] sm:$0xff]
        %v3956 = vld [vmem:[#allocation12 + $0x120] sm:$0xff]
        %v3957 = vld [vmem:[#allocation12 + $0x128] sm:$0xff]
        %v3958 = vld [vmem:[#allocation12 + $0x130] sm:$0xff]
        %v3959 = vld [vmem:[#allocation12 + $0x138] sm:$0xff]
        %v3960 = vld [vmem:[#allocation12 + $0x140] sm:$0xff]
        %v3961 = vld [vmem:[#allocation12 + $0x148] sm:$0xff]
        %v3962 = vld [vmem:[#allocation12 + $0x150] sm:$0xff]
        %v3963 = vld [vmem:[#allocation12 + $0x158] sm:$0xff]
        %v3964 = vld [vmem:[#allocation12 + $0x160] sm:$0xff]
        %v3965 = vld [vmem:[#allocation12 + $0x168] sm:$0xff]
        %v3966 = vld [vmem:[#allocation12 + $0x170] sm:$0xff]
        %v3967 = vld [vmem:[#allocation12 + $0x178] sm:$0xff]
        %v3968 = vld [vmem:[#allocation12 + $0x180] sm:$0xff]
        %v3969 = vld [vmem:[#allocation12 + $0x188] sm:$0xff]
        %v3970 = vld [vmem:[#allocation12 + $0x190] sm:$0xff]
        %v3971 = vld [vmem:[#allocation12 + $0x198] sm:$0xff]
        %v3972 = vld [vmem:[#allocation12 + $0x1a0] sm:$0xff]
        %v3973 = vld [vmem:[#allocation12 + $0x1a8] sm:$0xff]
        %v3974 = vld [vmem:[#allocation12 + $0x1b0] sm:$0xff]
        %v3975 = vld [vmem:[#allocation12 + $0x1b8] sm:$0xff]
        %v3976 = vld [vmem:[#allocation12 + $0x1c0] sm:$0xff]
        %v3977 = vld [vmem:[#allocation12 + $0x1c8] sm:$0xff]
        %v3978 = vld [vmem:[#allocation12 + $0x1d0] sm:$0xff]
        %v3979 = vld [vmem:[#allocation12 + $0x1d8] sm:$0xff]
        %v3980 = vld [vmem:[#allocation12 + $0x1e0] sm:$0xff]
        %v3981 = vld [vmem:[#allocation12 + $0x1e8] sm:$0xff]
        %v3982 = vld [vmem:[#allocation12 + $0x1f0] sm:$0xff]
        %v3983 = vld [vmem:[#allocation12 + $0x1f8] sm:$0xff]
        %v3984 = vld [vmem:[#allocation14] sm:$0xff]
        %v3985 = vld [vmem:[#allocation14 + $0x8] sm:$0xff]
        %v3986 = vld [vmem:[#allocation14 + $0x10] sm:$0xff]
        %v3987 = vld [vmem:[#allocation14 + $0x18] sm:$0xff]
        %v3988 = vld [vmem:[#allocation14 + $0x20] sm:$0xff]
        %v3989 = vld [vmem:[#allocation14 + $0x28] sm:$0xff]
        %v3990 = vld [vmem:[#allocation14 + $0x30] sm:$0xff]
        %v3991 = vld [vmem:[#allocation14 + $0x38] sm:$0xff]
        %v3992 = vld [vmem:[#allocation14 + $0x40] sm:$0xff]
        %v3993 = vld [vmem:[#allocation14 + $0x48] sm:$0xff]
        %v3994 = vld [vmem:[#allocation14 + $0x50] sm:$0xff]
        %v3995 = vld [vmem:[#allocation14 + $0x58] sm:$0xff]
        %v3996 = vld [vmem:[#allocation14 + $0x60] sm:$0xff]
        %v3997 = vld [vmem:[#allocation14 + $0x68] sm:$0xff]
        %v3998 = vld [vmem:[#allocation14 + $0x70] sm:$0xff]
        %v3999 = vld [vmem:[#allocation14 + $0x78] sm:$0xff]
        %v4000 = vld [vmem:[#allocation14 + $0x80] sm:$0xff]
        %v4001 = vld [vmem:[#allocation14 + $0x88] sm:$0xff]
        %v4002 = vld [vmem:[#allocation14 + $0x90] sm:$0xff]
        %v4003 = vld [vmem:[#allocation14 + $0x98] sm:$0xff]
        %v4004 = vld [vmem:[#allocation14 + $0xa0] sm:$0xff]
        %v4005 = vld [vmem:[#allocation14 + $0xa8] sm:$0xff]
        %v4006 = vld [vmem:[#allocation14 + $0xb0] sm:$0xff]
        %v4007 = vld [vmem:[#allocation14 + $0xb8] sm:$0xff]
        %v4008 = vld [vmem:[#allocation14 + $0xc0] sm:$0xff]
        %v4009 = vld [vmem:[#allocation14 + $0xc8] sm:$0xff]
        %v4010 = vld [vmem:[#allocation14 + $0xd0] sm:$0xff]
        %v4011 = vld [vmem:[#allocation14 + $0xd8] sm:$0xff]
        %v4012 = vld [vmem:[#allocation14 + $0xe0] sm:$0xff]
        %v4013 = vld [vmem:[#allocation14 + $0xe8] sm:$0xff]
        %v4014 = vld [vmem:[#allocation14 + $0xf0] sm:$0xff]
        %v4015 = vld [vmem:[#allocation14 + $0xf8] sm:$0xff]
        %v4016 = vld [vmem:[#allocation14 + $0x100] sm:$0xff]
        %v4017 = vld [vmem:[#allocation14 + $0x108] sm:$0xff]
        %v4018 = vld [vmem:[#allocation14 + $0x110] sm:$0xff]
        %v4019 = vld [vmem:[#allocation14 + $0x118] sm:$0xff]
        %v4020 = vld [vmem:[#allocation14 + $0x120] sm:$0xff]
        %v4021 = vld [vmem:[#allocation14 + $0x128] sm:$0xff]
        %v4022 = vld [vmem:[#allocation14 + $0x130] sm:$0xff]
        %v4023 = vld [vmem:[#allocation14 + $0x138] sm:$0xff]
        %v4024 = vld [vmem:[#allocation14 + $0x140] sm:$0xff]
        %v4025 = vld [vmem:[#allocation14 + $0x148] sm:$0xff]
        %v4026 = vld [vmem:[#allocation14 + $0x150] sm:$0xff]
        %v4027 = vld [vmem:[#allocation14 + $0x158] sm:$0xff]
        %v4028 = vld [vmem:[#allocation14 + $0x160] sm:$0xff]
        %v4029 = vld [vmem:[#allocation14 + $0x168] sm:$0xff]
        %v4030 = vld [vmem:[#allocation14 + $0x170] sm:$0xff]
        %v4031 = vld [vmem:[#allocation14 + $0x178] sm:$0xff]
        %v4032 = vld [vmem:[#allocation14 + $0x180] sm:$0xff]
        %v4033 = vld [vmem:[#allocation14 + $0x188] sm:$0xff]
        %v4034 = vld [vmem:[#allocation14 + $0x190] sm:$0xff]
        %v4035 = vld [vmem:[#allocation14 + $0x198] sm:$0xff]
        %v4036 = vld [vmem:[#allocation14 + $0x1a0] sm:$0xff]
        %v4037 = vld [vmem:[#allocation14 + $0x1a8] sm:$0xff]
        %v4038 = vld [vmem:[#allocation14 + $0x1b0] sm:$0xff]
        %v4039 = vld [vmem:[#allocation14 + $0x1b8] sm:$0xff]
        %v4040 = vld [vmem:[#allocation14 + $0x1c0] sm:$0xff]
        %v4041 = vld [vmem:[#allocation14 + $0x1c8] sm:$0xff]
        %v4042 = vld [vmem:[#allocation14 + $0x1d0] sm:$0xff]
        %v4043 = vld [vmem:[#allocation14 + $0x1d8] sm:$0xff]
        %v4044 = vld [vmem:[#allocation14 + $0x1e0] sm:$0xff]
        %v4045 = vld [vmem:[#allocation14 + $0x1e8] sm:$0xff]
        %v4046 = vld [vmem:[#allocation14 + $0x1f0] sm:$0xff]
        %v4047 = vld [vmem:[#allocation14 + $0x1f8] sm:$0xff]
        %4048 = vmatprep.subr.mxu0 %v4045
        %4049 = vmatpush1.msra.mxu0 %v4044
        %4050 = vmatprep.subr.mxu0 %v4041
        %4051 = vmatpush1.msra.mxu0 %v4040
        %4052 = vmatprep.subr.mxu0 %v4037
        %4053 = vmatpush1.msra.mxu0 %v4036
        %4054 = vmatprep.subr.mxu0 %v4033
        %4055 = vmatpush1.msra.mxu0 %v4032
        %4056 = vmatprep.subr.mxu0 %v4029
        %4057 = vmatpush1.msra.mxu0 %v4028
        %4058 = vmatprep.subr.mxu0 %v4025
        %4059 = vmatpush1.msra.mxu0 %v4024
        %4060 = vmatprep.subr.mxu0 %v4021
        %4061 = vmatpush1.msra.mxu0 %v4020
        %4062 = vmatprep.subr.mxu0 %v4017
        %4063 = vmatpush1.msra.mxu0 %v4016
        %4064 = vmatprep.subr.mxu0 %v4013
        %4065 = vmatpush1.msra.mxu0 %v4012
        %4066 = vmatprep.subr.mxu0 %v4009
        %4067 = vmatpush1.msra.mxu0 %v4008
        %4068 = vmatprep.subr.mxu0 %v4005
        %4069 = vmatpush1.msra.mxu0 %v4004
        %4070 = vmatprep.subr.mxu0 %v4001
        %4071 = vmatpush1.msra.mxu0 %v4000
        %4072 = vmatprep.subr.mxu0 %v3997
        %4073 = vmatpush1.msra.mxu0 %v3996
        %4074 = vmatprep.subr.mxu0 %v3993
        %4075 = vmatpush1.msra.mxu0 %v3992
        %4076 = vmatprep.subr.mxu0 %v3989
        %4077 = vmatpush1.msra.mxu0 %v3988
        %4078 = vmatprep.subr.mxu0 %v3985
        %4079 = vmatpush1.msra.mxu0 %v3984
        %4080 = vmatprep.subr.mxu0 0.0
        %4081 = vmatpush2.msra.mxu0 0.0
        %4082 = vmatprep.subr.mxu0 0.0
        %4083 = vmatpush2.msra.mxu0 0.0
        %4084 = vmatprep.subr.mxu0 0.0
        %4085 = vmatpush2.msra.mxu0 0.0
        %4086 = vmatprep.subr.mxu0 0.0
        %4087 = vmatpush2.msra.mxu0 0.0
        %4088 = vmatprep.subr.mxu0 0.0
        %4089 = vmatpush2.msra.mxu0 0.0
        %4090 = vmatprep.subr.mxu0 0.0
        %4091 = vmatpush2.msra.mxu0 0.0
        %4092 = vmatprep.subr.mxu0 0.0
        %4093 = vmatpush2.msra.mxu0 0.0
        %4094 = vmatprep.subr.mxu0 0.0
        %4095 = vmatpush2.msra.mxu0 0.0
        %4096 = vmatprep.subr.mxu0 0.0
        %4097 = vmatpush2.msra.mxu0 0.0
        %4098 = vmatprep.subr.mxu0 0.0
        %4099 = vmatpush2.msra.mxu0 0.0
        %4100 = vmatprep.subr.mxu0 0.0
        %4101 = vmatpush2.msra.mxu0 0.0
        %4102 = vmatprep.subr.mxu0 0.0
        %4103 = vmatpush2.msra.mxu0 0.0
        %4104 = vmatprep.subr.mxu0 0.0
        %4105 = vmatpush2.msra.mxu0 0.0
        %4106 = vmatprep.subr.mxu0 0.0
        %4107 = vmatpush2.msra.mxu0 0.0
        %4108 = vmatprep.subr.mxu0 0.0
        %4109 = vmatpush2.msra.mxu0 0.0
        %4110 = vmatprep.subr.mxu0 0.0
        %4111 = vmatpush2.msra.mxu0 0.0
        %4112 = vmatprep.mubr.f32.mxu0 0.0
        %4113 = vmatmul.mubr.f32.gmra.mxu0 %v3918
        %v4114 = vpop.f32.mrf.mxu0
        %v4115 = vadd.f32 0.0, %v4114
        %v4116 = vpop.f32.mrf.mxu0
        %v4117 = vadd.f32 0.0, %v4116
        %4118 = vdwg.mxu0
        %4119 = vmatprep.subr.mxu0 %v4047
        %4120 = vmatpush1.msra.mxu0 %v4046
        %4121 = vmatprep.subr.mxu0 %v4043
        %4122 = vmatpush1.msra.mxu0 %v4042
        %4123 = vmatprep.subr.mxu0 %v4039
        %4124 = vmatpush1.msra.mxu0 %v4038
        %4125 = vmatprep.subr.mxu0 %v4035
        %4126 = vmatpush1.msra.mxu0 %v4034
        %4127 = vmatprep.subr.mxu0 %v4031
        %4128 = vmatpush1.msra.mxu0 %v4030
        %4129 = vmatprep.subr.mxu0 %v4027
        %4130 = vmatpush1.msra.mxu0 %v4026
        %4131 = vmatprep.subr.mxu0 %v4023
        %4132 = vmatpush1.msra.mxu0 %v4022
        %4133 = vmatprep.subr.mxu0 %v4019
        %4134 = vmatpush1.msra.mxu0 %v4018
        %4135 = vmatprep.subr.mxu0 %v4015
        %4136 = vmatpush1.msra.mxu0 %v4014
        %4137 = vmatprep.subr.mxu0 %v4011
        %4138 = vmatpush1.msra.mxu0 %v4010
        %4139 = vmatprep.subr.mxu0 %v4007
        %4140 = vmatpush1.msra.mxu0 %v4006
        %4141 = vmatprep.subr.mxu0 %v4003
        %4142 = vmatpush1.msra.mxu0 %v4002
        %4143 = vmatprep.subr.mxu0 %v3999
        %4144 = vmatpush1.msra.mxu0 %v3998
        %4145 = vmatprep.subr.mxu0 %v3995
        %4146 = vmatpush1.msra.mxu0 %v3994
        %4147 = vmatprep.subr.mxu0 %v3991
        %4148 = vmatpush1.msra.mxu0 %v3990
        %4149 = vmatprep.subr.mxu0 %v3987
        %4150 = vmatpush1.msra.mxu0 %v3986
        %4151 = vmatprep.subr.mxu0 0.0
        %4152 = vmatpush2.msra.mxu0 0.0
        %4153 = vmatprep.subr.mxu0 0.0
        %4154 = vmatpush2.msra.mxu0 0.0
        %4155 = vmatprep.subr.mxu0 0.0
        %4156 = vmatpush2.msra.mxu0 0.0
        %4157 = vmatprep.subr.mxu0 0.0
        %4158 = vmatpush2.msra.mxu0 0.0
        %4159 = vmatprep.subr.mxu0 0.0
        %4160 = vmatpush2.msra.mxu0 0.0
        %4161 = vmatprep.subr.mxu0 0.0
        %4162 = vmatpush2.msra.mxu0 0.0
        %4163 = vmatprep.subr.mxu0 0.0
        %4164 = vmatpush2.msra.mxu0 0.0
        %4165 = vmatprep.subr.mxu0 0.0
        %4166 = vmatpush2.msra.mxu0 0.0
        %4167 = vmatprep.subr.mxu0 0.0
        %4168 = vmatpush2.msra.mxu0 0.0
        %4169 = vmatprep.subr.mxu0 0.0
        %4170 = vmatpush2.msra.mxu0 0.0
        %4171 = vmatprep.subr.mxu0 0.0
        %4172 = vmatpush2.msra.mxu0 0.0
        %4173 = vmatprep.subr.mxu0 0.0
        %4174 = vmatpush2.msra.mxu0 0.0
        %4175 = vmatprep.subr.mxu0 0.0
        %4176 = vmatpush2.msra.mxu0 0.0
        %4177 = vmatprep.subr.mxu0 0.0
        %4178 = vmatpush2.msra.mxu0 0.0
        %4179 = vmatprep.subr.mxu0 0.0
        %4180 = vmatpush2.msra.mxu0 0.0
        %4181 = vmatprep.subr.mxu0 0.0
        %4182 = vmatpush2.msra.mxu0 0.0
        %4183 = vmatprep.mubr.f32.mxu0 0.0
        %4184 = vmatmul.mubr.f32.gmra.mxu0 %v3918
        %v4185 = vpop.f32.mrf.mxu0
        %v4186 = vadd.f32 0.0, %v4185
        %v4187 = vpop.f32.mrf.mxu0
        %v4188 = vadd.f32 0.0, %v4187
        %4189 = vdwg.mxu0
        %4190 = vmatprep.subr.mxu0 %v3981
        %4191 = vmatpush1.msra.mxu0 %v3980
        %4192 = vmatprep.subr.mxu0 %v3977
        %4193 = vmatpush1.msra.mxu0 %v3976
        %4194 = vmatprep.subr.mxu0 %v3973
        %4195 = vmatpush1.msra.mxu0 %v3972
        %4196 = vmatprep.subr.mxu0 %v3969
        %4197 = vmatpush1.msra.mxu0 %v3968
        %4198 = vmatprep.subr.mxu0 %v3965
        %4199 = vmatpush1.msra.mxu0 %v3964
        %4200 = vmatprep.subr.mxu0 %v3961
        %4201 = vmatpush1.msra.mxu0 %v3960
        %4202 = vmatprep.subr.mxu0 %v3957
        %4203 = vmatpush1.msra.mxu0 %v3956
        %4204 = vmatprep.subr.mxu0 %v3953
        %4205 = vmatpush1.msra.mxu0 %v3952
        %4206 = vmatprep.subr.mxu0 %v3949
        %4207 = vmatpush1.msra.mxu0 %v3948
        %4208 = vmatprep.subr.mxu0 %v3945
        %4209 = vmatpush1.msra.mxu0 %v3944
        %4210 = vmatprep.subr.mxu0 %v3941
        %4211 = vmatpush1.msra.mxu0 %v3940
        %4212 = vmatprep.subr.mxu0 %v3937
        %4213 = vmatpush1.msra.mxu0 %v3936
        %4214 = vmatprep.subr.mxu0 %v3933
        %4215 = vmatpush1.msra.mxu0 %v3932
        %4216 = vmatprep.subr.mxu0 %v3929
        %4217 = vmatpush1.msra.mxu0 %v3928
        %4218 = vmatprep.subr.mxu0 %v3925
        %4219 = vmatpush1.msra.mxu0 %v3924
        %4220 = vmatprep.subr.mxu0 %v3921
        %4221 = vmatpush1.msra.mxu0 %v3920
        %4222 = vmatprep.subr.mxu0 0.0
        %4223 = vmatpush2.msra.mxu0 0.0
        %4224 = vmatprep.subr.mxu0 0.0
        %4225 = vmatpush2.msra.mxu0 0.0
        %4226 = vmatprep.subr.mxu0 0.0
        %4227 = vmatpush2.msra.mxu0 0.0
        %4228 = vmatprep.subr.mxu0 0.0
        %4229 = vmatpush2.msra.mxu0 0.0
        %4230 = vmatprep.subr.mxu0 0.0
        %4231 = vmatpush2.msra.mxu0 0.0
        %4232 = vmatprep.subr.mxu0 0.0
        %4233 = vmatpush2.msra.mxu0 0.0
        %4234 = vmatprep.subr.mxu0 0.0
        %4235 = vmatpush2.msra.mxu0 0.0
        %4236 = vmatprep.subr.mxu0 0.0
        %4237 = vmatpush2.msra.mxu0 0.0
        %4238 = vmatprep.subr.mxu0 0.0
        %4239 = vmatpush2.msra.mxu0 0.0
        %4240 = vmatprep.subr.mxu0 0.0
        %4241 = vmatpush2.msra.mxu0 0.0
        %4242 = vmatprep.subr.mxu0 0.0
        %4243 = vmatpush2.msra.mxu0 0.0
        %4244 = vmatprep.subr.mxu0 0.0
        %4245 = vmatpush2.msra.mxu0 0.0
        %4246 = vmatprep.subr.mxu0 0.0
        %4247 = vmatpush2.msra.mxu0 0.0
        %4248 = vmatprep.subr.mxu0 0.0
        %4249 = vmatpush2.msra.mxu0 0.0
        %4250 = vmatprep.subr.mxu0 0.0
        %4251 = vmatpush2.msra.mxu0 0.0
        %4252 = vmatprep.subr.mxu0 0.0
        %4253 = vmatpush2.msra.mxu0 0.0
        %4254 = vmatprep.mubr.f32.mxu0 0.0
        %4255 = vmatmul.mubr.f32.gmra.mxu0 %v3915
        %v4256 = vpop.f32.mrf.mxu0
        %v4257 = vadd.f32 %v4115, %v4256
        %v4258 = vpop.f32.mrf.mxu0
        %v4259 = vadd.f32 %v4117, %v4258
        %4260 = vdwg.mxu0
        %4261 = vmatprep.subr.mxu0 %v3983
        %4262 = vmatpush1.msra.mxu0 %v3982
        %4263 = vmatprep.subr.mxu0 %v3979
        %4264 = vmatpush1.msra.mxu0 %v3978
        %4265 = vmatprep.subr.mxu0 %v3975
        %4266 = vmatpush1.msra.mxu0 %v3974
        %4267 = vmatprep.subr.mxu0 %v3971
        %4268 = vmatpush1.msra.mxu0 %v3970
        %4269 = vmatprep.subr.mxu0 %v3967
        %4270 = vmatpush1.msra.mxu0 %v3966
        %4271 = vmatprep.subr.mxu0 %v3963
        %4272 = vmatpush1.msra.mxu0 %v3962
        %4273 = vmatprep.subr.mxu0 %v3959
        %4274 = vmatpush1.msra.mxu0 %v3958
        %4275 = vmatprep.subr.mxu0 %v3955
        %4276 = vmatpush1.msra.mxu0 %v3954
        %4277 = vmatprep.subr.mxu0 %v3951
        %4278 = vmatpush1.msra.mxu0 %v3950
        %4279 = vmatprep.subr.mxu0 %v3947
        %4280 = vmatpush1.msra.mxu0 %v3946
        %4281 = vmatprep.subr.mxu0 %v3943
        %4282 = vmatpush1.msra.mxu0 %v3942
        %4283 = vmatprep.subr.mxu0 %v3939
        %4284 = vmatpush1.msra.mxu0 %v3938
        %4285 = vmatprep.subr.mxu0 %v3935
        %4286 = vmatpush1.msra.mxu0 %v3934
        %4287 = vmatprep.subr.mxu0 %v3931
        %4288 = vmatpush1.msra.mxu0 %v3930
        %4289 = vmatprep.subr.mxu0 %v3927
        %4290 = vmatpush1.msra.mxu0 %v3926
        %4291 = vmatprep.subr.mxu0 %v3923
        %4292 = vmatpush1.msra.mxu0 %v3922
        %4293 = vmatprep.subr.mxu0 0.0
        %4294 = vmatpush2.msra.mxu0 0.0
        %4295 = vmatprep.subr.mxu0 0.0
        %4296 = vmatpush2.msra.mxu0 0.0
        %4297 = vmatprep.subr.mxu0 0.0
        %4298 = vmatpush2.msra.mxu0 0.0
        %4299 = vmatprep.subr.mxu0 0.0
        %4300 = vmatpush2.msra.mxu0 0.0
        %4301 = vmatprep.subr.mxu0 0.0
        %4302 = vmatpush2.msra.mxu0 0.0
        %4303 = vmatprep.subr.mxu0 0.0
        %4304 = vmatpush2.msra.mxu0 0.0
        %4305 = vmatprep.subr.mxu0 0.0
        %4306 = vmatpush2.msra.mxu0 0.0
        %4307 = vmatprep.subr.mxu0 0.0
        %4308 = vmatpush2.msra.mxu0 0.0
        %4309 = vmatprep.subr.mxu0 0.0
        %4310 = vmatpush2.msra.mxu0 0.0
        %4311 = vmatprep.subr.mxu0 0.0
        %4312 = vmatpush2.msra.mxu0 0.0
        %4313 = vmatprep.subr.mxu0 0.0
        %4314 = vmatpush2.msra.mxu0 0.0
        %4315 = vmatprep.subr.mxu0 0.0
        %4316 = vmatpush2.msra.mxu0 0.0
        %4317 = vmatprep.subr.mxu0 0.0
        %4318 = vmatpush2.msra.mxu0 0.0
        %4319 = vmatprep.subr.mxu0 0.0
        %4320 = vmatpush2.msra.mxu0 0.0
        %4321 = vmatprep.subr.mxu0 0.0
        %4322 = vmatpush2.msra.mxu0 0.0
        %4323 = vmatprep.subr.mxu0 0.0
        %4324 = vmatpush2.msra.mxu0 0.0
        %4325 = vmatprep.mubr.f32.mxu0 0.0
        %4326 = vmatmul.mubr.f32.gmra.mxu0 %v3915
        %v4327 = vpop.f32.mrf.mxu0
        %v4328 = vadd.f32 %v4186, %v4327
        %v4329 = vpop.f32.mrf.mxu0
        %v4330 = vadd.f32 %v4188, %v4329
        %4331 = vdwg.mxu0
        %v4332 = vld [vmem:[%s8] sm:$0xf]
        %v4334 = vlaneseq
        %v4335 = vshrl.u32 %v4334, 7
        %v4336 = vsub.s32 0, %v4335
        %v4337 = vrot.slane %v4332, %v4336
        %v4338 = vlaneseq
        %v4339 = vshrl.u32 %v4338, 7
        %v4340 = vsub.s32 1, %v4339
        %v4341 = vrot.slane %v4332, %v4340
        %v4342 = vlaneseq
        %v4343 = vshrl.u32 %v4342, 7
        %v4344 = vsub.s32 2, %v4343
        %v4345 = vrot.slane %v4332, %v4344
        %v4346 = vlaneseq
        %v4347 = vshrl.u32 %v4346, 7
        %v4348 = vsub.s32 3, %v4347
        %v4349 = vrot.slane %v4332, %v4348
        %v4354 = vadd.f32 %v4257, %v4337
        %v4355 = vadd.f32 %v4259, %v4341
        %v4356 = vadd.f32 %v4328, %v4345
        %v4357 = vadd.f32 %v4330, %v4349
        %v4358 = vsub.f32 0.0, %v4354
        %v4359 = vmul.f32 %v4358, 1.442695
        %v4360 = vpow.pop %v4359
        %v4361 = vadd.f32 %v4360, 1.0
        %v4362 = vrcp.pop %v4361
        %v4363 = vmul.f32 1.0, %v4362
        %v4364 = vsub.f32 0.0, %v4355
        %v4365 = vmul.f32 %v4364, 1.442695
        %v4366 = vpow.pop %v4365
        %v4367 = vadd.f32 %v4366, 1.0
        %v4368 = vrcp.pop %v4367
        %v4369 = vmul.f32 1.0, %v4368
        %v4370 = vtanh.pop %v4356
        %v4371 = vsub.f32 0.0, %v4357
        %v4372 = vmul.f32 %v4371, 1.442695
        %v4373 = vpow.pop %v4372
        %v4374 = vadd.f32 %v4373, 1.0
        %v4375 = vrcp.pop %v4374
        %v4376 = vmul.f32 1.0, %v4375
        %v4377 = vmul.f32 %v4369, %v3919
        %v4378 = vmul.f32 %v4363, %v4370
        %v4379 = vadd.f32 %v4377, %v4378
        %v4380 = vtanh.pop %v4379
        %v4381 = vmul.f32 %v4376, %v4380
        %4382 = vst [vmem:[#allocation4] sm:$0xff] %v4381
        %4383 = vst [vmem:[#allocation5] sm:$0xff] %v4379
        %p4384 = scmp.eq.s32.totalorder %s38, 1
        // Predicated region
        $region109: #{tpu_custom_call.1} parent=79 // pred_check
          %p4385 = pneg %p4384
        $region110: #{tpu_custom_call.1} parent=79 // pred_check_branch
          %4387 = sbr.rel (%p4385) target = $region112
        $region111: #{tpu_custom_call.1} parent=79 // pred_region
          %v4388 = vld [vmem:[#allocation4] sm:$0xff]
          %v4389 = vld [vmem:[%s628] sm:$0xff]
          %v4390 = vld [vmem:[%s9] sm:$0x1]
          %4392 = vset.pattern.permute.xlu0 0
          %4393 = vperm.xlu0 %4392, %v4389
          %v4394 = vpop.permute.xlu0 %4393
          %v4397 = vlaneseq
          %v4398 = vshrl.u32 %v4397, 7
          %v4399 = vsub.s32 0, %v4398
          %v4400 = vrot.slane %v4390, %v4399
          %v4402 = vmul.f32 %v4394, %v4400
          %v4403 = vld [vmem:[%s632] sm:$0xff]
          %v4404 = vld [vmem:[%s10] sm:$0x1]
          %4406 = vset.pattern.permute.xlu0 0
          %4407 = vperm.xlu0 %4406, %v4403
          %v4408 = vpop.permute.xlu0 %4407
          %v4411 = vlaneseq
          %v4412 = vshrl.u32 %v4411, 7
          %v4413 = vsub.s32 0, %v4412
          %v4414 = vrot.slane %v4404, %v4413
          %v4416 = vmul.f32 %v4408, %v4414
          %v4417 = vadd.f32 %v4402, %v4416
          %v4418 = vld [vmem:[#allocation15] sm:$0xff]
          %v4419 = vld [vmem:[#allocation15 + $0x8] sm:$0xff]
          %v4420 = vld [vmem:[#allocation15 + $0x10] sm:$0xff]
          %v4421 = vld [vmem:[#allocation15 + $0x18] sm:$0xff]
          %v4422 = vld [vmem:[#allocation15 + $0x20] sm:$0xff]
          %v4423 = vld [vmem:[#allocation15 + $0x28] sm:$0xff]
          %v4424 = vld [vmem:[#allocation15 + $0x30] sm:$0xff]
          %v4425 = vld [vmem:[#allocation15 + $0x38] sm:$0xff]
          %v4426 = vld [vmem:[#allocation15 + $0x40] sm:$0xff]
          %v4427 = vld [vmem:[#allocation15 + $0x48] sm:$0xff]
          %v4428 = vld [vmem:[#allocation15 + $0x50] sm:$0xff]
          %v4429 = vld [vmem:[#allocation15 + $0x58] sm:$0xff]
          %v4430 = vld [vmem:[#allocation15 + $0x60] sm:$0xff]
          %v4431 = vld [vmem:[#allocation15 + $0x68] sm:$0xff]
          %v4432 = vld [vmem:[#allocation15 + $0x70] sm:$0xff]
          %v4433 = vld [vmem:[#allocation15 + $0x78] sm:$0xff]
          %4434 = vmatprep.subr.mxu0 0.0
          %4435 = vmatpush1.msra.mxu0 %v4433
          %4436 = vmatprep.subr.mxu0 0.0
          %4437 = vmatpush1.msra.mxu0 %v4432
          %4438 = vmatprep.subr.mxu0 0.0
          %4439 = vmatpush1.msra.mxu0 %v4431
          %4440 = vmatprep.subr.mxu0 0.0
          %4441 = vmatpush1.msra.mxu0 %v4430
          %4442 = vmatprep.subr.mxu0 0.0
          %4443 = vmatpush1.msra.mxu0 %v4429
          %4444 = vmatprep.subr.mxu0 0.0
          %4445 = vmatpush1.msra.mxu0 %v4428
          %4446 = vmatprep.subr.mxu0 0.0
          %4447 = vmatpush1.msra.mxu0 %v4427
          %4448 = vmatprep.subr.mxu0 0.0
          %4449 = vmatpush1.msra.mxu0 %v4426
          %4450 = vmatprep.subr.mxu0 0.0
          %4451 = vmatpush1.msra.mxu0 %v4425
          %4452 = vmatprep.subr.mxu0 0.0
          %4453 = vmatpush1.msra.mxu0 %v4424
          %4454 = vmatprep.subr.mxu0 0.0
          %4455 = vmatpush1.msra.mxu0 %v4423
          %4456 = vmatprep.subr.mxu0 0.0
          %4457 = vmatpush1.msra.mxu0 %v4422
          %4458 = vmatprep.subr.mxu0 0.0
          %4459 = vmatpush1.msra.mxu0 %v4421
          %4460 = vmatprep.subr.mxu0 0.0
          %4461 = vmatpush1.msra.mxu0 %v4420
          %4462 = vmatprep.subr.mxu0 0.0
          %4463 = vmatpush1.msra.mxu0 %v4419
          %4464 = vmatprep.subr.mxu0 0.0
          %4465 = vmatpush1.msra.mxu0 %v4418
          %4466 = vmatprep.subr.mxu0 0.0
          %4467 = vmatpush2.msra.mxu0 0.0
          %4468 = vmatprep.subr.mxu0 0.0
          %4469 = vmatpush2.msra.mxu0 0.0
          %4470 = vmatprep.subr.mxu0 0.0
          %4471 = vmatpush2.msra.mxu0 0.0
          %4472 = vmatprep.subr.mxu0 0.0
          %4473 = vmatpush2.msra.mxu0 0.0
          %4474 = vmatprep.subr.mxu0 0.0
          %4475 = vmatpush2.msra.mxu0 0.0
          %4476 = vmatprep.subr.mxu0 0.0
          %4477 = vmatpush2.msra.mxu0 0.0
          %4478 = vmatprep.subr.mxu0 0.0
          %4479 = vmatpush2.msra.mxu0 0.0
          %4480 = vmatprep.subr.mxu0 0.0
          %4481 = vmatpush2.msra.mxu0 0.0
          %4482 = vmatprep.subr.mxu0 0.0
          %4483 = vmatpush2.msra.mxu0 0.0
          %4484 = vmatprep.subr.mxu0 0.0
          %4485 = vmatpush2.msra.mxu0 0.0
          %4486 = vmatprep.subr.mxu0 0.0
          %4487 = vmatpush2.msra.mxu0 0.0
          %4488 = vmatprep.subr.mxu0 0.0
          %4489 = vmatpush2.msra.mxu0 0.0
          %4490 = vmatprep.subr.mxu0 0.0
          %4491 = vmatpush2.msra.mxu0 0.0
          %4492 = vmatprep.subr.mxu0 0.0
          %4493 = vmatpush2.msra.mxu0 0.0
          %4494 = vmatprep.subr.mxu0 0.0
          %4495 = vmatpush2.msra.mxu0 0.0
          %4496 = vmatprep.subr.mxu0 0.0
          %4497 = vmatpush2.msra.mxu0 0.0
          %4498 = vmatprep.mubr.f32.mxu0 0.0
          %4499 = vmatmul.mubr.f32.gmra.mxu0 %v4388
          %v4500 = vpop.f32.mrf.mxu0
          %v4501 = vadd.f32 0.0, %v4500
          %v4502 = vpop.f32.mrf.mxu0
          %4503 = vdwg.mxu0
          %v4504 = vadd.f32 %v4417, %v4501
          %v4505 = vld [vmem:[%s12] sm:$0x1]
          %v4507 = vlaneseq
          %v4508 = vshrl.u32 %v4507, 7
          %v4509 = vsub.s32 0, %v4508
          %v4510 = vrot.slane %v4505, %v4509
          %v4512 = vadd.f32 %v4504, %v4510
          %v4513 = vmul.f32 %v4512, %v4512
          %v4514 = vmul.f32 %v4512, %v4513
          %v4515 = vmul.f32 %v4514, 0.044715
          %v4516 = vadd.f32 %v4512, %v4515
          %v4517 = vmul.f32 %v4516, 0.7978846
          %v4518 = vtanh.pop %v4517
          %v4519 = vadd.f32 %v4518, 1.0
          %v4520 = vmul.f32 %v4519, 0.5
          %v4521 = vmul.f32 %v4512, %v4520
          %v4522 = vld [vmem:[%s13] sm:$0x1]
          %v4524 = vlaneseq
          %v4525 = vshrl.u32 %v4524, 7
          %v4526 = vsub.s32 0, %v4525
          %v4527 = vrot.slane %v4522, %v4526
          %v4529 = vmul.f32 %v4521, %v4527
          %4530 = vadd.xlane.f32.xlu0 %v4529
          %v4531 = vpop.xlane.xlu0 %4530
          %s4532 = sld [smem:[#allocation6]]
          %v4533 = vstv %s4532
          %v4534 = vadd.f32 %v4531, %v4533
          %vm4535 = vcmask 7168
          %4536 = vst.msk [vmem:[%s636] sm:$0xff] %vm4535, %v4534
        $region112: #{tpu_custom_call.1} parent=79 // pred_fallthru
          _
        %p4537 = scmp.lt.s32.totalorder %s37, 0
        %s4538 = scalar_select %p4537, %s37, 0
        %s4539 = smul.addr %s4538, 8
        %s4540 = scalar_lea.vmem %s15, %s4539
        // Predicated region
        $region113: #{tpu_custom_call.1} parent=79 // pred_check
          %p4541 = pneg %p395
        $region114: #{tpu_custom_call.1} parent=79 // pred_check_branch
          %4543 = sbr.rel (%p4541) target = $region116
        $region115: #{tpu_custom_call.1} parent=79 // pred_region
          _
        $region116: #{tpu_custom_call.1} parent=79 // pred_fallthru
          _
        // Predicated region
        $region117: #{tpu_custom_call.1} parent=79 // pred_check
          %p4544 = pneg %p395
        $region118: #{tpu_custom_call.1} parent=79 // pred_check_branch
          %4546 = sbr.rel (%p4544) target = $region120
        $region119: #{tpu_custom_call.1} parent=79 // pred_region
          %p4547 = scmp.lt.s32.totalorder %s37, 0
          %s4548 = scalar_select %p4547, %s37, 0
          %s4549 = smul.addr %s4548, 8
          %s4550 = scalar_lea.vmem %s15, %s4549
        $region120: #{tpu_custom_call.1} parent=79 // pred_fallthru
          _
      $region80: #{tpu_custom_call.1} parent=5 // pred_fallthru
        _
      %p4551 = scmp.le.s32.totalorder 2, %s28
      // Predicated region
      $region121: #{tpu_custom_call.1} parent=5 // pred_check
        %p4552 = pneg %p4551
      $region122: #{tpu_custom_call.1} parent=5 // pred_check_branch
        %4554 = sbr.rel (%p4552) target = $region124
      $region123: #{tpu_custom_call.1} parent=5 // pred_region
        %s4555 = ssub.s32 %s28, 2
      $region124: #{tpu_custom_call.1} parent=5 // pred_fallthru
        _
    $region6: #{tpu_custom_call.1} parent=1 // loop_footer
      %s32 = sadd.s32 1, %s28
    $region7: #{tpu_custom_call.1} parent=1 // loop_footer_branch
      %27 = sbr.rel target = $region3
    $region8: #{tpu_custom_call.1} parent=1 // loop_exit
      _
    %4556 = vsyncpa [#allocation8], 1
    %s4557 = scalar_lea.sflag [#allocation8], 1
    %4558 = vsyncpa %s4557, 1
    %4559 = vsyncpa [#allocation10], 1
    %4560 = vsyncpa [#allocation13], 1
    %4561 = vsyncpa [#allocation16], 1

</llo_original>
